<compile_context>
chip_gen: v5e
topology: v5e:2x2
jax: 0.10.0
libtpu: 0.0.40
codegen_flags: <defaults>
</compile_context>

<pallas_src>
import functools

import jax
import jax.numpy as jnp
from jax import lax
from jax.experimental import pallas as pl
from jax.experimental.pallas import tpu as pltpu


SUBLANE = 8                    # sublane tile
LANE = 128                     # lane tile
GATE_GROUP = 32                # lane-group width per gate (requires H <= 32)
FUSED_LANES = 4 * GATE_GROUP   # [ n | z | r | z(dup) ] = 128 lanes
MATMUL_DTYPE = jnp.bfloat16    # MXU operand dtype; accumulation is always f32.


def _round_up(x, m):
    return ((x + m - 1) // m) * m


# ----------------------------- Pallas kernel --------------------------------

def gru_fused_kernel(x_ref, wi_ref, wh_ref, bi_ref, bhn_ref,
                     wlin_ref, blin_ref, y_ref, gi_ref):
    """Fused GRU sequence + Linear head (single invocation, no grid).

    x_ref    : (T*Bp, I)   time-major, batch-padded input (bf16)
    wi_ref   : (I, 128)    fused input weights, lanes [ n | z | r | z ]
    wh_ref   : (32, 128)   fused recurrent weights, same lane layout (K = 32)
    bi_ref   : (1, 128)    b_i* for every group, plus b_hz / b_hr folded in (f32)
    bhn_ref  : (1, 128)    b_hn in lanes [0:32], zeros elsewhere (f32)
    wlin_ref : (T, 32, 128) per-timestep Linear weights (pre-transposed)
    blin_ref : (1, 128)    Linear bias (f32)
    y_ref    : (Bp, 128)   output (f32), lane-dense
    gi_ref   : (T*Bp, 128) VMEM scratch: hoisted input projections (f32)
    """
    T = wlin_ref.shape[0]
    G = wh_ref.shape[0]            # 32: lane-group width == hidden (padded)
    Bp, Op = y_ref.shape

    # Hoisted: input projections (+ all foldable biases) for every timestep,
    # computed with a single MXU matmul instead of T small ones.
    gi_ref[...] = (
        jnp.dot(x_ref[...], wi_ref[...], preferred_element_type=jnp.float32)
        + bi_ref[...]
    )

    wh = wh_ref[...]               # (32, 128) bf16, loaded once
    bhn = bhn_ref[...]             # (1, 128) f32, loaded once

    def step(t, carry):
        h, hb, y = carry           # f32 (Bp,32), bf16 (Bp,32), f32 (Bp,128)

        row = pl.multiple_of(t * Bp, SUBLANE)
        gi = gi_ref[pl.ds(row, Bp), :]                       # (Bp, 128)

        # One 128-lane recurrent matmul (K = 32) for all three gates.
        gh = jnp.dot(hb, wh, preferred_element_type=jnp.float32)   # (Bp, 128)

        # Lanes of s: [0:32] unused, [32:64] z, [64:96] r, [96:128] z (dup).
        s = jax.nn.sigmoid(gi + gh)

        # Align r with the n group: r sits exactly half the tile (64 lanes)
        # away, so a roll by 64 lands it in lanes [0:32] for either roll
        # direction.  z is duplicated in the two groups that are 32 lanes away
        # from group 0 in either direction, so a roll by 32 also lands z in
        # lanes [0:32] regardless of direction.  Both rolls run on the XLU,
        # off the VPU/MXU critical path.
        r0 = pltpu.roll(s, 2 * G, axis=1)                    # r -> lanes [0:32]
        z0 = pltpu.roll(s, G, axis=1)                        # z -> lanes [0:32]

        # n = tanh(x W_in^T + b_in + r * (h W_hn^T + b_hn)); only lanes [0:32]
        # of this full-width expression are meaningful.
        n = jnp.tanh(gi + r0 * (gh + bhn))

        n32 = n[:, :G]
        z32 = z0[:, :G]
        h_new = (1.0 - z32) * n32 + z32 * h                  # (Bp, 32) f32
        hb_new = h_new.astype(MATMUL_DTYPE)                  # single cast/step

        # Fused Linear head: y += h_t @ W_lin[:, t*H:(t+1)*H]^T   (K = 32)
        y = y + jnp.dot(hb_new, wlin_ref[t],
                        preferred_element_type=jnp.float32)
        return h_new, hb_new, y

    h0 = jnp.zeros((Bp, G), jnp.float32)
    hb0 = jnp.zeros((Bp, G), MATMUL_DTYPE)
    y0 = jnp.zeros((Bp, Op), jnp.float32)
    _, _, y = lax.fori_loop(0, T, step, (h0, hb0, y0), unroll=True)

    y_ref[...] = y + blin_ref[...]


# ------------------------------- Wrappers ------------------------------------

_VMEM = pl.BlockSpec(memory_space=pltpu.MemorySpace.VMEM)


def prepare_params(params, *, input_size, hidden_size, output_size, seq_length):
    """One-time fusion / packing / padding of the PyTorch-layout params."""
    I, H, O, T = input_size, hidden_size, output_size, seq_length
    G = GATE_GROUP
    L = FUSED_LANES
    assert H <= G, "packed-gate layout requires hidden_size <= 32"
    Op = _round_up(max(O, LANE), LANE)     # output lane width (128)

    w_ih, w_hh = params["w_ih"], params["w_hh"]        # (3H, I), (3H, H)
    b_ih, b_hh = params["b_ih"], params["b_hh"]        # (3H,),   (3H,)

    # PyTorch gate order in the stacked weights: r, z, n.
    w_ir, w_iz, w_in = w_ih[:H], w_ih[H:2 * H], w_ih[2 * H:]
    w_hr, w_hz, w_hn = w_hh[:H], w_hh[H:2 * H], w_hh[2 * H:]
    b_ir, b_iz, b_in = b_ih[:H], b_ih[H:2 * H], b_ih[2 * H:]
    b_hr, b_hz, b_hn = b_hh[:H], b_hh[H:2 * H], b_hh[2 * H:]

    # Fused lane layout: [ n | z | r | z(dup) ] at offsets 0 / 32 / 64 / 96.
    wi = jnp.zeros((I, L), jnp.float32)
    wi = wi.at[:, 0 * G:0 * G + H].set(w_in.T)
    wi = wi.at[:, 1 * G:1 * G + H].set(w_iz.T)
    wi = wi.at[:, 2 * G:2 * G + H].set(w_ir.T)
    wi = wi.at[:, 3 * G:3 * G + H].set(w_iz.T)

    wh = jnp.zeros((G, L), jnp.float32)                 # K = 32 (not 128)
    wh = wh.at[:H, 0 * G:0 * G + H].set(w_hn.T)
    wh = wh.at[:H, 1 * G:1 * G + H].set(w_hz.T)
    wh = wh.at[:H, 2 * G:2 * G + H].set(w_hr.T)
    wh = wh.at[:H, 3 * G:3 * G + H].set(w_hz.T)

    # Fold b_hr / b_hz into the hoisted bias (sigmoid args are additive);
    # b_hn must stay inside r * (h @ W_hn^T + b_hn) and is kept separate.
    bi = jnp.zeros((1, L), jnp.float32)
    bi = bi.at[0, 0 * G:0 * G + H].set(b_in)
    bi = bi.at[0, 1 * G:1 * G + H].set(b_iz + b_hz)
    bi = bi.at[0, 2 * G:2 * G + H].set(b_ir + b_hr)
    bi = bi.at[0, 3 * G:3 * G + H].set(b_iz + b_hz)
    bhn = jnp.zeros((1, L), jnp.float32).at[0, :H].set(b_hn)

    # Linear head split per timestep: y = sum_t h_t @ W_lin[:, t*H:(t+1)*H]^T + b
    wlt = params["w_lin"].reshape(O, T, H).transpose(1, 2, 0)     # (T, H, O)
    wlin = jnp.zeros((T, G, Op), jnp.float32).at[:, :H, :O].set(wlt)
    blin = jnp.zeros((1, Op), jnp.float32).at[0, :O].set(params["b_lin"])

    return {
        "wi": wi.astype(MATMUL_DTYPE),
        "wh": wh.astype(MATMUL_DTYPE),
        "bi": bi,
        "bhn": bhn,
        "wlin": wlin.astype(MATMUL_DTYPE),
        "blin": blin,
    }


@functools.partial(jax.jit, static_argnames=("output_size",))
def gru_forward(x, prep, *, output_size):
    """x: (B, T, input_size) f32 -> (B, output_size) f32."""
    B, T, I = x.shape
    Bp = _round_up(max(B, SUBLANE), SUBLANE)
    Op = prep["blin"].shape[1]
    L = prep["bi"].shape[1]

    # Time-major + batch-pad + flatten (tiny layout prep for the fused kernel).
    x_tm = jnp.transpose(x, (1, 0, 2))                            # (T, B, I)
    x_tm = jnp.pad(x_tm, ((0, 0), (0, Bp - B), (0, 0)))           # (T, Bp, I)
    x_flat = x_tm.reshape(T * Bp, I).astype(MATMUL_DTYPE)

    y_pad = pl.pallas_call(
        gru_fused_kernel,
        out_shape=jax.ShapeDtypeStruct((Bp, Op), jnp.float32),
        in_specs=[_VMEM] * 7,
        out_specs=_VMEM,
        scratch_shapes=[pltpu.VMEM((T * Bp, L), jnp.float32)],
    )(x_flat, prep["wi"], prep["wh"], prep["bi"], prep["bhn"],
      prep["wlin"], prep["blin"])

    return y_pad[:B, :output_size]


# ----------------------------- Reference / init ------------------------------

def gru_reference(x, params, *, hidden_size):
    """Pure-JAX f32 reference (matches PyTorch GRU + Linear semantics)."""
    H = hidden_size
    B, T, _ = x.shape
    w_ih, w_hh = params["w_ih"], params["w_hh"]
    b_ih, b_hh = params["b_ih"], params["b_hh"]

    def cell(h, x_t):
        gi = x_t @ w_ih.T + b_ih
        gh = h @ w_hh.T + b_hh
        r = jax.nn.sigmoid(gi[:, :H] + gh[:, :H])
        z = jax.nn.sigmoid(gi[:, H:2 * H] + gh[:, H:2 * H])
        n = jnp.tanh(gi[:, 2 * H:] + r * gh[:, 2 * H:])
        h = (1.0 - z) * n + z * h
        return h, h

    h0 = jnp.zeros((B, H), jnp.float32)
    _, hs = lax.scan(cell, h0, jnp.transpose(x, (1, 0, 2)))       # (T, B, H)
    h_flat = jnp.transpose(hs, (1, 0, 2)).reshape(B, T * H)
    return h_flat @ params["w_lin"].T + params["b_lin"]


def init_params(key, input_size, hidden_size, output_size, seq_length):
    """Deterministic init mirroring PyTorch uniform(-1/sqrt(fan), 1/sqrt(fan))."""
    ks = jax.random.split(key, 6)
    k_gru = 1.0 / jnp.sqrt(hidden_size)
    k_lin = 1.0 / jnp.sqrt(hidden_size * seq_length)
    u = lambda k, shape, s: jax.random.uniform(k, shape, jnp.float32, -s, s)
    return {
        "w_ih": u(ks[0], (3 * hidden_size, input_size), k_gru),
        "w_hh": u(ks[1], (3 * hidden_size, hidden_size), k_gru),
        "b_ih": u(ks[2], (3 * hidden_size,), k_gru),
        "b_hh": u(ks[3], (3 * hidden_size,), k_gru),
        "w_lin": u(ks[4], (output_size, hidden_size * seq_length), k_lin),
        "b_lin": u(ks[5], (output_size,), k_lin),
    }


if __name__ == "__main__":
    # The torch forward reshapes to (-1, 28, input_size), so seq_length = 28.
    INPUT_SIZE = 16
    HIDDEN_SIZE = 32
    OUTPUT_SIZE = 10
    SEQ_LENGTH = 28
    BATCH = 2

    key = jax.random.PRNGKey(0)
    k_x, k_p = jax.random.split(key)

    x = jax.random.normal(k_x, (BATCH, SEQ_LENGTH, INPUT_SIZE), jnp.float32)
    params = init_params(k_p, INPUT_SIZE, HIDDEN_SIZE, OUTPUT_SIZE, SEQ_LENGTH)
    prep = prepare_params(params, input_size=INPUT_SIZE, hidden_size=HIDDEN_SIZE,
                          output_size=OUTPUT_SIZE, seq_length=SEQ_LENGTH)

    y = gru_forward(x, prep, output_size=OUTPUT_SIZE)
    jax.block_until_ready(y)

    assert y.shape == (BATCH, OUTPUT_SIZE), y.shape
    assert bool(jnp.all(jnp.isfinite(y)))

    # bf16 MXU operands + f32 accumulation -> small deviation from f32 reference.
    y_ref = gru_reference(x, params, hidden_size=HIDDEN_SIZE)
    assert bool(jnp.allclose(y, y_ref, atol=5e-2, rtol=5e-2)), \
        float(jnp.max(jnp.abs(y - y_ref)))

    print("KERNEL_OK")
</pallas_src>

<mosaic_0001>
module attributes {stable_mosaic.version = 11 : i64} {
  func.func @gru_fused_kernel(%arg0: memref<224x16xbf16, #tpu.memory_space<vmem>>, %arg1: memref<16x128xbf16, #tpu.memory_space<vmem>>, %arg2: memref<32x128xbf16, #tpu.memory_space<vmem>>, %arg3: memref<1x128xf32, #tpu.memory_space<vmem>>, %arg4: memref<1x128xf32, #tpu.memory_space<vmem>>, %arg5: memref<28x32x128xbf16, #tpu.memory_space<vmem>>, %arg6: memref<1x128xf32, #tpu.memory_space<vmem>>, %arg7: memref<8x128xf32, #tpu.memory_space<vmem>>, %arg8: memref<224x128xf32, #tpu.memory_space<vmem>>) attributes {dimension_semantics = [], scalar_prefetch = 0 : i64, scratch_operands = 1 : i64, tpu.core_type = #tpu.core_type<tc>} {
    %c0 = arith.constant 0 : index
    %c0_0 = arith.constant 0 : index
    %0 = vector.load %arg0[%c0, %c0_0] : memref<224x16xbf16, #tpu.memory_space<vmem>>, vector<224x16xbf16>
    %c0_1 = arith.constant 0 : index
    %c0_2 = arith.constant 0 : index
    %1 = vector.load %arg1[%c0_1, %c0_2] : memref<16x128xbf16, #tpu.memory_space<vmem>>, vector<16x128xbf16>
    %cst = arith.constant dense<0.000000e+00> : vector<224x128xf32>
    %2 = tpu.matmul %0, %1, %cst {dimension_numbers = #tpu.dot_dimension_numbers<[1], [0], [0], [1], [0, 0, 1, 1], [], []>} : vector<224x16xbf16>, vector<16x128xbf16>, vector<224x128xf32> -> vector<224x128xf32>
    %c0_3 = arith.constant 0 : index
    %c0_4 = arith.constant 0 : index
    %3 = vector.load %arg3[%c0_3, %c0_4] : memref<1x128xf32, #tpu.memory_space<vmem>>, vector<1x128xf32>
    %4 = vector.broadcast %3 : vector<1x128xf32> to vector<224x128xf32>
    %5 = arith.addf %2, %4 : vector<224x128xf32>
    %c0_5 = arith.constant 0 : index
    %c0_6 = arith.constant 0 : index
    %6 = vector.load %arg8[%c0_5, %c0_6] : memref<224x128xf32, #tpu.memory_space<vmem>>, vector<224x128xf32>
    tpu.vector_store %arg8[%c0_5, %c0_6], %5 {strides = array<i32>} : memref<224x128xf32, #tpu.memory_space<vmem>>, vector<224x128xf32>,
    %c0_7 = arith.constant 0 : index
    %c0_8 = arith.constant 0 : index
    %7 = vector.load %arg2[%c0_7, %c0_8] : memref<32x128xbf16, #tpu.memory_space<vmem>>, vector<32x128xbf16>
    %c0_9 = arith.constant 0 : index
    %c0_10 = arith.constant 0 : index
    %8 = vector.load %arg4[%c0_9, %c0_10] : memref<1x128xf32, #tpu.memory_space<vmem>>, vector<1x128xf32>
    %cst_11 = arith.constant 0.000000e+00 : f32
    %9 = vector.broadcast %cst_11 : f32 to vector<8x32xf32>
    %cst_12 = arith.constant 0.000000e+00 : bf16
    %10 = vector.broadcast %cst_12 : bf16 to vector<8x32xbf16>
    %cst_13 = arith.constant 0.000000e+00 : f32
    %11 = vector.broadcast %cst_13 : f32 to vector<8x128xf32>
    %c0_i32 = arith.constant 0 : i32
    %c8_i32 = arith.constant 8 : i32
    %12 = arith.muli %c0_i32, %c8_i32 : i32
    %13 = tpu.assume_multiple %12, 8 : i32
    %14 = arith.index_cast %13 : i32 to index
    %c0_14 = arith.constant 0 : index
    %15 = vector.load %arg8[%14, %c0_14] : memref<224x128xf32, #tpu.memory_space<vmem>>, vector<8x128xf32>
    %cst_15 = arith.constant dense<0.000000e+00> : vector<8x128xf32>
    %16 = tpu.matmul %10, %7, %cst_15 {dimension_numbers = #tpu.dot_dimension_numbers<[1], [0], [0], [1], [0, 0, 1, 1], [], []>} : vector<8x32xbf16>, vector<32x128xbf16>, vector<8x128xf32> -> vector<8x128xf32>
    %17 = arith.addf %15, %16 : vector<8x128xf32>
    %18 = arith.negf %17 : vector<8x128xf32>
    %19 = math.exp %18 : vector<8x128xf32>
    %cst_16 = arith.constant 1.000000e+00 : f32
    %20 = vector.broadcast %cst_16 : f32 to vector<8x128xf32>
    %21 = arith.addf %20, %19 : vector<8x128xf32>
    %22 = arith.divf %20, %21 : vector<8x128xf32>
    %c64_i32 = arith.constant 64 : i32
    %23 = tpu.dynamic_rotate %22 by %c64_i32 dim 1 : vector<8x128xf32>, i32 -> vector<8x128xf32>
    %c32_i32 = arith.constant 32 : i32
    %24 = tpu.dynamic_rotate %22 by %c32_i32 dim 1 : vector<8x128xf32>, i32 -> vector<8x128xf32>
    %25 = vector.broadcast %8 : vector<1x128xf32> to vector<8x128xf32>
    %26 = arith.addf %16, %25 : vector<8x128xf32>
    %27 = arith.mulf %23, %26 : vector<8x128xf32>
    %28 = arith.addf %15, %27 : vector<8x128xf32>
    %29 = math.tanh %28 : vector<8x128xf32>
    %30 = vector.extract_strided_slice %29 {offsets = [0, 0], sizes = [8, 32], strides = [1, 1]} : vector<8x128xf32> to vector<8x32xf32>
    %31 = vector.extract_strided_slice %24 {offsets = [0, 0], sizes = [8, 32], strides = [1, 1]} : vector<8x128xf32> to vector<8x32xf32>
    %cst_17 = arith.constant 1.000000e+00 : f32
    %32 = vector.broadcast %cst_17 : f32 to vector<8x32xf32>
    %33 = arith.subf %32, %31 : vector<8x32xf32>
    %34 = arith.mulf %33, %30 : vector<8x32xf32>
    %35 = arith.mulf %31, %9 : vector<8x32xf32>
    %36 = arith.addf %34, %35 : vector<8x32xf32>
    %37 = arith.truncf %36 : vector<8x32xf32> to vector<8x32xbf16>
    %38 = arith.index_cast %c0_i32 : i32 to index
    %c0_18 = arith.constant 0 : index
    %c0_19 = arith.constant 0 : index
    %39 = vector.load %arg5[%38, %c0_18, %c0_19] : memref<28x32x128xbf16, #tpu.memory_space<vmem>>, vector<1x32x128xbf16>
    %40 = vector.shape_cast %39 : vector<1x32x128xbf16> to vector<32x128xbf16>
    %cst_20 = arith.constant dense<0.000000e+00> : vector<8x128xf32>
    %41 = tpu.matmul %37, %40, %cst_20 {dimension_numbers = #tpu.dot_dimension_numbers<[1], [0], [0], [1], [0, 0, 1, 1], [], []>} : vector<8x32xbf16>, vector<32x128xbf16>, vector<8x128xf32> -> vector<8x128xf32>
    %42 = arith.addf %11, %41 : vector<8x128xf32>
    %c1_i32 = arith.constant 1 : i32
    %c8_i32_21 = arith.constant 8 : i32
    %43 = arith.muli %c1_i32, %c8_i32_21 : i32
    %44 = tpu.assume_multiple %43, 8 : i32
    %45 = arith.index_cast %44 : i32 to index
    %c0_22 = arith.constant 0 : index
    %46 = vector.load %arg8[%45, %c0_22] : memref<224x128xf32, #tpu.memory_space<vmem>>, vector<8x128xf32>
    %cst_23 = arith.constant dense<0.000000e+00> : vector<8x128xf32>
    %47 = tpu.matmul %37, %7, %cst_23 {dimension_numbers = #tpu.dot_dimension_numbers<[1], [0], [0], [1], [0, 0, 1, 1], [], []>} : vector<8x32xbf16>, vector<32x128xbf16>, vector<8x128xf32> -> vector<8x128xf32>
    %48 = arith.addf %46, %47 : vector<8x128xf32>
    %49 = arith.negf %48 : vector<8x128xf32>
    %50 = math.exp %49 : vector<8x128xf32>
    %cst_24 = arith.constant 1.000000e+00 : f32
    %51 = vector.broadcast %cst_24 : f32 to vector<8x128xf32>
    %52 = arith.addf %51, %50 : vector<8x128xf32>
    %53 = arith.divf %51, %52 : vector<8x128xf32>
    %c64_i32_25 = arith.constant 64 : i32
    %54 = tpu.dynamic_rotate %53 by %c64_i32_25 dim 1 : vector<8x128xf32>, i32 -> vector<8x128xf32>
    %c32_i32_26 = arith.constant 32 : i32
    %55 = tpu.dynamic_rotate %53 by %c32_i32_26 dim 1 : vector<8x128xf32>, i32 -> vector<8x128xf32>
    %56 = vector.broadcast %8 : vector<1x128xf32> to vector<8x128xf32>
    %57 = arith.addf %47, %56 : vector<8x128xf32>
    %58 = arith.mulf %54, %57 : vector<8x128xf32>
    %59 = arith.addf %46, %58 : vector<8x128xf32>
    %60 = math.tanh %59 : vector<8x128xf32>
    %61 = vector.extract_strided_slice %60 {offsets = [0, 0], sizes = [8, 32], strides = [1, 1]} : vector<8x128xf32> to vector<8x32xf32>
    %62 = vector.extract_strided_slice %55 {offsets = [0, 0], sizes = [8, 32], strides = [1, 1]} : vector<8x128xf32> to vector<8x32xf32>
    %cst_27 = arith.constant 1.000000e+00 : f32
    %63 = vector.broadcast %cst_27 : f32 to vector<8x32xf32>
    %64 = arith.subf %63, %62 : vector<8x32xf32>
    %65 = arith.mulf %64, %61 : vector<8x32xf32>
    %66 = arith.mulf %62, %36 : vector<8x32xf32>
    %67 = arith.addf %65, %66 : vector<8x32xf32>
    %68 = arith.truncf %67 : vector<8x32xf32> to vector<8x32xbf16>
    %69 = arith.index_cast %c1_i32 : i32 to index
    %c0_28 = arith.constant 0 : index
    %c0_29 = arith.constant 0 : index
    %70 = vector.load %arg5[%69, %c0_28, %c0_29] : memref<28x32x128xbf16, #tpu.memory_space<vmem>>, vector<1x32x128xbf16>
    %71 = vector.shape_cast %70 : vector<1x32x128xbf16> to vector<32x128xbf16>
    %cst_30 = arith.constant dense<0.000000e+00> : vector<8x128xf32>
    %72 = tpu.matmul %68, %71, %cst_30 {dimension_numbers = #tpu.dot_dimension_numbers<[1], [0], [0], [1], [0, 0, 1, 1], [], []>} : vector<8x32xbf16>, vector<32x128xbf16>, vector<8x128xf32> -> vector<8x128xf32>
    %73 = arith.addf %42, %72 : vector<8x128xf32>
    %c2_i32 = arith.constant 2 : i32
    %c8_i32_31 = arith.constant 8 : i32
    %74 = arith.muli %c2_i32, %c8_i32_31 : i32
    %75 = tpu.assume_multiple %74, 8 : i32
    %76 = arith.index_cast %75 : i32 to index
    %c0_32 = arith.constant 0 : index
    %77 = vector.load %arg8[%76, %c0_32] : memref<224x128xf32, #tpu.memory_space<vmem>>, vector<8x128xf32>
    %cst_33 = arith.constant dense<0.000000e+00> : vector<8x128xf32>
    %78 = tpu.matmul %68, %7, %cst_33 {dimension_numbers = #tpu.dot_dimension_numbers<[1], [0], [0], [1], [0, 0, 1, 1], [], []>} : vector<8x32xbf16>, vector<32x128xbf16>, vector<8x128xf32> -> vector<8x128xf32>
    %79 = arith.addf %77, %78 : vector<8x128xf32>
    %80 = arith.negf %79 : vector<8x128xf32>
    %81 = math.exp %80 : vector<8x128xf32>
    %cst_34 = arith.constant 1.000000e+00 : f32
    %82 = vector.broadcast %cst_34 : f32 to vector<8x128xf32>
    %83 = arith.addf %82, %81 : vector<8x128xf32>
    %84 = arith.divf %82, %83 : vector<8x128xf32>
    %c64_i32_35 = arith.constant 64 : i32
    %85 = tpu.dynamic_rotate %84 by %c64_i32_35 dim 1 : vector<8x128xf32>, i32 -> vector<8x128xf32>
    %c32_i32_36 = arith.constant 32 : i32
    %86 = tpu.dynamic_rotate %84 by %c32_i32_36 dim 1 : vector<8x128xf32>, i32 -> vector<8x128xf32>
    %87 = vector.broadcast %8 : vector<1x128xf32> to vector<8x128xf32>
    %88 = arith.addf %78, %87 : vector<8x128xf32>
    %89 = arith.mulf %85, %88 : vector<8x128xf32>
    %90 = arith.addf %77, %89 : vector<8x128xf32>
    %91 = math.tanh %90 : vector<8x128xf32>
    %92 = vector.extract_strided_slice %91 {offsets = [0, 0], sizes = [8, 32], strides = [1, 1]} : vector<8x128xf32> to vector<8x32xf32>
    %93 = vector.extract_strided_slice %86 {offsets = [0, 0], sizes = [8, 32], strides = [1, 1]} : vector<8x128xf32> to vector<8x32xf32>
    %cst_37 = arith.constant 1.000000e+00 : f32
    %94 = vector.broadcast %cst_37 : f32 to vector<8x32xf32>
    %95 = arith.subf %94, %93 : vector<8x32xf32>
    %96 = arith.mulf %95, %92 : vector<8x32xf32>
    %97 = arith.mulf %93, %67 : vector<8x32xf32>
    %98 = arith.addf %96, %97 : vector<8x32xf32>
    %99 = arith.truncf %98 : vector<8x32xf32> to vector<8x32xbf16>
    %100 = arith.index_cast %c2_i32 : i32 to index
    %c0_38 = arith.constant 0 : index
    %c0_39 = arith.constant 0 : index
    %101 = vector.load %arg5[%100, %c0_38, %c0_39] : memref<28x32x128xbf16, #tpu.memory_space<vmem>>, vector<1x32x128xbf16>
    %102 = vector.shape_cast %101 : vector<1x32x128xbf16> to vector<32x128xbf16>
    %cst_40 = arith.constant dense<0.000000e+00> : vector<8x128xf32>
    %103 = tpu.matmul %99, %102, %cst_40 {dimension_numbers = #tpu.dot_dimension_numbers<[1], [0], [0], [1], [0, 0, 1, 1], [], []>} : vector<8x32xbf16>, vector<32x128xbf16>, vector<8x128xf32> -> vector<8x128xf32>
    %104 = arith.addf %73, %103 : vector<8x128xf32>
    %c3_i32 = arith.constant 3 : i32
    %c8_i32_41 = arith.constant 8 : i32
    %105 = arith.muli %c3_i32, %c8_i32_41 : i32
    %106 = tpu.assume_multiple %105, 8 : i32
    %107 = arith.index_cast %106 : i32 to index
    %c0_42 = arith.constant 0 : index
    %108 = vector.load %arg8[%107, %c0_42] : memref<224x128xf32, #tpu.memory_space<vmem>>, vector<8x128xf32>
    %cst_43 = arith.constant dense<0.000000e+00> : vector<8x128xf32>
    %109 = tpu.matmul %99, %7, %cst_43 {dimension_numbers = #tpu.dot_dimension_numbers<[1], [0], [0], [1], [0, 0, 1, 1], [], []>} : vector<8x32xbf16>, vector<32x128xbf16>, vector<8x128xf32> -> vector<8x128xf32>
    %110 = arith.addf %108, %109 : vector<8x128xf32>
    %111 = arith.negf %110 : vector<8x128xf32>
    %112 = math.exp %111 : vector<8x128xf32>
    %cst_44 = arith.constant 1.000000e+00 : f32
    %113 = vector.broadcast %cst_44 : f32 to vector<8x128xf32>
    %114 = arith.addf %113, %112 : vector<8x128xf32>
    %115 = arith.divf %113, %114 : vector<8x128xf32>
    %c64_i32_45 = arith.constant 64 : i32
    %116 = tpu.dynamic_rotate %115 by %c64_i32_45 dim 1 : vector<8x128xf32>, i32 -> vector<8x128xf32>
    %c32_i32_46 = arith.constant 32 : i32
    %117 = tpu.dynamic_rotate %115 by %c32_i32_46 dim 1 : vector<8x128xf32>, i32 -> vector<8x128xf32>
    %118 = vector.broadcast %8 : vector<1x128xf32> to vector<8x128xf32>
    %119 = arith.addf %109, %118 : vector<8x128xf32>
    %120 = arith.mulf %116, %119 : vector<8x128xf32>
    %121 = arith.addf %108, %120 : vector<8x128xf32>
    %122 = math.tanh %121 : vector<8x128xf32>
    %123 = vector.extract_strided_slice %122 {offsets = [0, 0], sizes = [8, 32], strides = [1, 1]} : vector<8x128xf32> to vector<8x32xf32>
    %124 = vector.extract_strided_slice %117 {offsets = [0, 0], sizes = [8, 32], strides = [1, 1]} : vector<8x128xf32> to vector<8x32xf32>
    %cst_47 = arith.constant 1.000000e+00 : f32
    %125 = vector.broadcast %cst_47 : f32 to vector<8x32xf32>
    %126 = arith.subf %125, %124 : vector<8x32xf32>
    %127 = arith.mulf %126, %123 : vector<8x32xf32>
    %128 = arith.mulf %124, %98 : vector<8x32xf32>
    %129 = arith.addf %127, %128 : vector<8x32xf32>
    %130 = arith.truncf %129 : vector<8x32xf32> to vector<8x32xbf16>
    %131 = arith.index_cast %c3_i32 : i32 to index
    %c0_48 = arith.constant 0 : index
    %c0_49 = arith.constant 0 : index
    %132 = vector.load %arg5[%131, %c0_48, %c0_49] : memref<28x32x128xbf16, #tpu.memory_space<vmem>>, vector<1x32x128xbf16>
    %133 = vector.shape_cast %132 : vector<1x32x128xbf16> to vector<32x128xbf16>
    %cst_50 = arith.constant dense<0.000000e+00> : vector<8x128xf32>
    %134 = tpu.matmul %130, %133, %cst_50 {dimension_numbers = #tpu.dot_dimension_numbers<[1], [0], [0], [1], [0, 0, 1, 1], [], []>} : vector<8x32xbf16>, vector<32x128xbf16>, vector<8x128xf32> -> vector<8x128xf32>
    %135 = arith.addf %104, %134 : vector<8x128xf32>
    %c4_i32 = arith.constant 4 : i32
    %c8_i32_51 = arith.constant 8 : i32
    %136 = arith.muli %c4_i32, %c8_i32_51 : i32
    %137 = tpu.assume_multiple %136, 8 : i32
    %138 = arith.index_cast %137 : i32 to index
    %c0_52 = arith.constant 0 : index
    %139 = vector.load %arg8[%138, %c0_52] : memref<224x128xf32, #tpu.memory_space<vmem>>, vector<8x128xf32>
    %cst_53 = arith.constant dense<0.000000e+00> : vector<8x128xf32>
    %140 = tpu.matmul %130, %7, %cst_53 {dimension_numbers = #tpu.dot_dimension_numbers<[1], [0], [0], [1], [0, 0, 1, 1], [], []>} : vector<8x32xbf16>, vector<32x128xbf16>, vector<8x128xf32> -> vector<8x128xf32>
    %141 = arith.addf %139, %140 : vector<8x128xf32>
    %142 = arith.negf %141 : vector<8x128xf32>
    %143 = math.exp %142 : vector<8x128xf32>
    %cst_54 = arith.constant 1.000000e+00 : f32
    %144 = vector.broadcast %cst_54 : f32 to vector<8x128xf32>
    %145 = arith.addf %144, %143 : vector<8x128xf32>
    %146 = arith.divf %144, %145 : vector<8x128xf32>
    %c64_i32_55 = arith.constant 64 : i32
    %147 = tpu.dynamic_rotate %146 by %c64_i32_55 dim 1 : vector<8x128xf32>, i32 -> vector<8x128xf32>
    %c32_i32_56 = arith.constant 32 : i32
    %148 = tpu.dynamic_rotate %146 by %c32_i32_56 dim 1 : vector<8x128xf32>, i32 -> vector<8x128xf32>
    %149 = vector.broadcast %8 : vector<1x128xf32> to vector<8x128xf32>
    %150 = arith.addf %140, %149 : vector<8x128xf32>
    %151 = arith.mulf %147, %150 : vector<8x128xf32>
    %152 = arith.addf %139, %151 : vector<8x128xf32>
    %153 = math.tanh %152 : vector<8x128xf32>
    %154 = vector.extract_strided_slice %153 {offsets = [0, 0], sizes = [8, 32], strides = [1, 1]} : vector<8x128xf32> to vector<8x32xf32>
    %155 = vector.extract_strided_slice %148 {offsets = [0, 0], sizes = [8, 32], strides = [1, 1]} : vector<8x128xf32> to vector<8x32xf32>
    %cst_57 = arith.constant 1.000000e+00 : f32
    %156 = vector.broadcast %cst_57 : f32 to vector<8x32xf32>
    %157 = arith.subf %156, %155 : vector<8x32xf32>
    %158 = arith.mulf %157, %154 : vector<8x32xf32>
    %159 = arith.mulf %155, %129 : vector<8x32xf32>
    %160 = arith.addf %158, %159 : vector<8x32xf32>
    %161 = arith.truncf %160 : vector<8x32xf32> to vector<8x32xbf16>
    %162 = arith.index_cast %c4_i32 : i32 to index
    %c0_58 = arith.constant 0 : index
    %c0_59 = arith.constant 0 : index
    %163 = vector.load %arg5[%162, %c0_58, %c0_59] : memref<28x32x128xbf16, #tpu.memory_space<vmem>>, vector<1x32x128xbf16>
    %164 = vector.shape_cast %163 : vector<1x32x128xbf16> to vector<32x128xbf16>
    %cst_60 = arith.constant dense<0.000000e+00> : vector<8x128xf32>
    %165 = tpu.matmul %161, %164, %cst_60 {dimension_numbers = #tpu.dot_dimension_numbers<[1], [0], [0], [1], [0, 0, 1, 1], [], []>} : vector<8x32xbf16>, vector<32x128xbf16>, vector<8x128xf32> -> vector<8x128xf32>
    %166 = arith.addf %135, %165 : vector<8x128xf32>
    %c5_i32 = arith.constant 5 : i32
    %c8_i32_61 = arith.constant 8 : i32
    %167 = arith.muli %c5_i32, %c8_i32_61 : i32
    %168 = tpu.assume_multiple %167, 8 : i32
    %169 = arith.index_cast %168 : i32 to index
    %c0_62 = arith.constant 0 : index
    %170 = vector.load %arg8[%169, %c0_62] : memref<224x128xf32, #tpu.memory_space<vmem>>, vector<8x128xf32>
    %cst_63 = arith.constant dense<0.000000e+00> : vector<8x128xf32>
    %171 = tpu.matmul %161, %7, %cst_63 {dimension_numbers = #tpu.dot_dimension_numbers<[1], [0], [0], [1], [0, 0, 1, 1], [], []>} : vector<8x32xbf16>, vector<32x128xbf16>, vector<8x128xf32> -> vector<8x128xf32>
    %172 = arith.addf %170, %171 : vector<8x128xf32>
    %173 = arith.negf %172 : vector<8x128xf32>
    %174 = math.exp %173 : vector<8x128xf32>
    %cst_64 = arith.constant 1.000000e+00 : f32
    %175 = vector.broadcast %cst_64 : f32 to vector<8x128xf32>
    %176 = arith.addf %175, %174 : vector<8x128xf32>
    %177 = arith.divf %175, %176 : vector<8x128xf32>
    %c64_i32_65 = arith.constant 64 : i32
    %178 = tpu.dynamic_rotate %177 by %c64_i32_65 dim 1 : vector<8x128xf32>, i32 -> vector<8x128xf32>
    %c32_i32_66 = arith.constant 32 : i32
    %179 = tpu.dynamic_rotate %177 by %c32_i32_66 dim 1 : vector<8x128xf32>, i32 -> vector<8x128xf32>
    %180 = vector.broadcast %8 : vector<1x128xf32> to vector<8x128xf32>
    %181 = arith.addf %171, %180 : vector<8x128xf32>
    %182 = arith.mulf %178, %181 : vector<8x128xf32>
    %183 = arith.addf %170, %182 : vector<8x128xf32>
    %184 = math.tanh %183 : vector<8x128xf32>
    %185 = vector.extract_strided_slice %184 {offsets = [0, 0], sizes = [8, 32], strides = [1, 1]} : vector<8x128xf32> to vector<8x32xf32>
    %186 = vector.extract_strided_slice %179 {offsets = [0, 0], sizes = [8, 32], strides = [1, 1]} : vector<8x128xf32> to vector<8x32xf32>
    %cst_67 = arith.constant 1.000000e+00 : f32
    %187 = vector.broadcast %cst_67 : f32 to vector<8x32xf32>
    %188 = arith.subf %187, %186 : vector<8x32xf32>
    %189 = arith.mulf %188, %185 : vector<8x32xf32>
    %190 = arith.mulf %186, %160 : vector<8x32xf32>
    %191 = arith.addf %189, %190 : vector<8x32xf32>
    %192 = arith.truncf %191 : vector<8x32xf32> to vector<8x32xbf16>
    %193 = arith.index_cast %c5_i32 : i32 to index
    %c0_68 = arith.constant 0 : index
    %c0_69 = arith.constant 0 : index
    %194 = vector.load %arg5[%193, %c0_68, %c0_69] : memref<28x32x128xbf16, #tpu.memory_space<vmem>>, vector<1x32x128xbf16>
    %195 = vector.shape_cast %194 : vector<1x32x128xbf16> to vector<32x128xbf16>
    %cst_70 = arith.constant dense<0.000000e+00> : vector<8x128xf32>
    %196 = tpu.matmul %192, %195, %cst_70 {dimension_numbers = #tpu.dot_dimension_numbers<[1], [0], [0], [1], [0, 0, 1, 1], [], []>} : vector<8x32xbf16>, vector<32x128xbf16>, vector<8x128xf32> -> vector<8x128xf32>
    %197 = arith.addf %166, %196 : vector<8x128xf32>
    %c6_i32 = arith.constant 6 : i32
    %c8_i32_71 = arith.constant 8 : i32
    %198 = arith.muli %c6_i32, %c8_i32_71 : i32
    %199 = tpu.assume_multiple %198, 8 : i32
    %200 = arith.index_cast %199 : i32 to index
    %c0_72 = arith.constant 0 : index
    %201 = vector.load %arg8[%200, %c0_72] : memref<224x128xf32, #tpu.memory_space<vmem>>, vector<8x128xf32>
    %cst_73 = arith.constant dense<0.000000e+00> : vector<8x128xf32>
    %202 = tpu.matmul %192, %7, %cst_73 {dimension_numbers = #tpu.dot_dimension_numbers<[1], [0], [0], [1], [0, 0, 1, 1], [], []>} : vector<8x32xbf16>, vector<32x128xbf16>, vector<8x128xf32> -> vector<8x128xf32>
    %203 = arith.addf %201, %202 : vector<8x128xf32>
    %204 = arith.negf %203 : vector<8x128xf32>
    %205 = math.exp %204 : vector<8x128xf32>
    %cst_74 = arith.constant 1.000000e+00 : f32
    %206 = vector.broadcast %cst_74 : f32 to vector<8x128xf32>
    %207 = arith.addf %206, %205 : vector<8x128xf32>
    %208 = arith.divf %206, %207 : vector<8x128xf32>
    %c64_i32_75 = arith.constant 64 : i32
    %209 = tpu.dynamic_rotate %208 by %c64_i32_75 dim 1 : vector<8x128xf32>, i32 -> vector<8x128xf32>
    %c32_i32_76 = arith.constant 32 : i32
    %210 = tpu.dynamic_rotate %208 by %c32_i32_76 dim 1 : vector<8x128xf32>, i32 -> vector<8x128xf32>
    %211 = vector.broadcast %8 : vector<1x128xf32> to vector<8x128xf32>
    %212 = arith.addf %202, %211 : vector<8x128xf32>
    %213 = arith.mulf %209, %212 : vector<8x128xf32>
    %214 = arith.addf %201, %213 : vector<8x128xf32>
    %215 = math.tanh %214 : vector<8x128xf32>
    %216 = vector.extract_strided_slice %215 {offsets = [0, 0], sizes = [8, 32], strides = [1, 1]} : vector<8x128xf32> to vector<8x32xf32>
    %217 = vector.extract_strided_slice %210 {offsets = [0, 0], sizes = [8, 32], strides = [1, 1]} : vector<8x128xf32> to vector<8x32xf32>
    %cst_77 = arith.constant 1.000000e+00 : f32
    %218 = vector.broadcast %cst_77 : f32 to vector<8x32xf32>
    %219 = arith.subf %218, %217 : vector<8x32xf32>
    %220 = arith.mulf %219, %216 : vector<8x32xf32>
    %221 = arith.mulf %217, %191 : vector<8x32xf32>
    %222 = arith.addf %220, %221 : vector<8x32xf32>
    %223 = arith.truncf %222 : vector<8x32xf32> to vector<8x32xbf16>
    %224 = arith.index_cast %c6_i32 : i32 to index
    %c0_78 = arith.constant 0 : index
    %c0_79 = arith.constant 0 : index
    %225 = vector.load %arg5[%224, %c0_78, %c0_79] : memref<28x32x128xbf16, #tpu.memory_space<vmem>>, vector<1x32x128xbf16>
    %226 = vector.shape_cast %225 : vector<1x32x128xbf16> to vector<32x128xbf16>
    %cst_80 = arith.constant dense<0.000000e+00> : vector<8x128xf32>
    %227 = tpu.matmul %223, %226, %cst_80 {dimension_numbers = #tpu.dot_dimension_numbers<[1], [0], [0], [1], [0, 0, 1, 1], [], []>} : vector<8x32xbf16>, vector<32x128xbf16>, vector<8x128xf32> -> vector<8x128xf32>
    %228 = arith.addf %197, %227 : vector<8x128xf32>
    %c7_i32 = arith.constant 7 : i32
    %c8_i32_81 = arith.constant 8 : i32
    %229 = arith.muli %c7_i32, %c8_i32_81 : i32
    %230 = tpu.assume_multiple %229, 8 : i32
    %231 = arith.index_cast %230 : i32 to index
    %c0_82 = arith.constant 0 : index
    %232 = vector.load %arg8[%231, %c0_82] : memref<224x128xf32, #tpu.memory_space<vmem>>, vector<8x128xf32>
    %cst_83 = arith.constant dense<0.000000e+00> : vector<8x128xf32>
    %233 = tpu.matmul %223, %7, %cst_83 {dimension_numbers = #tpu.dot_dimension_numbers<[1], [0], [0], [1], [0, 0, 1, 1], [], []>} : vector<8x32xbf16>, vector<32x128xbf16>, vector<8x128xf32> -> vector<8x128xf32>
    %234 = arith.addf %232, %233 : vector<8x128xf32>
    %235 = arith.negf %234 : vector<8x128xf32>
    %236 = math.exp %235 : vector<8x128xf32>
    %cst_84 = arith.constant 1.000000e+00 : f32
    %237 = vector.broadcast %cst_84 : f32 to vector<8x128xf32>
    %238 = arith.addf %237, %236 : vector<8x128xf32>
    %239 = arith.divf %237, %238 : vector<8x128xf32>
    %c64_i32_85 = arith.constant 64 : i32
    %240 = tpu.dynamic_rotate %239 by %c64_i32_85 dim 1 : vector<8x128xf32>, i32 -> vector<8x128xf32>
    %c32_i32_86 = arith.constant 32 : i32
    %241 = tpu.dynamic_rotate %239 by %c32_i32_86 dim 1 : vector<8x128xf32>, i32 -> vector<8x128xf32>
    %242 = vector.broadcast %8 : vector<1x128xf32> to vector<8x128xf32>
    %243 = arith.addf %233, %242 : vector<8x128xf32>
    %244 = arith.mulf %240, %243 : vector<8x128xf32>
    %245 = arith.addf %232, %244 : vector<8x128xf32>
    %246 = math.tanh %245 : vector<8x128xf32>
    %247 = vector.extract_strided_slice %246 {offsets = [0, 0], sizes = [8, 32], strides = [1, 1]} : vector<8x128xf32> to vector<8x32xf32>
    %248 = vector.extract_strided_slice %241 {offsets = [0, 0], sizes = [8, 32], strides = [1, 1]} : vector<8x128xf32> to vector<8x32xf32>
    %cst_87 = arith.constant 1.000000e+00 : f32
    %249 = vector.broadcast %cst_87 : f32 to vector<8x32xf32>
    %250 = arith.subf %249, %248 : vector<8x32xf32>
    %251 = arith.mulf %250, %247 : vector<8x32xf32>
    %252 = arith.mulf %248, %222 : vector<8x32xf32>
    %253 = arith.addf %251, %252 : vector<8x32xf32>
    %254 = arith.truncf %253 : vector<8x32xf32> to vector<8x32xbf16>
    %255 = arith.index_cast %c7_i32 : i32 to index
    %c0_88 = arith.constant 0 : index
    %c0_89 = arith.constant 0 : index
    %256 = vector.load %arg5[%255, %c0_88, %c0_89] : memref<28x32x128xbf16, #tpu.memory_space<vmem>>, vector<1x32x128xbf16>
    %257 = vector.shape_cast %256 : vector<1x32x128xbf16> to vector<32x128xbf16>
    %cst_90 = arith.constant dense<0.000000e+00> : vector<8x128xf32>
    %258 = tpu.matmul %254, %257, %cst_90 {dimension_numbers = #tpu.dot_dimension_numbers<[1], [0], [0], [1], [0, 0, 1, 1], [], []>} : vector<8x32xbf16>, vector<32x128xbf16>, vector<8x128xf32> -> vector<8x128xf32>
    %259 = arith.addf %228, %258 : vector<8x128xf32>
    %c8_i32_91 = arith.constant 8 : i32
    %c8_i32_92 = arith.constant 8 : i32
    %260 = arith.muli %c8_i32_91, %c8_i32_92 : i32
    %261 = tpu.assume_multiple %260, 8 : i32
    %262 = arith.index_cast %261 : i32 to index
    %c0_93 = arith.constant 0 : index
    %263 = vector.load %arg8[%262, %c0_93] : memref<224x128xf32, #tpu.memory_space<vmem>>, vector<8x128xf32>
    %cst_94 = arith.constant dense<0.000000e+00> : vector<8x128xf32>
    %264 = tpu.matmul %254, %7, %cst_94 {dimension_numbers = #tpu.dot_dimension_numbers<[1], [0], [0], [1], [0, 0, 1, 1], [], []>} : vector<8x32xbf16>, vector<32x128xbf16>, vector<8x128xf32> -> vector<8x128xf32>
    %265 = arith.addf %263, %264 : vector<8x128xf32>
    %266 = arith.negf %265 : vector<8x128xf32>
    %267 = math.exp %266 : vector<8x128xf32>
    %cst_95 = arith.constant 1.000000e+00 : f32
    %268 = vector.broadcast %cst_95 : f32 to vector<8x128xf32>
    %269 = arith.addf %268, %267 : vector<8x128xf32>
    %270 = arith.divf %268, %269 : vector<8x128xf32>
    %c64_i32_96 = arith.constant 64 : i32
    %271 = tpu.dynamic_rotate %270 by %c64_i32_96 dim 1 : vector<8x128xf32>, i32 -> vector<8x128xf32>
    %c32_i32_97 = arith.constant 32 : i32
    %272 = tpu.dynamic_rotate %270 by %c32_i32_97 dim 1 : vector<8x128xf32>, i32 -> vector<8x128xf32>
    %273 = vector.broadcast %8 : vector<1x128xf32> to vector<8x128xf32>
    %274 = arith.addf %264, %273 : vector<8x128xf32>
    %275 = arith.mulf %271, %274 : vector<8x128xf32>
    %276 = arith.addf %263, %275 : vector<8x128xf32>
    %277 = math.tanh %276 : vector<8x128xf32>
    %278 = vector.extract_strided_slice %277 {offsets = [0, 0], sizes = [8, 32], strides = [1, 1]} : vector<8x128xf32> to vector<8x32xf32>
    %279 = vector.extract_strided_slice %272 {offsets = [0, 0], sizes = [8, 32], strides = [1, 1]} : vector<8x128xf32> to vector<8x32xf32>
    %cst_98 = arith.constant 1.000000e+00 : f32
    %280 = vector.broadcast %cst_98 : f32 to vector<8x32xf32>
    %281 = arith.subf %280, %279 : vector<8x32xf32>
    %282 = arith.mulf %281, %278 : vector<8x32xf32>
    %283 = arith.mulf %279, %253 : vector<8x32xf32>
    %284 = arith.addf %282, %283 : vector<8x32xf32>
    %285 = arith.truncf %284 : vector<8x32xf32> to vector<8x32xbf16>
    %286 = arith.index_cast %c8_i32_91 : i32 to index
    %c0_99 = arith.constant 0 : index
    %c0_100 = arith.constant 0 : index
    %287 = vector.load %arg5[%286, %c0_99, %c0_100] : memref<28x32x128xbf16, #tpu.memory_space<vmem>>, vector<1x32x128xbf16>
    %288 = vector.shape_cast %287 : vector<1x32x128xbf16> to vector<32x128xbf16>
    %cst_101 = arith.constant dense<0.000000e+00> : vector<8x128xf32>
    %289 = tpu.matmul %285, %288, %cst_101 {dimension_numbers = #tpu.dot_dimension_numbers<[1], [0], [0], [1], [0, 0, 1, 1], [], []>} : vector<8x32xbf16>, vector<32x128xbf16>, vector<8x128xf32> -> vector<8x128xf32>
    %290 = arith.addf %259, %289 : vector<8x128xf32>
    %c9_i32 = arith.constant 9 : i32
    %c8_i32_102 = arith.constant 8 : i32
    %291 = arith.muli %c9_i32, %c8_i32_102 : i32
    %292 = tpu.assume_multiple %291, 8 : i32
    %293 = arith.index_cast %292 : i32 to index
    %c0_103 = arith.constant 0 : index
    %294 = vector.load %arg8[%293, %c0_103] : memref<224x128xf32, #tpu.memory_space<vmem>>, vector<8x128xf32>
    %cst_104 = arith.constant dense<0.000000e+00> : vector<8x128xf32>
    %295 = tpu.matmul %285, %7, %cst_104 {dimension_numbers = #tpu.dot_dimension_numbers<[1], [0], [0], [1], [0, 0, 1, 1], [], []>} : vector<8x32xbf16>, vector<32x128xbf16>, vector<8x128xf32> -> vector<8x128xf32>
    %296 = arith.addf %294, %295 : vector<8x128xf32>
    %297 = arith.negf %296 : vector<8x128xf32>
    %298 = math.exp %297 : vector<8x128xf32>
    %cst_105 = arith.constant 1.000000e+00 : f32
    %299 = vector.broadcast %cst_105 : f32 to vector<8x128xf32>
    %300 = arith.addf %299, %298 : vector<8x128xf32>
    %301 = arith.divf %299, %300 : vector<8x128xf32>
    %c64_i32_106 = arith.constant 64 : i32
    %302 = tpu.dynamic_rotate %301 by %c64_i32_106 dim 1 : vector<8x128xf32>, i32 -> vector<8x128xf32>
    %c32_i32_107 = arith.constant 32 : i32
    %303 = tpu.dynamic_rotate %301 by %c32_i32_107 dim 1 : vector<8x128xf32>, i32 -> vector<8x128xf32>
    %304 = vector.broadcast %8 : vector<1x128xf32> to vector<8x128xf32>
    %305 = arith.addf %295, %304 : vector<8x128xf32>
    %306 = arith.mulf %302, %305 : vector<8x128xf32>
    %307 = arith.addf %294, %306 : vector<8x128xf32>
    %308 = math.tanh %307 : vector<8x128xf32>
    %309 = vector.extract_strided_slice %308 {offsets = [0, 0], sizes = [8, 32], strides = [1, 1]} : vector<8x128xf32> to vector<8x32xf32>
    %310 = vector.extract_strided_slice %303 {offsets = [0, 0], sizes = [8, 32], strides = [1, 1]} : vector<8x128xf32> to vector<8x32xf32>
    %cst_108 = arith.constant 1.000000e+00 : f32
    %311 = vector.broadcast %cst_108 : f32 to vector<8x32xf32>
    %312 = arith.subf %311, %310 : vector<8x32xf32>
    %313 = arith.mulf %312, %309 : vector<8x32xf32>
    %314 = arith.mulf %310, %284 : vector<8x32xf32>
    %315 = arith.addf %313, %314 : vector<8x32xf32>
    %316 = arith.truncf %315 : vector<8x32xf32> to vector<8x32xbf16>
    %317 = arith.index_cast %c9_i32 : i32 to index
    %c0_109 = arith.constant 0 : index
    %c0_110 = arith.constant 0 : index
    %318 = vector.load %arg5[%317, %c0_109, %c0_110] : memref<28x32x128xbf16, #tpu.memory_space<vmem>>, vector<1x32x128xbf16>
    %319 = vector.shape_cast %318 : vector<1x32x128xbf16> to vector<32x128xbf16>
    %cst_111 = arith.constant dense<0.000000e+00> : vector<8x128xf32>
    %320 = tpu.matmul %316, %319, %cst_111 {dimension_numbers = #tpu.dot_dimension_numbers<[1], [0], [0], [1], [0, 0, 1, 1], [], []>} : vector<8x32xbf16>, vector<32x128xbf16>, vector<8x128xf32> -> vector<8x128xf32>
    %321 = arith.addf %290, %320 : vector<8x128xf32>
    %c10_i32 = arith.constant 10 : i32
    %c8_i32_112 = arith.constant 8 : i32
    %322 = arith.muli %c10_i32, %c8_i32_112 : i32
    %323 = tpu.assume_multiple %322, 8 : i32
    %324 = arith.index_cast %323 : i32 to index
    %c0_113 = arith.constant 0 : index
    %325 = vector.load %arg8[%324, %c0_113] : memref<224x128xf32, #tpu.memory_space<vmem>>, vector<8x128xf32>
    %cst_114 = arith.constant dense<0.000000e+00> : vector<8x128xf32>
    %326 = tpu.matmul %316, %7, %cst_114 {dimension_numbers = #tpu.dot_dimension_numbers<[1], [0], [0], [1], [0, 0, 1, 1], [], []>} : vector<8x32xbf16>, vector<32x128xbf16>, vector<8x128xf32> -> vector<8x128xf32>
    %327 = arith.addf %325, %326 : vector<8x128xf32>
    %328 = arith.negf %327 : vector<8x128xf32>
    %329 = math.exp %328 : vector<8x128xf32>
    %cst_115 = arith.constant 1.000000e+00 : f32
    %330 = vector.broadcast %cst_115 : f32 to vector<8x128xf32>
    %331 = arith.addf %330, %329 : vector<8x128xf32>
    %332 = arith.divf %330, %331 : vector<8x128xf32>
    %c64_i32_116 = arith.constant 64 : i32
    %333 = tpu.dynamic_rotate %332 by %c64_i32_116 dim 1 : vector<8x128xf32>, i32 -> vector<8x128xf32>
    %c32_i32_117 = arith.constant 32 : i32
    %334 = tpu.dynamic_rotate %332 by %c32_i32_117 dim 1 : vector<8x128xf32>, i32 -> vector<8x128xf32>
    %335 = vector.broadcast %8 : vector<1x128xf32> to vector<8x128xf32>
    %336 = arith.addf %326, %335 : vector<8x128xf32>
    %337 = arith.mulf %333, %336 : vector<8x128xf32>
    %338 = arith.addf %325, %337 : vector<8x128xf32>
    %339 = math.tanh %338 : vector<8x128xf32>
    %340 = vector.extract_strided_slice %339 {offsets = [0, 0], sizes = [8, 32], strides = [1, 1]} : vector<8x128xf32> to vector<8x32xf32>
    %341 = vector.extract_strided_slice %334 {offsets = [0, 0], sizes = [8, 32], strides = [1, 1]} : vector<8x128xf32> to vector<8x32xf32>
    %cst_118 = arith.constant 1.000000e+00 : f32
    %342 = vector.broadcast %cst_118 : f32 to vector<8x32xf32>
    %343 = arith.subf %342, %341 : vector<8x32xf32>
    %344 = arith.mulf %343, %340 : vector<8x32xf32>
    %345 = arith.mulf %341, %315 : vector<8x32xf32>
    %346 = arith.addf %344, %345 : vector<8x32xf32>
    %347 = arith.truncf %346 : vector<8x32xf32> to vector<8x32xbf16>
    %348 = arith.index_cast %c10_i32 : i32 to index
    %c0_119 = arith.constant 0 : index
    %c0_120 = arith.constant 0 : index
    %349 = vector.load %arg5[%348, %c0_119, %c0_120] : memref<28x32x128xbf16, #tpu.memory_space<vmem>>, vector<1x32x128xbf16>
    %350 = vector.shape_cast %349 : vector<1x32x128xbf16> to vector<32x128xbf16>
    %cst_121 = arith.constant dense<0.000000e+00> : vector<8x128xf32>
    %351 = tpu.matmul %347, %350, %cst_121 {dimension_numbers = #tpu.dot_dimension_numbers<[1], [0], [0], [1], [0, 0, 1, 1], [], []>} : vector<8x32xbf16>, vector<32x128xbf16>, vector<8x128xf32> -> vector<8x128xf32>
    %352 = arith.addf %321, %351 : vector<8x128xf32>
    %c11_i32 = arith.constant 11 : i32
    %c8_i32_122 = arith.constant 8 : i32
    %353 = arith.muli %c11_i32, %c8_i32_122 : i32
    %354 = tpu.assume_multiple %353, 8 : i32
    %355 = arith.index_cast %354 : i32 to index
    %c0_123 = arith.constant 0 : index
    %356 = vector.load %arg8[%355, %c0_123] : memref<224x128xf32, #tpu.memory_space<vmem>>, vector<8x128xf32>
    %cst_124 = arith.constant dense<0.000000e+00> : vector<8x128xf32>
    %357 = tpu.matmul %347, %7, %cst_124 {dimension_numbers = #tpu.dot_dimension_numbers<[1], [0], [0], [1], [0, 0, 1, 1], [], []>} : vector<8x32xbf16>, vector<32x128xbf16>, vector<8x128xf32> -> vector<8x128xf32>
    %358 = arith.addf %356, %357 : vector<8x128xf32>
    %359 = arith.negf %358 : vector<8x128xf32>
    %360 = math.exp %359 : vector<8x128xf32>
    %cst_125 = arith.constant 1.000000e+00 : f32
    %361 = vector.broadcast %cst_125 : f32 to vector<8x128xf32>
    %362 = arith.addf %361, %360 : vector<8x128xf32>
    %363 = arith.divf %361, %362 : vector<8x128xf32>
    %c64_i32_126 = arith.constant 64 : i32
    %364 = tpu.dynamic_rotate %363 by %c64_i32_126 dim 1 : vector<8x128xf32>, i32 -> vector<8x128xf32>
    %c32_i32_127 = arith.constant 32 : i32
    %365 = tpu.dynamic_rotate %363 by %c32_i32_127 dim 1 : vector<8x128xf32>, i32 -> vector<8x128xf32>
    %366 = vector.broadcast %8 : vector<1x128xf32> to vector<8x128xf32>
    %367 = arith.addf %357, %366 : vector<8x128xf32>
    %368 = arith.mulf %364, %367 : vector<8x128xf32>
    %369 = arith.addf %356, %368 : vector<8x128xf32>
    %370 = math.tanh %369 : vector<8x128xf32>
    %371 = vector.extract_strided_slice %370 {offsets = [0, 0], sizes = [8, 32], strides = [1, 1]} : vector<8x128xf32> to vector<8x32xf32>
    %372 = vector.extract_strided_slice %365 {offsets = [0, 0], sizes = [8, 32], strides = [1, 1]} : vector<8x128xf32> to vector<8x32xf32>
    %cst_128 = arith.constant 1.000000e+00 : f32
    %373 = vector.broadcast %cst_128 : f32 to vector<8x32xf32>
    %374 = arith.subf %373, %372 : vector<8x32xf32>
    %375 = arith.mulf %374, %371 : vector<8x32xf32>
    %376 = arith.mulf %372, %346 : vector<8x32xf32>
    %377 = arith.addf %375, %376 : vector<8x32xf32>
    %378 = arith.truncf %377 : vector<8x32xf32> to vector<8x32xbf16>
    %379 = arith.index_cast %c11_i32 : i32 to index
    %c0_129 = arith.constant 0 : index
    %c0_130 = arith.constant 0 : index
    %380 = vector.load %arg5[%379, %c0_129, %c0_130] : memref<28x32x128xbf16, #tpu.memory_space<vmem>>, vector<1x32x128xbf16>
    %381 = vector.shape_cast %380 : vector<1x32x128xbf16> to vector<32x128xbf16>
    %cst_131 = arith.constant dense<0.000000e+00> : vector<8x128xf32>
    %382 = tpu.matmul %378, %381, %cst_131 {dimension_numbers = #tpu.dot_dimension_numbers<[1], [0], [0], [1], [0, 0, 1, 1], [], []>} : vector<8x32xbf16>, vector<32x128xbf16>, vector<8x128xf32> -> vector<8x128xf32>
    %383 = arith.addf %352, %382 : vector<8x128xf32>
    %c12_i32 = arith.constant 12 : i32
    %c8_i32_132 = arith.constant 8 : i32
    %384 = arith.muli %c12_i32, %c8_i32_132 : i32
    %385 = tpu.assume_multiple %384, 8 : i32
    %386 = arith.index_cast %385 : i32 to index
    %c0_133 = arith.constant 0 : index
    %387 = vector.load %arg8[%386, %c0_133] : memref<224x128xf32, #tpu.memory_space<vmem>>, vector<8x128xf32>
    %cst_134 = arith.constant dense<0.000000e+00> : vector<8x128xf32>
    %388 = tpu.matmul %378, %7, %cst_134 {dimension_numbers = #tpu.dot_dimension_numbers<[1], [0], [0], [1], [0, 0, 1, 1], [], []>} : vector<8x32xbf16>, vector<32x128xbf16>, vector<8x128xf32> -> vector<8x128xf32>
    %389 = arith.addf %387, %388 : vector<8x128xf32>
    %390 = arith.negf %389 : vector<8x128xf32>
    %391 = math.exp %390 : vector<8x128xf32>
    %cst_135 = arith.constant 1.000000e+00 : f32
    %392 = vector.broadcast %cst_135 : f32 to vector<8x128xf32>
    %393 = arith.addf %392, %391 : vector<8x128xf32>
    %394 = arith.divf %392, %393 : vector<8x128xf32>
    %c64_i32_136 = arith.constant 64 : i32
    %395 = tpu.dynamic_rotate %394 by %c64_i32_136 dim 1 : vector<8x128xf32>, i32 -> vector<8x128xf32>
    %c32_i32_137 = arith.constant 32 : i32
    %396 = tpu.dynamic_rotate %394 by %c32_i32_137 dim 1 : vector<8x128xf32>, i32 -> vector<8x128xf32>
    %397 = vector.broadcast %8 : vector<1x128xf32> to vector<8x128xf32>
    %398 = arith.addf %388, %397 : vector<8x128xf32>
    %399 = arith.mulf %395, %398 : vector<8x128xf32>
    %400 = arith.addf %387, %399 : vector<8x128xf32>
    %401 = math.tanh %400 : vector<8x128xf32>
    %402 = vector.extract_strided_slice %401 {offsets = [0, 0], sizes = [8, 32], strides = [1, 1]} : vector<8x128xf32> to vector<8x32xf32>
    %403 = vector.extract_strided_slice %396 {offsets = [0, 0], sizes = [8, 32], strides = [1, 1]} : vector<8x128xf32> to vector<8x32xf32>
    %cst_138 = arith.constant 1.000000e+00 : f32
    %404 = vector.broadcast %cst_138 : f32 to vector<8x32xf32>
    %405 = arith.subf %404, %403 : vector<8x32xf32>
    %406 = arith.mulf %405, %402 : vector<8x32xf32>
    %407 = arith.mulf %403, %377 : vector<8x32xf32>
    %408 = arith.addf %406, %407 : vector<8x32xf32>
    %409 = arith.truncf %408 : vector<8x32xf32> to vector<8x32xbf16>
    %410 = arith.index_cast %c12_i32 : i32 to index
    %c0_139 = arith.constant 0 : index
    %c0_140 = arith.constant 0 : index
    %411 = vector.load %arg5[%410, %c0_139, %c0_140] : memref<28x32x128xbf16, #tpu.memory_space<vmem>>, vector<1x32x128xbf16>
    %412 = vector.shape_cast %411 : vector<1x32x128xbf16> to vector<32x128xbf16>
    %cst_141 = arith.constant dense<0.000000e+00> : vector<8x128xf32>
    %413 = tpu.matmul %409, %412, %cst_141 {dimension_numbers = #tpu.dot_dimension_numbers<[1], [0], [0], [1], [0, 0, 1, 1], [], []>} : vector<8x32xbf16>, vector<32x128xbf16>, vector<8x128xf32> -> vector<8x128xf32>
    %414 = arith.addf %383, %413 : vector<8x128xf32>
    %c13_i32 = arith.constant 13 : i32
    %c8_i32_142 = arith.constant 8 : i32
    %415 = arith.muli %c13_i32, %c8_i32_142 : i32
    %416 = tpu.assume_multiple %415, 8 : i32
    %417 = arith.index_cast %416 : i32 to index
    %c0_143 = arith.constant 0 : index
    %418 = vector.load %arg8[%417, %c0_143] : memref<224x128xf32, #tpu.memory_space<vmem>>, vector<8x128xf32>
    %cst_144 = arith.constant dense<0.000000e+00> : vector<8x128xf32>
    %419 = tpu.matmul %409, %7, %cst_144 {dimension_numbers = #tpu.dot_dimension_numbers<[1], [0], [0], [1], [0, 0, 1, 1], [], []>} : vector<8x32xbf16>, vector<32x128xbf16>, vector<8x128xf32> -> vector<8x128xf32>
    %420 = arith.addf %418, %419 : vector<8x128xf32>
    %421 = arith.negf %420 : vector<8x128xf32>
    %422 = math.exp %421 : vector<8x128xf32>
    %cst_145 = arith.constant 1.000000e+00 : f32
    %423 = vector.broadcast %cst_145 : f32 to vector<8x128xf32>
    %424 = arith.addf %423, %422 : vector<8x128xf32>
    %425 = arith.divf %423, %424 : vector<8x128xf32>
    %c64_i32_146 = arith.constant 64 : i32
    %426 = tpu.dynamic_rotate %425 by %c64_i32_146 dim 1 : vector<8x128xf32>, i32 -> vector<8x128xf32>
    %c32_i32_147 = arith.constant 32 : i32
    %427 = tpu.dynamic_rotate %425 by %c32_i32_147 dim 1 : vector<8x128xf32>, i32 -> vector<8x128xf32>
    %428 = vector.broadcast %8 : vector<1x128xf32> to vector<8x128xf32>
    %429 = arith.addf %419, %428 : vector<8x128xf32>
    %430 = arith.mulf %426, %429 : vector<8x128xf32>
    %431 = arith.addf %418, %430 : vector<8x128xf32>
    %432 = math.tanh %431 : vector<8x128xf32>
    %433 = vector.extract_strided_slice %432 {offsets = [0, 0], sizes = [8, 32], strides = [1, 1]} : vector<8x128xf32> to vector<8x32xf32>
    %434 = vector.extract_strided_slice %427 {offsets = [0, 0], sizes = [8, 32], strides = [1, 1]} : vector<8x128xf32> to vector<8x32xf32>
    %cst_148 = arith.constant 1.000000e+00 : f32
    %435 = vector.broadcast %cst_148 : f32 to vector<8x32xf32>
    %436 = arith.subf %435, %434 : vector<8x32xf32>
    %437 = arith.mulf %436, %433 : vector<8x32xf32>
    %438 = arith.mulf %434, %408 : vector<8x32xf32>
    %439 = arith.addf %437, %438 : vector<8x32xf32>
    %440 = arith.truncf %439 : vector<8x32xf32> to vector<8x32xbf16>
    %441 = arith.index_cast %c13_i32 : i32 to index
    %c0_149 = arith.constant 0 : index
    %c0_150 = arith.constant 0 : index
    %442 = vector.load %arg5[%441, %c0_149, %c0_150] : memref<28x32x128xbf16, #tpu.memory_space<vmem>>, vector<1x32x128xbf16>
    %443 = vector.shape_cast %442 : vector<1x32x128xbf16> to vector<32x128xbf16>
    %cst_151 = arith.constant dense<0.000000e+00> : vector<8x128xf32>
    %444 = tpu.matmul %440, %443, %cst_151 {dimension_numbers = #tpu.dot_dimension_numbers<[1], [0], [0], [1], [0, 0, 1, 1], [], []>} : vector<8x32xbf16>, vector<32x128xbf16>, vector<8x128xf32> -> vector<8x128xf32>
    %445 = arith.addf %414, %444 : vector<8x128xf32>
    %c14_i32 = arith.constant 14 : i32
    %c8_i32_152 = arith.constant 8 : i32
    %446 = arith.muli %c14_i32, %c8_i32_152 : i32
    %447 = tpu.assume_multiple %446, 8 : i32
    %448 = arith.index_cast %447 : i32 to index
    %c0_153 = arith.constant 0 : index
    %449 = vector.load %arg8[%448, %c0_153] : memref<224x128xf32, #tpu.memory_space<vmem>>, vector<8x128xf32>
    %cst_154 = arith.constant dense<0.000000e+00> : vector<8x128xf32>
    %450 = tpu.matmul %440, %7, %cst_154 {dimension_numbers = #tpu.dot_dimension_numbers<[1], [0], [0], [1], [0, 0, 1, 1], [], []>} : vector<8x32xbf16>, vector<32x128xbf16>, vector<8x128xf32> -> vector<8x128xf32>
    %451 = arith.addf %449, %450 : vector<8x128xf32>
    %452 = arith.negf %451 : vector<8x128xf32>
    %453 = math.exp %452 : vector<8x128xf32>
    %cst_155 = arith.constant 1.000000e+00 : f32
    %454 = vector.broadcast %cst_155 : f32 to vector<8x128xf32>
    %455 = arith.addf %454, %453 : vector<8x128xf32>
    %456 = arith.divf %454, %455 : vector<8x128xf32>
    %c64_i32_156 = arith.constant 64 : i32
    %457 = tpu.dynamic_rotate %456 by %c64_i32_156 dim 1 : vector<8x128xf32>, i32 -> vector<8x128xf32>
    %c32_i32_157 = arith.constant 32 : i32
    %458 = tpu.dynamic_rotate %456 by %c32_i32_157 dim 1 : vector<8x128xf32>, i32 -> vector<8x128xf32>
    %459 = vector.broadcast %8 : vector<1x128xf32> to vector<8x128xf32>
    %460 = arith.addf %450, %459 : vector<8x128xf32>
    %461 = arith.mulf %457, %460 : vector<8x128xf32>
    %462 = arith.addf %449, %461 : vector<8x128xf32>
    %463 = math.tanh %462 : vector<8x128xf32>
    %464 = vector.extract_strided_slice %463 {offsets = [0, 0], sizes = [8, 32], strides = [1, 1]} : vector<8x128xf32> to vector<8x32xf32>
    %465 = vector.extract_strided_slice %458 {offsets = [0, 0], sizes = [8, 32], strides = [1, 1]} : vector<8x128xf32> to vector<8x32xf32>
    %cst_158 = arith.constant 1.000000e+00 : f32
    %466 = vector.broadcast %cst_158 : f32 to vector<8x32xf32>
    %467 = arith.subf %466, %465 : vector<8x32xf32>
    %468 = arith.mulf %467, %464 : vector<8x32xf32>
    %469 = arith.mulf %465, %439 : vector<8x32xf32>
    %470 = arith.addf %468, %469 : vector<8x32xf32>
    %471 = arith.truncf %470 : vector<8x32xf32> to vector<8x32xbf16>
    %472 = arith.index_cast %c14_i32 : i32 to index
    %c0_159 = arith.constant 0 : index
    %c0_160 = arith.constant 0 : index
    %473 = vector.load %arg5[%472, %c0_159, %c0_160] : memref<28x32x128xbf16, #tpu.memory_space<vmem>>, vector<1x32x128xbf16>
    %474 = vector.shape_cast %473 : vector<1x32x128xbf16> to vector<32x128xbf16>
    %cst_161 = arith.constant dense<0.000000e+00> : vector<8x128xf32>
    %475 = tpu.matmul %471, %474, %cst_161 {dimension_numbers = #tpu.dot_dimension_numbers<[1], [0], [0], [1], [0, 0, 1, 1], [], []>} : vector<8x32xbf16>, vector<32x128xbf16>, vector<8x128xf32> -> vector<8x128xf32>
    %476 = arith.addf %445, %475 : vector<8x128xf32>
    %c15_i32 = arith.constant 15 : i32
    %c8_i32_162 = arith.constant 8 : i32
    %477 = arith.muli %c15_i32, %c8_i32_162 : i32
    %478 = tpu.assume_multiple %477, 8 : i32
    %479 = arith.index_cast %478 : i32 to index
    %c0_163 = arith.constant 0 : index
    %480 = vector.load %arg8[%479, %c0_163] : memref<224x128xf32, #tpu.memory_space<vmem>>, vector<8x128xf32>
    %cst_164 = arith.constant dense<0.000000e+00> : vector<8x128xf32>
    %481 = tpu.matmul %471, %7, %cst_164 {dimension_numbers = #tpu.dot_dimension_numbers<[1], [0], [0], [1], [0, 0, 1, 1], [], []>} : vector<8x32xbf16>, vector<32x128xbf16>, vector<8x128xf32> -> vector<8x128xf32>
    %482 = arith.addf %480, %481 : vector<8x128xf32>
    %483 = arith.negf %482 : vector<8x128xf32>
    %484 = math.exp %483 : vector<8x128xf32>
    %cst_165 = arith.constant 1.000000e+00 : f32
    %485 = vector.broadcast %cst_165 : f32 to vector<8x128xf32>
    %486 = arith.addf %485, %484 : vector<8x128xf32>
    %487 = arith.divf %485, %486 : vector<8x128xf32>
    %c64_i32_166 = arith.constant 64 : i32
    %488 = tpu.dynamic_rotate %487 by %c64_i32_166 dim 1 : vector<8x128xf32>, i32 -> vector<8x128xf32>
    %c32_i32_167 = arith.constant 32 : i32
    %489 = tpu.dynamic_rotate %487 by %c32_i32_167 dim 1 : vector<8x128xf32>, i32 -> vector<8x128xf32>
    %490 = vector.broadcast %8 : vector<1x128xf32> to vector<8x128xf32>
    %491 = arith.addf %481, %490 : vector<8x128xf32>
    %492 = arith.mulf %488, %491 : vector<8x128xf32>
    %493 = arith.addf %480, %492 : vector<8x128xf32>
    %494 = math.tanh %493 : vector<8x128xf32>
    %495 = vector.extract_strided_slice %494 {offsets = [0, 0], sizes = [8, 32], strides = [1, 1]} : vector<8x128xf32> to vector<8x32xf32>
    %496 = vector.extract_strided_slice %489 {offsets = [0, 0], sizes = [8, 32], strides = [1, 1]} : vector<8x128xf32> to vector<8x32xf32>
    %cst_168 = arith.constant 1.000000e+00 : f32
    %497 = vector.broadcast %cst_168 : f32 to vector<8x32xf32>
    %498 = arith.subf %497, %496 : vector<8x32xf32>
    %499 = arith.mulf %498, %495 : vector<8x32xf32>
    %500 = arith.mulf %496, %470 : vector<8x32xf32>
    %501 = arith.addf %499, %500 : vector<8x32xf32>
    %502 = arith.truncf %501 : vector<8x32xf32> to vector<8x32xbf16>
    %503 = arith.index_cast %c15_i32 : i32 to index
    %c0_169 = arith.constant 0 : index
    %c0_170 = arith.constant 0 : index
    %504 = vector.load %arg5[%503, %c0_169, %c0_170] : memref<28x32x128xbf16, #tpu.memory_space<vmem>>, vector<1x32x128xbf16>
    %505 = vector.shape_cast %504 : vector<1x32x128xbf16> to vector<32x128xbf16>
    %cst_171 = arith.constant dense<0.000000e+00> : vector<8x128xf32>
    %506 = tpu.matmul %502, %505, %cst_171 {dimension_numbers = #tpu.dot_dimension_numbers<[1], [0], [0], [1], [0, 0, 1, 1], [], []>} : vector<8x32xbf16>, vector<32x128xbf16>, vector<8x128xf32> -> vector<8x128xf32>
    %507 = arith.addf %476, %506 : vector<8x128xf32>
    %c16_i32 = arith.constant 16 : i32
    %c8_i32_172 = arith.constant 8 : i32
    %508 = arith.muli %c16_i32, %c8_i32_172 : i32
    %509 = tpu.assume_multiple %508, 8 : i32
    %510 = arith.index_cast %509 : i32 to index
    %c0_173 = arith.constant 0 : index
    %511 = vector.load %arg8[%510, %c0_173] : memref<224x128xf32, #tpu.memory_space<vmem>>, vector<8x128xf32>
    %cst_174 = arith.constant dense<0.000000e+00> : vector<8x128xf32>
    %512 = tpu.matmul %502, %7, %cst_174 {dimension_numbers = #tpu.dot_dimension_numbers<[1], [0], [0], [1], [0, 0, 1, 1], [], []>} : vector<8x32xbf16>, vector<32x128xbf16>, vector<8x128xf32> -> vector<8x128xf32>
    %513 = arith.addf %511, %512 : vector<8x128xf32>
    %514 = arith.negf %513 : vector<8x128xf32>
    %515 = math.exp %514 : vector<8x128xf32>
    %cst_175 = arith.constant 1.000000e+00 : f32
    %516 = vector.broadcast %cst_175 : f32 to vector<8x128xf32>
    %517 = arith.addf %516, %515 : vector<8x128xf32>
    %518 = arith.divf %516, %517 : vector<8x128xf32>
    %c64_i32_176 = arith.constant 64 : i32
    %519 = tpu.dynamic_rotate %518 by %c64_i32_176 dim 1 : vector<8x128xf32>, i32 -> vector<8x128xf32>
    %c32_i32_177 = arith.constant 32 : i32
    %520 = tpu.dynamic_rotate %518 by %c32_i32_177 dim 1 : vector<8x128xf32>, i32 -> vector<8x128xf32>
    %521 = vector.broadcast %8 : vector<1x128xf32> to vector<8x128xf32>
    %522 = arith.addf %512, %521 : vector<8x128xf32>
    %523 = arith.mulf %519, %522 : vector<8x128xf32>
    %524 = arith.addf %511, %523 : vector<8x128xf32>
    %525 = math.tanh %524 : vector<8x128xf32>
    %526 = vector.extract_strided_slice %525 {offsets = [0, 0], sizes = [8, 32], strides = [1, 1]} : vector<8x128xf32> to vector<8x32xf32>
    %527 = vector.extract_strided_slice %520 {offsets = [0, 0], sizes = [8, 32], strides = [1, 1]} : vector<8x128xf32> to vector<8x32xf32>
    %cst_178 = arith.constant 1.000000e+00 : f32
    %528 = vector.broadcast %cst_178 : f32 to vector<8x32xf32>
    %529 = arith.subf %528, %527 : vector<8x32xf32>
    %530 = arith.mulf %529, %526 : vector<8x32xf32>
    %531 = arith.mulf %527, %501 : vector<8x32xf32>
    %532 = arith.addf %530, %531 : vector<8x32xf32>
    %533 = arith.truncf %532 : vector<8x32xf32> to vector<8x32xbf16>
    %534 = arith.index_cast %c16_i32 : i32 to index
    %c0_179 = arith.constant 0 : index
    %c0_180 = arith.constant 0 : index
    %535 = vector.load %arg5[%534, %c0_179, %c0_180] : memref<28x32x128xbf16, #tpu.memory_space<vmem>>, vector<1x32x128xbf16>
    %536 = vector.shape_cast %535 : vector<1x32x128xbf16> to vector<32x128xbf16>
    %cst_181 = arith.constant dense<0.000000e+00> : vector<8x128xf32>
    %537 = tpu.matmul %533, %536, %cst_181 {dimension_numbers = #tpu.dot_dimension_numbers<[1], [0], [0], [1], [0, 0, 1, 1], [], []>} : vector<8x32xbf16>, vector<32x128xbf16>, vector<8x128xf32> -> vector<8x128xf32>
    %538 = arith.addf %507, %537 : vector<8x128xf32>
    %c17_i32 = arith.constant 17 : i32
    %c8_i32_182 = arith.constant 8 : i32
    %539 = arith.muli %c17_i32, %c8_i32_182 : i32
    %540 = tpu.assume_multiple %539, 8 : i32
    %541 = arith.index_cast %540 : i32 to index
    %c0_183 = arith.constant 0 : index
    %542 = vector.load %arg8[%541, %c0_183] : memref<224x128xf32, #tpu.memory_space<vmem>>, vector<8x128xf32>
    %cst_184 = arith.constant dense<0.000000e+00> : vector<8x128xf32>
    %543 = tpu.matmul %533, %7, %cst_184 {dimension_numbers = #tpu.dot_dimension_numbers<[1], [0], [0], [1], [0, 0, 1, 1], [], []>} : vector<8x32xbf16>, vector<32x128xbf16>, vector<8x128xf32> -> vector<8x128xf32>
    %544 = arith.addf %542, %543 : vector<8x128xf32>
    %545 = arith.negf %544 : vector<8x128xf32>
    %546 = math.exp %545 : vector<8x128xf32>
    %cst_185 = arith.constant 1.000000e+00 : f32
    %547 = vector.broadcast %cst_185 : f32 to vector<8x128xf32>
    %548 = arith.addf %547, %546 : vector<8x128xf32>
    %549 = arith.divf %547, %548 : vector<8x128xf32>
    %c64_i32_186 = arith.constant 64 : i32
    %550 = tpu.dynamic_rotate %549 by %c64_i32_186 dim 1 : vector<8x128xf32>, i32 -> vector<8x128xf32>
    %c32_i32_187 = arith.constant 32 : i32
    %551 = tpu.dynamic_rotate %549 by %c32_i32_187 dim 1 : vector<8x128xf32>, i32 -> vector<8x128xf32>
    %552 = vector.broadcast %8 : vector<1x128xf32> to vector<8x128xf32>
    %553 = arith.addf %543, %552 : vector<8x128xf32>
    %554 = arith.mulf %550, %553 : vector<8x128xf32>
    %555 = arith.addf %542, %554 : vector<8x128xf32>
    %556 = math.tanh %555 : vector<8x128xf32>
    %557 = vector.extract_strided_slice %556 {offsets = [0, 0], sizes = [8, 32], strides = [1, 1]} : vector<8x128xf32> to vector<8x32xf32>
    %558 = vector.extract_strided_slice %551 {offsets = [0, 0], sizes = [8, 32], strides = [1, 1]} : vector<8x128xf32> to vector<8x32xf32>
    %cst_188 = arith.constant 1.000000e+00 : f32
    %559 = vector.broadcast %cst_188 : f32 to vector<8x32xf32>
    %560 = arith.subf %559, %558 : vector<8x32xf32>
    %561 = arith.mulf %560, %557 : vector<8x32xf32>
    %562 = arith.mulf %558, %532 : vector<8x32xf32>
    %563 = arith.addf %561, %562 : vector<8x32xf32>
    %564 = arith.truncf %563 : vector<8x32xf32> to vector<8x32xbf16>
    %565 = arith.index_cast %c17_i32 : i32 to index
    %c0_189 = arith.constant 0 : index
    %c0_190 = arith.constant 0 : index
    %566 = vector.load %arg5[%565, %c0_189, %c0_190] : memref<28x32x128xbf16, #tpu.memory_space<vmem>>, vector<1x32x128xbf16>
    %567 = vector.shape_cast %566 : vector<1x32x128xbf16> to vector<32x128xbf16>
    %cst_191 = arith.constant dense<0.000000e+00> : vector<8x128xf32>
    %568 = tpu.matmul %564, %567, %cst_191 {dimension_numbers = #tpu.dot_dimension_numbers<[1], [0], [0], [1], [0, 0, 1, 1], [], []>} : vector<8x32xbf16>, vector<32x128xbf16>, vector<8x128xf32> -> vector<8x128xf32>
    %569 = arith.addf %538, %568 : vector<8x128xf32>
    %c18_i32 = arith.constant 18 : i32
    %c8_i32_192 = arith.constant 8 : i32
    %570 = arith.muli %c18_i32, %c8_i32_192 : i32
    %571 = tpu.assume_multiple %570, 8 : i32
    %572 = arith.index_cast %571 : i32 to index
    %c0_193 = arith.constant 0 : index
    %573 = vector.load %arg8[%572, %c0_193] : memref<224x128xf32, #tpu.memory_space<vmem>>, vector<8x128xf32>
    %cst_194 = arith.constant dense<0.000000e+00> : vector<8x128xf32>
    %574 = tpu.matmul %564, %7, %cst_194 {dimension_numbers = #tpu.dot_dimension_numbers<[1], [0], [0], [1], [0, 0, 1, 1], [], []>} : vector<8x32xbf16>, vector<32x128xbf16>, vector<8x128xf32> -> vector<8x128xf32>
    %575 = arith.addf %573, %574 : vector<8x128xf32>
    %576 = arith.negf %575 : vector<8x128xf32>
    %577 = math.exp %576 : vector<8x128xf32>
    %cst_195 = arith.constant 1.000000e+00 : f32
    %578 = vector.broadcast %cst_195 : f32 to vector<8x128xf32>
    %579 = arith.addf %578, %577 : vector<8x128xf32>
    %580 = arith.divf %578, %579 : vector<8x128xf32>
    %c64_i32_196 = arith.constant 64 : i32
    %581 = tpu.dynamic_rotate %580 by %c64_i32_196 dim 1 : vector<8x128xf32>, i32 -> vector<8x128xf32>
    %c32_i32_197 = arith.constant 32 : i32
    %582 = tpu.dynamic_rotate %580 by %c32_i32_197 dim 1 : vector<8x128xf32>, i32 -> vector<8x128xf32>
    %583 = vector.broadcast %8 : vector<1x128xf32> to vector<8x128xf32>
    %584 = arith.addf %574, %583 : vector<8x128xf32>
    %585 = arith.mulf %581, %584 : vector<8x128xf32>
    %586 = arith.addf %573, %585 : vector<8x128xf32>
    %587 = math.tanh %586 : vector<8x128xf32>
    %588 = vector.extract_strided_slice %587 {offsets = [0, 0], sizes = [8, 32], strides = [1, 1]} : vector<8x128xf32> to vector<8x32xf32>
    %589 = vector.extract_strided_slice %582 {offsets = [0, 0], sizes = [8, 32], strides = [1, 1]} : vector<8x128xf32> to vector<8x32xf32>
    %cst_198 = arith.constant 1.000000e+00 : f32
    %590 = vector.broadcast %cst_198 : f32 to vector<8x32xf32>
    %591 = arith.subf %590, %589 : vector<8x32xf32>
    %592 = arith.mulf %591, %588 : vector<8x32xf32>
    %593 = arith.mulf %589, %563 : vector<8x32xf32>
    %594 = arith.addf %592, %593 : vector<8x32xf32>
    %595 = arith.truncf %594 : vector<8x32xf32> to vector<8x32xbf16>
    %596 = arith.index_cast %c18_i32 : i32 to index
    %c0_199 = arith.constant 0 : index
    %c0_200 = arith.constant 0 : index
    %597 = vector.load %arg5[%596, %c0_199, %c0_200] : memref<28x32x128xbf16, #tpu.memory_space<vmem>>, vector<1x32x128xbf16>
    %598 = vector.shape_cast %597 : vector<1x32x128xbf16> to vector<32x128xbf16>
    %cst_201 = arith.constant dense<0.000000e+00> : vector<8x128xf32>
    %599 = tpu.matmul %595, %598, %cst_201 {dimension_numbers = #tpu.dot_dimension_numbers<[1], [0], [0], [1], [0, 0, 1, 1], [], []>} : vector<8x32xbf16>, vector<32x128xbf16>, vector<8x128xf32> -> vector<8x128xf32>
    %600 = arith.addf %569, %599 : vector<8x128xf32>
    %c19_i32 = arith.constant 19 : i32
    %c8_i32_202 = arith.constant 8 : i32
    %601 = arith.muli %c19_i32, %c8_i32_202 : i32
    %602 = tpu.assume_multiple %601, 8 : i32
    %603 = arith.index_cast %602 : i32 to index
    %c0_203 = arith.constant 0 : index
    %604 = vector.load %arg8[%603, %c0_203] : memref<224x128xf32, #tpu.memory_space<vmem>>, vector<8x128xf32>
    %cst_204 = arith.constant dense<0.000000e+00> : vector<8x128xf32>
    %605 = tpu.matmul %595, %7, %cst_204 {dimension_numbers = #tpu.dot_dimension_numbers<[1], [0], [0], [1], [0, 0, 1, 1], [], []>} : vector<8x32xbf16>, vector<32x128xbf16>, vector<8x128xf32> -> vector<8x128xf32>
    %606 = arith.addf %604, %605 : vector<8x128xf32>
    %607 = arith.negf %606 : vector<8x128xf32>
    %608 = math.exp %607 : vector<8x128xf32>
    %cst_205 = arith.constant 1.000000e+00 : f32
    %609 = vector.broadcast %cst_205 : f32 to vector<8x128xf32>
    %610 = arith.addf %609, %608 : vector<8x128xf32>
    %611 = arith.divf %609, %610 : vector<8x128xf32>
    %c64_i32_206 = arith.constant 64 : i32
    %612 = tpu.dynamic_rotate %611 by %c64_i32_206 dim 1 : vector<8x128xf32>, i32 -> vector<8x128xf32>
    %c32_i32_207 = arith.constant 32 : i32
    %613 = tpu.dynamic_rotate %611 by %c32_i32_207 dim 1 : vector<8x128xf32>, i32 -> vector<8x128xf32>
    %614 = vector.broadcast %8 : vector<1x128xf32> to vector<8x128xf32>
    %615 = arith.addf %605, %614 : vector<8x128xf32>
    %616 = arith.mulf %612, %615 : vector<8x128xf32>
    %617 = arith.addf %604, %616 : vector<8x128xf32>
    %618 = math.tanh %617 : vector<8x128xf32>
    %619 = vector.extract_strided_slice %618 {offsets = [0, 0], sizes = [8, 32], strides = [1, 1]} : vector<8x128xf32> to vector<8x32xf32>
    %620 = vector.extract_strided_slice %613 {offsets = [0, 0], sizes = [8, 32], strides = [1, 1]} : vector<8x128xf32> to vector<8x32xf32>
    %cst_208 = arith.constant 1.000000e+00 : f32
    %621 = vector.broadcast %cst_208 : f32 to vector<8x32xf32>
    %622 = arith.subf %621, %620 : vector<8x32xf32>
    %623 = arith.mulf %622, %619 : vector<8x32xf32>
    %624 = arith.mulf %620, %594 : vector<8x32xf32>
    %625 = arith.addf %623, %624 : vector<8x32xf32>
    %626 = arith.truncf %625 : vector<8x32xf32> to vector<8x32xbf16>
    %627 = arith.index_cast %c19_i32 : i32 to index
    %c0_209 = arith.constant 0 : index
    %c0_210 = arith.constant 0 : index
    %628 = vector.load %arg5[%627, %c0_209, %c0_210] : memref<28x32x128xbf16, #tpu.memory_space<vmem>>, vector<1x32x128xbf16>
    %629 = vector.shape_cast %628 : vector<1x32x128xbf16> to vector<32x128xbf16>
    %cst_211 = arith.constant dense<0.000000e+00> : vector<8x128xf32>
    %630 = tpu.matmul %626, %629, %cst_211 {dimension_numbers = #tpu.dot_dimension_numbers<[1], [0], [0], [1], [0, 0, 1, 1], [], []>} : vector<8x32xbf16>, vector<32x128xbf16>, vector<8x128xf32> -> vector<8x128xf32>
    %631 = arith.addf %600, %630 : vector<8x128xf32>
    %c20_i32 = arith.constant 20 : i32
    %c8_i32_212 = arith.constant 8 : i32
    %632 = arith.muli %c20_i32, %c8_i32_212 : i32
    %633 = tpu.assume_multiple %632, 8 : i32
    %634 = arith.index_cast %633 : i32 to index
    %c0_213 = arith.constant 0 : index
    %635 = vector.load %arg8[%634, %c0_213] : memref<224x128xf32, #tpu.memory_space<vmem>>, vector<8x128xf32>
    %cst_214 = arith.constant dense<0.000000e+00> : vector<8x128xf32>
    %636 = tpu.matmul %626, %7, %cst_214 {dimension_numbers = #tpu.dot_dimension_numbers<[1], [0], [0], [1], [0, 0, 1, 1], [], []>} : vector<8x32xbf16>, vector<32x128xbf16>, vector<8x128xf32> -> vector<8x128xf32>
    %637 = arith.addf %635, %636 : vector<8x128xf32>
    %638 = arith.negf %637 : vector<8x128xf32>
    %639 = math.exp %638 : vector<8x128xf32>
    %cst_215 = arith.constant 1.000000e+00 : f32
    %640 = vector.broadcast %cst_215 : f32 to vector<8x128xf32>
    %641 = arith.addf %640, %639 : vector<8x128xf32>
    %642 = arith.divf %640, %641 : vector<8x128xf32>
    %c64_i32_216 = arith.constant 64 : i32
    %643 = tpu.dynamic_rotate %642 by %c64_i32_216 dim 1 : vector<8x128xf32>, i32 -> vector<8x128xf32>
    %c32_i32_217 = arith.constant 32 : i32
    %644 = tpu.dynamic_rotate %642 by %c32_i32_217 dim 1 : vector<8x128xf32>, i32 -> vector<8x128xf32>
    %645 = vector.broadcast %8 : vector<1x128xf32> to vector<8x128xf32>
    %646 = arith.addf %636, %645 : vector<8x128xf32>
    %647 = arith.mulf %643, %646 : vector<8x128xf32>
    %648 = arith.addf %635, %647 : vector<8x128xf32>
    %649 = math.tanh %648 : vector<8x128xf32>
    %650 = vector.extract_strided_slice %649 {offsets = [0, 0], sizes = [8, 32], strides = [1, 1]} : vector<8x128xf32> to vector<8x32xf32>
    %651 = vector.extract_strided_slice %644 {offsets = [0, 0], sizes = [8, 32], strides = [1, 1]} : vector<8x128xf32> to vector<8x32xf32>
    %cst_218 = arith.constant 1.000000e+00 : f32
    %652 = vector.broadcast %cst_218 : f32 to vector<8x32xf32>
    %653 = arith.subf %652, %651 : vector<8x32xf32>
    %654 = arith.mulf %653, %650 : vector<8x32xf32>
    %655 = arith.mulf %651, %625 : vector<8x32xf32>
    %656 = arith.addf %654, %655 : vector<8x32xf32>
    %657 = arith.truncf %656 : vector<8x32xf32> to vector<8x32xbf16>
    %658 = arith.index_cast %c20_i32 : i32 to index
    %c0_219 = arith.constant 0 : index
    %c0_220 = arith.constant 0 : index
    %659 = vector.load %arg5[%658, %c0_219, %c0_220] : memref<28x32x128xbf16, #tpu.memory_space<vmem>>, vector<1x32x128xbf16>
    %660 = vector.shape_cast %659 : vector<1x32x128xbf16> to vector<32x128xbf16>
    %cst_221 = arith.constant dense<0.000000e+00> : vector<8x128xf32>
    %661 = tpu.matmul %657, %660, %cst_221 {dimension_numbers = #tpu.dot_dimension_numbers<[1], [0], [0], [1], [0, 0, 1, 1], [], []>} : vector<8x32xbf16>, vector<32x128xbf16>, vector<8x128xf32> -> vector<8x128xf32>
    %662 = arith.addf %631, %661 : vector<8x128xf32>
    %c21_i32 = arith.constant 21 : i32
    %c8_i32_222 = arith.constant 8 : i32
    %663 = arith.muli %c21_i32, %c8_i32_222 : i32
    %664 = tpu.assume_multiple %663, 8 : i32
    %665 = arith.index_cast %664 : i32 to index
    %c0_223 = arith.constant 0 : index
    %666 = vector.load %arg8[%665, %c0_223] : memref<224x128xf32, #tpu.memory_space<vmem>>, vector<8x128xf32>
    %cst_224 = arith.constant dense<0.000000e+00> : vector<8x128xf32>
    %667 = tpu.matmul %657, %7, %cst_224 {dimension_numbers = #tpu.dot_dimension_numbers<[1], [0], [0], [1], [0, 0, 1, 1], [], []>} : vector<8x32xbf16>, vector<32x128xbf16>, vector<8x128xf32> -> vector<8x128xf32>
    %668 = arith.addf %666, %667 : vector<8x128xf32>
    %669 = arith.negf %668 : vector<8x128xf32>
    %670 = math.exp %669 : vector<8x128xf32>
    %cst_225 = arith.constant 1.000000e+00 : f32
    %671 = vector.broadcast %cst_225 : f32 to vector<8x128xf32>
    %672 = arith.addf %671, %670 : vector<8x128xf32>
    %673 = arith.divf %671, %672 : vector<8x128xf32>
    %c64_i32_226 = arith.constant 64 : i32
    %674 = tpu.dynamic_rotate %673 by %c64_i32_226 dim 1 : vector<8x128xf32>, i32 -> vector<8x128xf32>
    %c32_i32_227 = arith.constant 32 : i32
    %675 = tpu.dynamic_rotate %673 by %c32_i32_227 dim 1 : vector<8x128xf32>, i32 -> vector<8x128xf32>
    %676 = vector.broadcast %8 : vector<1x128xf32> to vector<8x128xf32>
    %677 = arith.addf %667, %676 : vector<8x128xf32>
    %678 = arith.mulf %674, %677 : vector<8x128xf32>
    %679 = arith.addf %666, %678 : vector<8x128xf32>
    %680 = math.tanh %679 : vector<8x128xf32>
    %681 = vector.extract_strided_slice %680 {offsets = [0, 0], sizes = [8, 32], strides = [1, 1]} : vector<8x128xf32> to vector<8x32xf32>
    %682 = vector.extract_strided_slice %675 {offsets = [0, 0], sizes = [8, 32], strides = [1, 1]} : vector<8x128xf32> to vector<8x32xf32>
    %cst_228 = arith.constant 1.000000e+00 : f32
    %683 = vector.broadcast %cst_228 : f32 to vector<8x32xf32>
    %684 = arith.subf %683, %682 : vector<8x32xf32>
    %685 = arith.mulf %684, %681 : vector<8x32xf32>
    %686 = arith.mulf %682, %656 : vector<8x32xf32>
    %687 = arith.addf %685, %686 : vector<8x32xf32>
    %688 = arith.truncf %687 : vector<8x32xf32> to vector<8x32xbf16>
    %689 = arith.index_cast %c21_i32 : i32 to index
    %c0_229 = arith.constant 0 : index
    %c0_230 = arith.constant 0 : index
    %690 = vector.load %arg5[%689, %c0_229, %c0_230] : memref<28x32x128xbf16, #tpu.memory_space<vmem>>, vector<1x32x128xbf16>
    %691 = vector.shape_cast %690 : vector<1x32x128xbf16> to vector<32x128xbf16>
    %cst_231 = arith.constant dense<0.000000e+00> : vector<8x128xf32>
    %692 = tpu.matmul %688, %691, %cst_231 {dimension_numbers = #tpu.dot_dimension_numbers<[1], [0], [0], [1], [0, 0, 1, 1], [], []>} : vector<8x32xbf16>, vector<32x128xbf16>, vector<8x128xf32> -> vector<8x128xf32>
    %693 = arith.addf %662, %692 : vector<8x128xf32>
    %c22_i32 = arith.constant 22 : i32
    %c8_i32_232 = arith.constant 8 : i32
    %694 = arith.muli %c22_i32, %c8_i32_232 : i32
    %695 = tpu.assume_multiple %694, 8 : i32
    %696 = arith.index_cast %695 : i32 to index
    %c0_233 = arith.constant 0 : index
    %697 = vector.load %arg8[%696, %c0_233] : memref<224x128xf32, #tpu.memory_space<vmem>>, vector<8x128xf32>
    %cst_234 = arith.constant dense<0.000000e+00> : vector<8x128xf32>
    %698 = tpu.matmul %688, %7, %cst_234 {dimension_numbers = #tpu.dot_dimension_numbers<[1], [0], [0], [1], [0, 0, 1, 1], [], []>} : vector<8x32xbf16>, vector<32x128xbf16>, vector<8x128xf32> -> vector<8x128xf32>
    %699 = arith.addf %697, %698 : vector<8x128xf32>
    %700 = arith.negf %699 : vector<8x128xf32>
    %701 = math.exp %700 : vector<8x128xf32>
    %cst_235 = arith.constant 1.000000e+00 : f32
    %702 = vector.broadcast %cst_235 : f32 to vector<8x128xf32>
    %703 = arith.addf %702, %701 : vector<8x128xf32>
    %704 = arith.divf %702, %703 : vector<8x128xf32>
    %c64_i32_236 = arith.constant 64 : i32
    %705 = tpu.dynamic_rotate %704 by %c64_i32_236 dim 1 : vector<8x128xf32>, i32 -> vector<8x128xf32>
    %c32_i32_237 = arith.constant 32 : i32
    %706 = tpu.dynamic_rotate %704 by %c32_i32_237 dim 1 : vector<8x128xf32>, i32 -> vector<8x128xf32>
    %707 = vector.broadcast %8 : vector<1x128xf32> to vector<8x128xf32>
    %708 = arith.addf %698, %707 : vector<8x128xf32>
    %709 = arith.mulf %705, %708 : vector<8x128xf32>
    %710 = arith.addf %697, %709 : vector<8x128xf32>
    %711 = math.tanh %710 : vector<8x128xf32>
    %712 = vector.extract_strided_slice %711 {offsets = [0, 0], sizes = [8, 32], strides = [1, 1]} : vector<8x128xf32> to vector<8x32xf32>
    %713 = vector.extract_strided_slice %706 {offsets = [0, 0], sizes = [8, 32], strides = [1, 1]} : vector<8x128xf32> to vector<8x32xf32>
    %cst_238 = arith.constant 1.000000e+00 : f32
    %714 = vector.broadcast %cst_238 : f32 to vector<8x32xf32>
    %715 = arith.subf %714, %713 : vector<8x32xf32>
    %716 = arith.mulf %715, %712 : vector<8x32xf32>
    %717 = arith.mulf %713, %687 : vector<8x32xf32>
    %718 = arith.addf %716, %717 : vector<8x32xf32>
    %719 = arith.truncf %718 : vector<8x32xf32> to vector<8x32xbf16>
    %720 = arith.index_cast %c22_i32 : i32 to index
    %c0_239 = arith.constant 0 : index
    %c0_240 = arith.constant 0 : index
    %721 = vector.load %arg5[%720, %c0_239, %c0_240] : memref<28x32x128xbf16, #tpu.memory_space<vmem>>, vector<1x32x128xbf16>
    %722 = vector.shape_cast %721 : vector<1x32x128xbf16> to vector<32x128xbf16>
    %cst_241 = arith.constant dense<0.000000e+00> : vector<8x128xf32>
    %723 = tpu.matmul %719, %722, %cst_241 {dimension_numbers = #tpu.dot_dimension_numbers<[1], [0], [0], [1], [0, 0, 1, 1], [], []>} : vector<8x32xbf16>, vector<32x128xbf16>, vector<8x128xf32> -> vector<8x128xf32>
    %724 = arith.addf %693, %723 : vector<8x128xf32>
    %c23_i32 = arith.constant 23 : i32
    %c8_i32_242 = arith.constant 8 : i32
    %725 = arith.muli %c23_i32, %c8_i32_242 : i32
    %726 = tpu.assume_multiple %725, 8 : i32
    %727 = arith.index_cast %726 : i32 to index
    %c0_243 = arith.constant 0 : index
    %728 = vector.load %arg8[%727, %c0_243] : memref<224x128xf32, #tpu.memory_space<vmem>>, vector<8x128xf32>
    %cst_244 = arith.constant dense<0.000000e+00> : vector<8x128xf32>
    %729 = tpu.matmul %719, %7, %cst_244 {dimension_numbers = #tpu.dot_dimension_numbers<[1], [0], [0], [1], [0, 0, 1, 1], [], []>} : vector<8x32xbf16>, vector<32x128xbf16>, vector<8x128xf32> -> vector<8x128xf32>
    %730 = arith.addf %728, %729 : vector<8x128xf32>
    %731 = arith.negf %730 : vector<8x128xf32>
    %732 = math.exp %731 : vector<8x128xf32>
    %cst_245 = arith.constant 1.000000e+00 : f32
    %733 = vector.broadcast %cst_245 : f32 to vector<8x128xf32>
    %734 = arith.addf %733, %732 : vector<8x128xf32>
    %735 = arith.divf %733, %734 : vector<8x128xf32>
    %c64_i32_246 = arith.constant 64 : i32
    %736 = tpu.dynamic_rotate %735 by %c64_i32_246 dim 1 : vector<8x128xf32>, i32 -> vector<8x128xf32>
    %c32_i32_247 = arith.constant 32 : i32
    %737 = tpu.dynamic_rotate %735 by %c32_i32_247 dim 1 : vector<8x128xf32>, i32 -> vector<8x128xf32>
    %738 = vector.broadcast %8 : vector<1x128xf32> to vector<8x128xf32>
    %739 = arith.addf %729, %738 : vector<8x128xf32>
    %740 = arith.mulf %736, %739 : vector<8x128xf32>
    %741 = arith.addf %728, %740 : vector<8x128xf32>
    %742 = math.tanh %741 : vector<8x128xf32>
    %743 = vector.extract_strided_slice %742 {offsets = [0, 0], sizes = [8, 32], strides = [1, 1]} : vector<8x128xf32> to vector<8x32xf32>
    %744 = vector.extract_strided_slice %737 {offsets = [0, 0], sizes = [8, 32], strides = [1, 1]} : vector<8x128xf32> to vector<8x32xf32>
    %cst_248 = arith.constant 1.000000e+00 : f32
    %745 = vector.broadcast %cst_248 : f32 to vector<8x32xf32>
    %746 = arith.subf %745, %744 : vector<8x32xf32>
    %747 = arith.mulf %746, %743 : vector<8x32xf32>
    %748 = arith.mulf %744, %718 : vector<8x32xf32>
    %749 = arith.addf %747, %748 : vector<8x32xf32>
    %750 = arith.truncf %749 : vector<8x32xf32> to vector<8x32xbf16>
    %751 = arith.index_cast %c23_i32 : i32 to index
    %c0_249 = arith.constant 0 : index
    %c0_250 = arith.constant 0 : index
    %752 = vector.load %arg5[%751, %c0_249, %c0_250] : memref<28x32x128xbf16, #tpu.memory_space<vmem>>, vector<1x32x128xbf16>
    %753 = vector.shape_cast %752 : vector<1x32x128xbf16> to vector<32x128xbf16>
    %cst_251 = arith.constant dense<0.000000e+00> : vector<8x128xf32>
    %754 = tpu.matmul %750, %753, %cst_251 {dimension_numbers = #tpu.dot_dimension_numbers<[1], [0], [0], [1], [0, 0, 1, 1], [], []>} : vector<8x32xbf16>, vector<32x128xbf16>, vector<8x128xf32> -> vector<8x128xf32>
    %755 = arith.addf %724, %754 : vector<8x128xf32>
    %c24_i32 = arith.constant 24 : i32
    %c8_i32_252 = arith.constant 8 : i32
    %756 = arith.muli %c24_i32, %c8_i32_252 : i32
    %757 = tpu.assume_multiple %756, 8 : i32
    %758 = arith.index_cast %757 : i32 to index
    %c0_253 = arith.constant 0 : index
    %759 = vector.load %arg8[%758, %c0_253] : memref<224x128xf32, #tpu.memory_space<vmem>>, vector<8x128xf32>
    %cst_254 = arith.constant dense<0.000000e+00> : vector<8x128xf32>
    %760 = tpu.matmul %750, %7, %cst_254 {dimension_numbers = #tpu.dot_dimension_numbers<[1], [0], [0], [1], [0, 0, 1, 1], [], []>} : vector<8x32xbf16>, vector<32x128xbf16>, vector<8x128xf32> -> vector<8x128xf32>
    %761 = arith.addf %759, %760 : vector<8x128xf32>
    %762 = arith.negf %761 : vector<8x128xf32>
    %763 = math.exp %762 : vector<8x128xf32>
    %cst_255 = arith.constant 1.000000e+00 : f32
    %764 = vector.broadcast %cst_255 : f32 to vector<8x128xf32>
    %765 = arith.addf %764, %763 : vector<8x128xf32>
    %766 = arith.divf %764, %765 : vector<8x128xf32>
    %c64_i32_256 = arith.constant 64 : i32
    %767 = tpu.dynamic_rotate %766 by %c64_i32_256 dim 1 : vector<8x128xf32>, i32 -> vector<8x128xf32>
    %c32_i32_257 = arith.constant 32 : i32
    %768 = tpu.dynamic_rotate %766 by %c32_i32_257 dim 1 : vector<8x128xf32>, i32 -> vector<8x128xf32>
    %769 = vector.broadcast %8 : vector<1x128xf32> to vector<8x128xf32>
    %770 = arith.addf %760, %769 : vector<8x128xf32>
    %771 = arith.mulf %767, %770 : vector<8x128xf32>
    %772 = arith.addf %759, %771 : vector<8x128xf32>
    %773 = math.tanh %772 : vector<8x128xf32>
    %774 = vector.extract_strided_slice %773 {offsets = [0, 0], sizes = [8, 32], strides = [1, 1]} : vector<8x128xf32> to vector<8x32xf32>
    %775 = vector.extract_strided_slice %768 {offsets = [0, 0], sizes = [8, 32], strides = [1, 1]} : vector<8x128xf32> to vector<8x32xf32>
    %cst_258 = arith.constant 1.000000e+00 : f32
    %776 = vector.broadcast %cst_258 : f32 to vector<8x32xf32>
    %777 = arith.subf %776, %775 : vector<8x32xf32>
    %778 = arith.mulf %777, %774 : vector<8x32xf32>
    %779 = arith.mulf %775, %749 : vector<8x32xf32>
    %780 = arith.addf %778, %779 : vector<8x32xf32>
    %781 = arith.truncf %780 : vector<8x32xf32> to vector<8x32xbf16>
    %782 = arith.index_cast %c24_i32 : i32 to index
    %c0_259 = arith.constant 0 : index
    %c0_260 = arith.constant 0 : index
    %783 = vector.load %arg5[%782, %c0_259, %c0_260] : memref<28x32x128xbf16, #tpu.memory_space<vmem>>, vector<1x32x128xbf16>
    %784 = vector.shape_cast %783 : vector<1x32x128xbf16> to vector<32x128xbf16>
    %cst_261 = arith.constant dense<0.000000e+00> : vector<8x128xf32>
    %785 = tpu.matmul %781, %784, %cst_261 {dimension_numbers = #tpu.dot_dimension_numbers<[1], [0], [0], [1], [0, 0, 1, 1], [], []>} : vector<8x32xbf16>, vector<32x128xbf16>, vector<8x128xf32> -> vector<8x128xf32>
    %786 = arith.addf %755, %785 : vector<8x128xf32>
    %c25_i32 = arith.constant 25 : i32
    %c8_i32_262 = arith.constant 8 : i32
    %787 = arith.muli %c25_i32, %c8_i32_262 : i32
    %788 = tpu.assume_multiple %787, 8 : i32
    %789 = arith.index_cast %788 : i32 to index
    %c0_263 = arith.constant 0 : index
    %790 = vector.load %arg8[%789, %c0_263] : memref<224x128xf32, #tpu.memory_space<vmem>>, vector<8x128xf32>
    %cst_264 = arith.constant dense<0.000000e+00> : vector<8x128xf32>
    %791 = tpu.matmul %781, %7, %cst_264 {dimension_numbers = #tpu.dot_dimension_numbers<[1], [0], [0], [1], [0, 0, 1, 1], [], []>} : vector<8x32xbf16>, vector<32x128xbf16>, vector<8x128xf32> -> vector<8x128xf32>
    %792 = arith.addf %790, %791 : vector<8x128xf32>
    %793 = arith.negf %792 : vector<8x128xf32>
    %794 = math.exp %793 : vector<8x128xf32>
    %cst_265 = arith.constant 1.000000e+00 : f32
    %795 = vector.broadcast %cst_265 : f32 to vector<8x128xf32>
    %796 = arith.addf %795, %794 : vector<8x128xf32>
    %797 = arith.divf %795, %796 : vector<8x128xf32>
    %c64_i32_266 = arith.constant 64 : i32
    %798 = tpu.dynamic_rotate %797 by %c64_i32_266 dim 1 : vector<8x128xf32>, i32 -> vector<8x128xf32>
    %c32_i32_267 = arith.constant 32 : i32
    %799 = tpu.dynamic_rotate %797 by %c32_i32_267 dim 1 : vector<8x128xf32>, i32 -> vector<8x128xf32>
    %800 = vector.broadcast %8 : vector<1x128xf32> to vector<8x128xf32>
    %801 = arith.addf %791, %800 : vector<8x128xf32>
    %802 = arith.mulf %798, %801 : vector<8x128xf32>
    %803 = arith.addf %790, %802 : vector<8x128xf32>
    %804 = math.tanh %803 : vector<8x128xf32>
    %805 = vector.extract_strided_slice %804 {offsets = [0, 0], sizes = [8, 32], strides = [1, 1]} : vector<8x128xf32> to vector<8x32xf32>
    %806 = vector.extract_strided_slice %799 {offsets = [0, 0], sizes = [8, 32], strides = [1, 1]} : vector<8x128xf32> to vector<8x32xf32>
    %cst_268 = arith.constant 1.000000e+00 : f32
    %807 = vector.broadcast %cst_268 : f32 to vector<8x32xf32>
    %808 = arith.subf %807, %806 : vector<8x32xf32>
    %809 = arith.mulf %808, %805 : vector<8x32xf32>
    %810 = arith.mulf %806, %780 : vector<8x32xf32>
    %811 = arith.addf %809, %810 : vector<8x32xf32>
    %812 = arith.truncf %811 : vector<8x32xf32> to vector<8x32xbf16>
    %813 = arith.index_cast %c25_i32 : i32 to index
    %c0_269 = arith.constant 0 : index
    %c0_270 = arith.constant 0 : index
    %814 = vector.load %arg5[%813, %c0_269, %c0_270] : memref<28x32x128xbf16, #tpu.memory_space<vmem>>, vector<1x32x128xbf16>
    %815 = vector.shape_cast %814 : vector<1x32x128xbf16> to vector<32x128xbf16>
    %cst_271 = arith.constant dense<0.000000e+00> : vector<8x128xf32>
    %816 = tpu.matmul %812, %815, %cst_271 {dimension_numbers = #tpu.dot_dimension_numbers<[1], [0], [0], [1], [0, 0, 1, 1], [], []>} : vector<8x32xbf16>, vector<32x128xbf16>, vector<8x128xf32> -> vector<8x128xf32>
    %817 = arith.addf %786, %816 : vector<8x128xf32>
    %c26_i32 = arith.constant 26 : i32
    %c8_i32_272 = arith.constant 8 : i32
    %818 = arith.muli %c26_i32, %c8_i32_272 : i32
    %819 = tpu.assume_multiple %818, 8 : i32
    %820 = arith.index_cast %819 : i32 to index
    %c0_273 = arith.constant 0 : index
    %821 = vector.load %arg8[%820, %c0_273] : memref<224x128xf32, #tpu.memory_space<vmem>>, vector<8x128xf32>
    %cst_274 = arith.constant dense<0.000000e+00> : vector<8x128xf32>
    %822 = tpu.matmul %812, %7, %cst_274 {dimension_numbers = #tpu.dot_dimension_numbers<[1], [0], [0], [1], [0, 0, 1, 1], [], []>} : vector<8x32xbf16>, vector<32x128xbf16>, vector<8x128xf32> -> vector<8x128xf32>
    %823 = arith.addf %821, %822 : vector<8x128xf32>
    %824 = arith.negf %823 : vector<8x128xf32>
    %825 = math.exp %824 : vector<8x128xf32>
    %cst_275 = arith.constant 1.000000e+00 : f32
    %826 = vector.broadcast %cst_275 : f32 to vector<8x128xf32>
    %827 = arith.addf %826, %825 : vector<8x128xf32>
    %828 = arith.divf %826, %827 : vector<8x128xf32>
    %c64_i32_276 = arith.constant 64 : i32
    %829 = tpu.dynamic_rotate %828 by %c64_i32_276 dim 1 : vector<8x128xf32>, i32 -> vector<8x128xf32>
    %c32_i32_277 = arith.constant 32 : i32
    %830 = tpu.dynamic_rotate %828 by %c32_i32_277 dim 1 : vector<8x128xf32>, i32 -> vector<8x128xf32>
    %831 = vector.broadcast %8 : vector<1x128xf32> to vector<8x128xf32>
    %832 = arith.addf %822, %831 : vector<8x128xf32>
    %833 = arith.mulf %829, %832 : vector<8x128xf32>
    %834 = arith.addf %821, %833 : vector<8x128xf32>
    %835 = math.tanh %834 : vector<8x128xf32>
    %836 = vector.extract_strided_slice %835 {offsets = [0, 0], sizes = [8, 32], strides = [1, 1]} : vector<8x128xf32> to vector<8x32xf32>
    %837 = vector.extract_strided_slice %830 {offsets = [0, 0], sizes = [8, 32], strides = [1, 1]} : vector<8x128xf32> to vector<8x32xf32>
    %cst_278 = arith.constant 1.000000e+00 : f32
    %838 = vector.broadcast %cst_278 : f32 to vector<8x32xf32>
    %839 = arith.subf %838, %837 : vector<8x32xf32>
    %840 = arith.mulf %839, %836 : vector<8x32xf32>
    %841 = arith.mulf %837, %811 : vector<8x32xf32>
    %842 = arith.addf %840, %841 : vector<8x32xf32>
    %843 = arith.truncf %842 : vector<8x32xf32> to vector<8x32xbf16>
    %844 = arith.index_cast %c26_i32 : i32 to index
    %c0_279 = arith.constant 0 : index
    %c0_280 = arith.constant 0 : index
    %845 = vector.load %arg5[%844, %c0_279, %c0_280] : memref<28x32x128xbf16, #tpu.memory_space<vmem>>, vector<1x32x128xbf16>
    %846 = vector.shape_cast %845 : vector<1x32x128xbf16> to vector<32x128xbf16>
    %cst_281 = arith.constant dense<0.000000e+00> : vector<8x128xf32>
    %847 = tpu.matmul %843, %846, %cst_281 {dimension_numbers = #tpu.dot_dimension_numbers<[1], [0], [0], [1], [0, 0, 1, 1], [], []>} : vector<8x32xbf16>, vector<32x128xbf16>, vector<8x128xf32> -> vector<8x128xf32>
    %848 = arith.addf %817, %847 : vector<8x128xf32>
    %c27_i32 = arith.constant 27 : i32
    %c8_i32_282 = arith.constant 8 : i32
    %849 = arith.muli %c27_i32, %c8_i32_282 : i32
    %850 = tpu.assume_multiple %849, 8 : i32
    %851 = arith.index_cast %850 : i32 to index
    %c0_283 = arith.constant 0 : index
    %852 = vector.load %arg8[%851, %c0_283] : memref<224x128xf32, #tpu.memory_space<vmem>>, vector<8x128xf32>
    %cst_284 = arith.constant dense<0.000000e+00> : vector<8x128xf32>
    %853 = tpu.matmul %843, %7, %cst_284 {dimension_numbers = #tpu.dot_dimension_numbers<[1], [0], [0], [1], [0, 0, 1, 1], [], []>} : vector<8x32xbf16>, vector<32x128xbf16>, vector<8x128xf32> -> vector<8x128xf32>
    %854 = arith.addf %852, %853 : vector<8x128xf32>
    %855 = arith.negf %854 : vector<8x128xf32>
    %856 = math.exp %855 : vector<8x128xf32>
    %cst_285 = arith.constant 1.000000e+00 : f32
    %857 = vector.broadcast %cst_285 : f32 to vector<8x128xf32>
    %858 = arith.addf %857, %856 : vector<8x128xf32>
    %859 = arith.divf %857, %858 : vector<8x128xf32>
    %c64_i32_286 = arith.constant 64 : i32
    %860 = tpu.dynamic_rotate %859 by %c64_i32_286 dim 1 : vector<8x128xf32>, i32 -> vector<8x128xf32>
    %c32_i32_287 = arith.constant 32 : i32
    %861 = tpu.dynamic_rotate %859 by %c32_i32_287 dim 1 : vector<8x128xf32>, i32 -> vector<8x128xf32>
    %862 = vector.broadcast %8 : vector<1x128xf32> to vector<8x128xf32>
    %863 = arith.addf %853, %862 : vector<8x128xf32>
    %864 = arith.mulf %860, %863 : vector<8x128xf32>
    %865 = arith.addf %852, %864 : vector<8x128xf32>
    %866 = math.tanh %865 : vector<8x128xf32>
    %867 = vector.extract_strided_slice %866 {offsets = [0, 0], sizes = [8, 32], strides = [1, 1]} : vector<8x128xf32> to vector<8x32xf32>
    %868 = vector.extract_strided_slice %861 {offsets = [0, 0], sizes = [8, 32], strides = [1, 1]} : vector<8x128xf32> to vector<8x32xf32>
    %cst_288 = arith.constant 1.000000e+00 : f32
    %869 = vector.broadcast %cst_288 : f32 to vector<8x32xf32>
    %870 = arith.subf %869, %868 : vector<8x32xf32>
    %871 = arith.mulf %870, %867 : vector<8x32xf32>
    %872 = arith.mulf %868, %842 : vector<8x32xf32>
    %873 = arith.addf %871, %872 : vector<8x32xf32>
    %874 = arith.truncf %873 : vector<8x32xf32> to vector<8x32xbf16>
    %875 = arith.index_cast %c27_i32 : i32 to index
    %c0_289 = arith.constant 0 : index
    %c0_290 = arith.constant 0 : index
    %876 = vector.load %arg5[%875, %c0_289, %c0_290] : memref<28x32x128xbf16, #tpu.memory_space<vmem>>, vector<1x32x128xbf16>
    %877 = vector.shape_cast %876 : vector<1x32x128xbf16> to vector<32x128xbf16>
    %cst_291 = arith.constant dense<0.000000e+00> : vector<8x128xf32>
    %878 = tpu.matmul %874, %877, %cst_291 {dimension_numbers = #tpu.dot_dimension_numbers<[1], [0], [0], [1], [0, 0, 1, 1], [], []>} : vector<8x32xbf16>, vector<32x128xbf16>, vector<8x128xf32> -> vector<8x128xf32>
    %879 = arith.addf %848, %878 : vector<8x128xf32>
    %c28_i32 = arith.constant 28 : i32
    %c0_292 = arith.constant 0 : index
    %c0_293 = arith.constant 0 : index
    %880 = vector.load %arg6[%c0_292, %c0_293] : memref<1x128xf32, #tpu.memory_space<vmem>>, vector<1x128xf32>
    %881 = vector.broadcast %880 : vector<1x128xf32> to vector<8x128xf32>
    %882 = arith.addf %879, %881 : vector<8x128xf32>
    %c0_294 = arith.constant 0 : index
    %c0_295 = arith.constant 0 : index
    %883 = vector.load %arg7[%c0_294, %c0_295] : memref<8x128xf32, #tpu.memory_space<vmem>>, vector<8x128xf32>
    tpu.vector_store %arg7[%c0_294, %c0_295], %882 {strides = array<i32>} : memref<8x128xf32, #tpu.memory_space<vmem>>, vector<8x128xf32>,
    return
  }
}

</mosaic_0001>

<llo_original>
// kernel: gru_forward.1
$region0: #{gru_forward.1}
  #allocation0 [shape = 'u32[]', space=smem, size = 0x4, offset = 0x4, fixed_abs, tag = 'smem constant byte address 0x4 - core index']
  #allocation1 [shape = 'u32[72,128]{1,0:T(1,128)}', space=vmem, size = 0x9000, scoped, tag = 'internal scratch']
  #allocation2 [shape = 'f32[224,128]{1,0:T(8,128)}', space=vmem, size = 0x1c000, scoped, tag = 'scratch operand']
  %s0 = inlined_call_operand.vmem [shape: bf16[224,16], index: 0, kind: input, shape index: {}]
  %s1 = inlined_call_operand.vmem [shape: bf16[16,128], index: 1, kind: input, shape index: {}]
  %s2 = inlined_call_operand.vmem [shape: bf16[32,128], index: 2, kind: input, shape index: {}]
  %s3 = inlined_call_operand.vmem [shape: f32[1,128], index: 3, kind: input, shape index: {}]
  %s4 = inlined_call_operand.vmem [shape: f32[1,128], index: 4, kind: input, shape index: {}]
  %s5 = inlined_call_operand.hbm [shape: bf16[28,32,128], index: 5, kind: input, shape index: {}]
  %s6 = inlined_call_operand.vmem [shape: f32[1,128], index: 6, kind: input, shape index: {}]
  %s7 = inlined_call_operand.vmem [shape: f32[8,128], index: 7, kind: output, shape index: {}]
  %s8 = sld [smem:[#allocation0]]
  $region42: #{gru_forward.1} parent=0
    _
  %s10 = ssub.s32 1, %s8
  %s11 = scalar_select 0, %s10, %s8
  $region1: #{gru_forward.1} parent=0
    #allocation3 [shape = 'u8[229376]{0}', space=vmem, size = 0x38000, scoped, tag = 'input window, operand 5, single buffered']
    #allocation4 [shape = 's32[1]{0}', space=sflag, size = 0x4, scoped, tag = 'scoped memory for gru_forward.1']
    %12 = vsyncpa [#allocation4], 0
    // Predicated region
    $region2: #{gru_forward.1} parent=1 // pred_check
      _
    $region3: #{gru_forward.1} parent=1 // pred_check_branch
      %14 = sbr.rel (0) target = $region5
    $region4: #{gru_forward.1} parent=1 // pred_region
      _
    $region5: #{gru_forward.1} parent=1 // pred_fallthru
      _
    // Predicated region
    $region6: #{gru_forward.1} parent=1 // pred_check
      _
    $region7: #{gru_forward.1} parent=1 // pred_check_branch
      %16 = sbr.rel (0) target = $region9
    $region8: #{gru_forward.1} parent=1 // pred_region
      _
    $region9: #{gru_forward.1} parent=1 // pred_fallthru
      _
    // Predicated region
    $region10: #{gru_forward.1} parent=1 // pred_check
      _
    $region11: #{gru_forward.1} parent=1 // pred_check_branch
      %18 = sbr.rel (0) target = $region13
    $region12: #{gru_forward.1} parent=1 // pred_region
      _
    $region13: #{gru_forward.1} parent=1 // pred_fallthru
      _
    // Predicated region
    $region14: #{gru_forward.1} parent=1 // pred_check
      _
    $region15: #{gru_forward.1} parent=1 // pred_check_branch
      %20 = sbr.rel (0) target = $region17
    $region16: #{gru_forward.1} parent=1 // pred_region
      _
    $region17: #{gru_forward.1} parent=1 // pred_fallthru
      _
    // Predicated region
    $region18: #{gru_forward.1} parent=1 // pred_check
      _
    $region19: #{gru_forward.1} parent=1 // pred_check_branch
      %22 = sbr.rel (0) target = $region21
    $region20: #{gru_forward.1} parent=1 // pred_region
      _
    $region21: #{gru_forward.1} parent=1 // pred_fallthru
      _
    // Predicated region
    $region22: #{gru_forward.1} parent=1 // pred_check
      _
    $region23: #{gru_forward.1} parent=1 // pred_check_branch
      %24 = sbr.rel (0) target = $region25
    $region24: #{gru_forward.1} parent=1 // pred_region
      %26 = vsyncadd [#allocation4], 0
      %s27 = sshll.u32 %s5, 4
      %s28 = int_to_ptr.hbm [resolvable:$true] %s27
      %s29 = sshll.u32 [#allocation3], 4
      %s30 = int_to_ptr.vmem [resolvable:$true] %s29
      %35 = dma.hbm_to_vmem [thread:$0]  %s28, 7168, %s30, [#allocation4], 64, 64, 4
    $region25: #{gru_forward.1} parent=1 // pred_fallthru
      _
    // Predicated region
    $region26: #{gru_forward.1} parent=1 // pred_check
      _
    $region27: #{gru_forward.1} parent=1 // pred_check_branch
      %37 = sbr.rel (0) target = $region29
    $region28: #{gru_forward.1} parent=1 // pred_region
      _
    $region29: #{gru_forward.1} parent=1 // pred_fallthru
      _
    // Predicated region
    $region30: #{gru_forward.1} parent=1 // pred_check
      _
    $region31: #{gru_forward.1} parent=1 // pred_check_branch
      %39 = sbr.rel (0) target = $region33
    $region32: #{gru_forward.1} parent=1 // pred_region
      %41 = dma.done [#allocation4], 7168
    $region33: #{gru_forward.1} parent=1 // pred_fallthru
      _
    %v43 = vld [vmem:[%s0] sm:$0xf]
    %v44 = vld [vmem:[%s0 + $0x4] sm:$0xf]
    %v45 = vld [vmem:[%s0 + $0x8] sm:$0xf]
    %v46 = vld [vmem:[%s0 + $0xc] sm:$0xf]
    %v47 = vld [vmem:[%s0 + $0x10] sm:$0xf]
    %v48 = vld [vmem:[%s0 + $0x14] sm:$0xf]
    %v49 = vld [vmem:[%s0 + $0x18] sm:$0xf]
    %v50 = vld [vmem:[%s0 + $0x1c] sm:$0xf]
    %v51 = vld [vmem:[%s0 + $0x20] sm:$0xf]
    %v52 = vld [vmem:[%s0 + $0x24] sm:$0xf]
    %v53 = vld [vmem:[%s0 + $0x28] sm:$0xf]
    %v54 = vld [vmem:[%s0 + $0x2c] sm:$0xf]
    %v55 = vld [vmem:[%s0 + $0x30] sm:$0xf]
    %v56 = vld [vmem:[%s0 + $0x34] sm:$0xf]
    %v57 = vld [vmem:[%s0 + $0x38] sm:$0xf]
    %v58 = vld [vmem:[%s0 + $0x3c] sm:$0xf]
    %v59 = vld [vmem:[%s0 + $0x40] sm:$0xf]
    %v60 = vld [vmem:[%s0 + $0x44] sm:$0xf]
    %v61 = vld [vmem:[%s0 + $0x48] sm:$0xf]
    %v62 = vld [vmem:[%s0 + $0x4c] sm:$0xf]
    %v63 = vld [vmem:[%s0 + $0x50] sm:$0xf]
    %v64 = vld [vmem:[%s0 + $0x54] sm:$0xf]
    %v65 = vld [vmem:[%s0 + $0x58] sm:$0xf]
    %v66 = vld [vmem:[%s0 + $0x5c] sm:$0xf]
    %v67 = vld [vmem:[%s0 + $0x60] sm:$0xf]
    %v68 = vld [vmem:[%s0 + $0x64] sm:$0xf]
    %v69 = vld [vmem:[%s0 + $0x68] sm:$0xf]
    %v70 = vld [vmem:[%s0 + $0x6c] sm:$0xf]
    %v71 = vld [vmem:[%s1] sm:$0xf]
    %v72 = vld [vmem:[%s1 + $0x4] sm:$0xf]
    %v73 = vld [vmem:[%s3] sm:$0x1]
    %v75 = vperm.slane %v73, 0
    %v105 = vunpack.c.l.b16 %v43
    %v106 = vunpack.c.l.b16 %v44
    %v107 = vunpack.c.l.b16 %v45
    %v108 = vunpack.c.l.b16 %v46
    %v109 = vunpack.c.l.b16 %v47
    %v110 = vunpack.c.l.b16 %v48
    %v111 = vunpack.c.l.b16 %v49
    %v112 = vunpack.c.l.b16 %v50
    %v113 = vunpack.c.l.b16 %v51
    %v114 = vunpack.c.l.b16 %v52
    %v115 = vunpack.c.l.b16 %v53
    %v116 = vunpack.c.l.b16 %v54
    %v117 = vunpack.c.l.b16 %v55
    %v118 = vunpack.c.l.b16 %v56
    %v119 = vunpack.c.l.b16 %v57
    %v120 = vunpack.c.l.b16 %v58
    %v121 = vunpack.c.l.b16 %v59
    %v122 = vunpack.c.l.b16 %v60
    %v123 = vunpack.c.l.b16 %v61
    %v124 = vunpack.c.l.b16 %v62
    %v125 = vunpack.c.l.b16 %v63
    %v126 = vunpack.c.l.b16 %v64
    %v127 = vunpack.c.l.b16 %v65
    %v128 = vunpack.c.l.b16 %v66
    %v129 = vunpack.c.l.b16 %v67
    %v130 = vunpack.c.l.b16 %v68
    %v131 = vunpack.c.l.b16 %v69
    %v132 = vunpack.c.l.b16 %v70
    %v133 = vpack.c.b16 %v106, %v105
    %v134 = vpack.c.b16 %v108, %v107
    %v135 = vpack.c.b16 %v110, %v109
    %v136 = vpack.c.b16 %v112, %v111
    %v137 = vpack.c.b16 %v114, %v113
    %v138 = vpack.c.b16 %v116, %v115
    %v139 = vpack.c.b16 %v118, %v117
    %v140 = vpack.c.b16 %v120, %v119
    %v141 = vpack.c.b16 %v122, %v121
    %v142 = vpack.c.b16 %v124, %v123
    %v143 = vpack.c.b16 %v126, %v125
    %v144 = vpack.c.b16 %v128, %v127
    %v145 = vpack.c.b16 %v130, %v129
    %v146 = vpack.c.b16 %v132, %v131
    %v149 = vunpack.c.l.b16 %v71
    %v150 = vunpack.c.l.b16 %v72
    %v151 = vpack.c.b16 %v150, %v149
    %vm153 = vcmask 130048
    %v155 = vsel %vm153, %v133, 0
    %v158 = vsel %vm153, %v134, 0
    %v161 = vsel %vm153, %v135, 0
    %v164 = vsel %vm153, %v136, 0
    %v167 = vsel %vm153, %v137, 0
    %v170 = vsel %vm153, %v138, 0
    %v173 = vsel %vm153, %v139, 0
    %v176 = vsel %vm153, %v140, 0
    %v179 = vsel %vm153, %v141, 0
    %v182 = vsel %vm153, %v142, 0
    %v185 = vsel %vm153, %v143, 0
    %v188 = vsel %vm153, %v144, 0
    %v191 = vsel %vm153, %v145, 0
    %v194 = vsel %vm153, %v146, 0
    %196 = vmatpush.bf16.msra.mxu0 0
    %197 = vmatpush.bf16.msra.mxu0 0
    %198 = vmatpush.bf16.msra.mxu0 0
    %199 = vmatpush.bf16.msra.mxu0 0
    %200 = vmatpush.bf16.msra.mxu0 0
    %201 = vmatpush.bf16.msra.mxu0 0
    %202 = vmatpush.bf16.msra.mxu0 0
    %203 = vmatpush.bf16.msra.mxu0 %v151
    %204 = vmatmul.bf16.gmra.mxu0 %v155
    %v205 = vpop.f32.mrf.mxu0
    %v206 = vadd.f32 %v75, %v205
    %v207 = vpop.f32.mrf.mxu0
    %v208 = vadd.f32 %v75, %v207
    %209 = vmatmul.bf16.gmra.mxu0 %v158
    %v210 = vpop.f32.mrf.mxu0
    %v211 = vadd.f32 %v75, %v210
    %v212 = vpop.f32.mrf.mxu0
    %v213 = vadd.f32 %v75, %v212
    %214 = vmatmul.bf16.gmra.mxu0 %v161
    %v215 = vpop.f32.mrf.mxu0
    %v216 = vadd.f32 %v75, %v215
    %v217 = vpop.f32.mrf.mxu0
    %v218 = vadd.f32 %v75, %v217
    %219 = vmatmul.bf16.gmra.mxu0 %v164
    %v220 = vpop.f32.mrf.mxu0
    %v221 = vadd.f32 %v75, %v220
    %v222 = vpop.f32.mrf.mxu0
    %v223 = vadd.f32 %v75, %v222
    %224 = vmatmul.bf16.gmra.mxu0 %v167
    %v225 = vpop.f32.mrf.mxu0
    %v226 = vadd.f32 %v75, %v225
    %v227 = vpop.f32.mrf.mxu0
    %v228 = vadd.f32 %v75, %v227
    %229 = vmatmul.bf16.gmra.mxu0 %v170
    %v230 = vpop.f32.mrf.mxu0
    %v231 = vadd.f32 %v75, %v230
    %v232 = vpop.f32.mrf.mxu0
    %v233 = vadd.f32 %v75, %v232
    %234 = vmatmul.bf16.gmra.mxu0 %v173
    %v235 = vpop.f32.mrf.mxu0
    %v236 = vadd.f32 %v75, %v235
    %v237 = vpop.f32.mrf.mxu0
    %v238 = vadd.f32 %v75, %v237
    %239 = vmatmul.bf16.gmra.mxu0 %v176
    %v240 = vpop.f32.mrf.mxu0
    %v241 = vadd.f32 %v75, %v240
    %v242 = vpop.f32.mrf.mxu0
    %v243 = vadd.f32 %v75, %v242
    %244 = vmatmul.bf16.gmra.mxu0 %v179
    %v245 = vpop.f32.mrf.mxu0
    %v246 = vadd.f32 %v75, %v245
    %v247 = vpop.f32.mrf.mxu0
    %v248 = vadd.f32 %v75, %v247
    %249 = vmatmul.bf16.gmra.mxu0 %v182
    %v250 = vpop.f32.mrf.mxu0
    %v251 = vadd.f32 %v75, %v250
    %v252 = vpop.f32.mrf.mxu0
    %v253 = vadd.f32 %v75, %v252
    %254 = vmatmul.bf16.gmra.mxu0 %v185
    %v255 = vpop.f32.mrf.mxu0
    %v256 = vadd.f32 %v75, %v255
    %v257 = vpop.f32.mrf.mxu0
    %v258 = vadd.f32 %v75, %v257
    %259 = vmatmul.bf16.gmra.mxu0 %v188
    %v260 = vpop.f32.mrf.mxu0
    %v261 = vadd.f32 %v75, %v260
    %v262 = vpop.f32.mrf.mxu0
    %v263 = vadd.f32 %v75, %v262
    %264 = vmatmul.bf16.gmra.mxu0 %v191
    %v265 = vpop.f32.mrf.mxu0
    %v266 = vadd.f32 %v75, %v265
    %v267 = vpop.f32.mrf.mxu0
    %v268 = vadd.f32 %v75, %v267
    %269 = vmatmul.bf16.gmra.mxu0 %v194
    %v270 = vpop.f32.mrf.mxu0
    %v271 = vadd.f32 %v75, %v270
    %v272 = vpop.f32.mrf.mxu0
    %v273 = vadd.f32 %v75, %v272
    %274 = vdwg.mxu0
    %275 = vst [vmem:[#allocation2] sm:$0xff] %v206
    %276 = vst [vmem:[#allocation2 + $0x8] sm:$0xff] %v208
    %277 = vst [vmem:[#allocation2 + $0x10] sm:$0xff] %v211
    %278 = vst [vmem:[#allocation2 + $0x18] sm:$0xff] %v213
    %279 = vst [vmem:[#allocation2 + $0x20] sm:$0xff] %v216
    %280 = vst [vmem:[#allocation2 + $0x28] sm:$0xff] %v218
    %281 = vst [vmem:[#allocation2 + $0x30] sm:$0xff] %v221
    %282 = vst [vmem:[#allocation2 + $0x38] sm:$0xff] %v223
    %283 = vst [vmem:[#allocation2 + $0x40] sm:$0xff] %v226
    %284 = vst [vmem:[#allocation2 + $0x48] sm:$0xff] %v228
    %285 = vst [vmem:[#allocation2 + $0x50] sm:$0xff] %v231
    %286 = vst [vmem:[#allocation2 + $0x58] sm:$0xff] %v233
    %287 = vst [vmem:[#allocation2 + $0x60] sm:$0xff] %v236
    %288 = vst [vmem:[#allocation2 + $0x68] sm:$0xff] %v238
    %289 = vst [vmem:[#allocation2 + $0x70] sm:$0xff] %v241
    %290 = vst [vmem:[#allocation2 + $0x78] sm:$0xff] %v243
    %291 = vst [vmem:[#allocation2 + $0x80] sm:$0xff] %v246
    %292 = vst [vmem:[#allocation2 + $0x88] sm:$0xff] %v248
    %293 = vst [vmem:[#allocation2 + $0x90] sm:$0xff] %v251
    %294 = vst [vmem:[#allocation2 + $0x98] sm:$0xff] %v253
    %295 = vst [vmem:[#allocation2 + $0xa0] sm:$0xff] %v256
    %296 = vst [vmem:[#allocation2 + $0xa8] sm:$0xff] %v258
    %297 = vst [vmem:[#allocation2 + $0xb0] sm:$0xff] %v261
    %298 = vst [vmem:[#allocation2 + $0xb8] sm:$0xff] %v263
    %299 = vst [vmem:[#allocation2 + $0xc0] sm:$0xff] %v266
    %300 = vst [vmem:[#allocation2 + $0xc8] sm:$0xff] %v268
    %301 = vst [vmem:[#allocation2 + $0xd0] sm:$0xff] %v271
    %302 = vst [vmem:[#allocation2 + $0xd8] sm:$0xff] %v273
    %v303 = vld [vmem:[%s2] sm:$0xf]
    %v304 = vld [vmem:[%s2 + $0x4] sm:$0xf]
    %v305 = vld [vmem:[%s2 + $0x8] sm:$0xf]
    %v306 = vld [vmem:[%s2 + $0xc] sm:$0xf]
    %v307 = vld [vmem:[%s4] sm:$0x1]
    %v308 = vld [vmem:[#allocation2] sm:$0xff]
    %v313 = vunpack.c.l.b16 %v303
    %v314 = vunpack.c.l.b16 %v304
    %v315 = vunpack.c.l.b16 %v305
    %v316 = vunpack.c.l.b16 %v306
    %v317 = vpack.c.b16 %v314, %v313
    %v318 = vpack.c.b16 %v316, %v315
    %vm321 = vcmask 261120
    %v323 = vsel %vm321, 0, 0
    %325 = vmatpush.bf16.msra.mxu0 0
    %326 = vmatpush.bf16.msra.mxu0 0
    %327 = vmatpush.bf16.msra.mxu0 0
    %328 = vmatpush.bf16.msra.mxu0 0
    %329 = vmatpush.bf16.msra.mxu0 0
    %330 = vmatpush.bf16.msra.mxu0 0
    %331 = vmatpush.bf16.msra.mxu0 %v318
    %332 = vmatpush.bf16.msra.mxu0 %v317
    %333 = vmatmul.bf16.gmra.mxu0 %v323
    %v334 = vpop.f32.mrf.mxu0
    %v335 = vadd.f32 0.0, %v334
    %v336 = vpop.f32.mrf.mxu0
    %337 = vdwg.mxu0
    %v338 = vadd.f32 %v308, %v335
    %v339 = vxor.u32 %v338, 2147483648
    %v340 = vmul.f32 %v339, 1.442695
    %v341 = vpow.pop %v340
    %v342 = vadd.f32 %v341, 1.0
    %v343 = vrcp.pop %v342
    %v344 = vmul.f32 %v342, %v343
    %v345 = vsub.f32 1.0, %v344
    %v346 = vmul.f32 %v343, %v345
    %v347 = vadd.f32 %v343, %v346
    %vm348 = vweird.f32 %v342
    %vm349 = vweird.f32 %v343
    %vm350 = vmor %vm348, %vm349
    %v351 = vsel %vm350, %v343, %v347
    %v352 = vand.u32 2147483647, %v342
    %vm353 = vcmp.eq.f32.partialorder %v352, 8.507059e+37
    %v354 = vand.u32 %v342, 2147483648
    %v355 = vor.u32 1.1754944e-38, %v354
    %v356 = vsel %vm353, %v355, %v351
    %v357 = vmul.f32 1.0, %v356
    %358 = vrot.lane.b32.xlu0 %v357, 64
    %v359 = vpop.permute.xlu0 %358
    %360 = vrot.lane.b32.xlu0 %v357, 32
    %v361 = vpop.permute.xlu0 %360
    %v363 = vperm.slane %v307, 0
    %v365 = vadd.f32 %v335, %v363
    %v366 = vmul.f32 %v359, %v365
    %v367 = vadd.f32 %v308, %v366
    %v368 = vtanh.pop %v367
    %v369 = vsub.f32 1.0, %v361
    %v370 = vmul.f32 %v369, %v368
    %v371 = vmul.f32 %v361, 0.0
    %v372 = vadd.f32 %v370, %v371
    %v373 = vpack.c.bf16 %v372, %v372
    %v374 = vld [vmem:[#allocation3] sm:$0xf]
    %v375 = vld [vmem:[#allocation3 + $0x4] sm:$0xf]
    %v376 = vld [vmem:[#allocation3 + $0x8] sm:$0xf]
    %v377 = vld [vmem:[#allocation3 + $0xc] sm:$0xf]
    %s378 = scalar_lea.vmem [#allocation2], 8
    %v379 = vld [vmem:[%s378] sm:$0xff]
    %v381 = vsel %vm321, %v373, 0
    %383 = vmatpush.bf16.msra.mxu0 0
    %384 = vmatpush.bf16.msra.mxu0 0
    %385 = vmatpush.bf16.msra.mxu0 0
    %386 = vmatpush.bf16.msra.mxu0 0
    %387 = vmatpush.bf16.msra.mxu0 0
    %388 = vmatpush.bf16.msra.mxu0 0
    %389 = vmatpush.bf16.msra.mxu0 %v318
    %390 = vmatpush.bf16.msra.mxu0 %v317
    %391 = vmatmul.bf16.gmra.mxu0 %v381
    %v392 = vpop.f32.mrf.mxu0
    %v393 = vadd.f32 0.0, %v392
    %v394 = vpop.f32.mrf.mxu0
    %395 = vdwg.mxu0
    %v396 = vadd.f32 %v379, %v393
    %v397 = vxor.u32 %v396, 2147483648
    %v398 = vmul.f32 %v397, 1.442695
    %v399 = vpow.pop %v398
    %v400 = vadd.f32 %v399, 1.0
    %v401 = vrcp.pop %v400
    %v402 = vmul.f32 %v400, %v401
    %v403 = vsub.f32 1.0, %v402
    %v404 = vmul.f32 %v401, %v403
    %v405 = vadd.f32 %v401, %v404
    %vm406 = vweird.f32 %v400
    %vm407 = vweird.f32 %v401
    %vm408 = vmor %vm406, %vm407
    %v409 = vsel %vm408, %v401, %v405
    %v410 = vand.u32 2147483647, %v400
    %vm411 = vcmp.eq.f32.partialorder %v410, 8.507059e+37
    %v412 = vand.u32 %v400, 2147483648
    %v413 = vor.u32 1.1754944e-38, %v412
    %v414 = vsel %vm411, %v413, %v409
    %v415 = vmul.f32 1.0, %v414
    %416 = vrot.lane.b32.xlu0 %v415, 64
    %v417 = vpop.permute.xlu0 %416
    %418 = vrot.lane.b32.xlu0 %v415, 32
    %v419 = vpop.permute.xlu0 %418
    %v420 = vadd.f32 %v393, %v363
    %v421 = vmul.f32 %v417, %v420
    %v422 = vadd.f32 %v379, %v421
    %v423 = vtanh.pop %v422
    %v424 = vsub.f32 1.0, %v419
    %v425 = vmul.f32 %v424, %v423
    %v426 = vmul.f32 %v419, %v372
    %v427 = vadd.f32 %v425, %v426
    %v428 = vpack.c.bf16 %v427, %v427
    %s429 = scalar_lea.vmem [#allocation3], 16
    %v430 = vld [vmem:[%s429] sm:$0xf]
    %v431 = vld [vmem:[%s429 + $0x4] sm:$0xf]
    %v432 = vld [vmem:[%s429 + $0x8] sm:$0xf]
    %v433 = vld [vmem:[%s429 + $0xc] sm:$0xf]
    %v438 = vunpack.c.l.b16 %v430
    %v439 = vunpack.c.l.b16 %v431
    %v440 = vunpack.c.l.b16 %v432
    %v441 = vunpack.c.l.b16 %v433
    %v442 = vpack.c.b16 %v439, %v438
    %v443 = vpack.c.b16 %v441, %v440
    %v447 = vsel %vm321, %v428, 0
    %449 = vmatpush.bf16.msra.mxu0 0
    %450 = vmatpush.bf16.msra.mxu0 0
    %451 = vmatpush.bf16.msra.mxu0 0
    %452 = vmatpush.bf16.msra.mxu0 0
    %453 = vmatpush.bf16.msra.mxu0 0
    %454 = vmatpush.bf16.msra.mxu0 0
    %455 = vmatpush.bf16.msra.mxu0 %v443
    %456 = vmatpush.bf16.msra.mxu0 %v442
    %457 = vmatmul.bf16.gmra.mxu0 %v447
    %v458 = vpop.f32.mrf.mxu0
    %v459 = vadd.f32 0.0, %v458
    %v460 = vpop.f32.mrf.mxu0
    %461 = vdwg.mxu0
    %v466 = vunpack.c.l.b16 %v374
    %v467 = vunpack.c.l.b16 %v375
    %v468 = vunpack.c.l.b16 %v376
    %v469 = vunpack.c.l.b16 %v377
    %v470 = vpack.c.b16 %v467, %v466
    %v471 = vpack.c.b16 %v469, %v468
    %474 = vmatpush.bf16.msra.mxu0 0
    %475 = vmatpush.bf16.msra.mxu0 0
    %476 = vmatpush.bf16.msra.mxu0 0
    %477 = vmatpush.bf16.msra.mxu0 0
    %478 = vmatpush.bf16.msra.mxu0 0
    %479 = vmatpush.bf16.msra.mxu0 0
    %480 = vmatpush.bf16.msra.mxu0 %v471
    %481 = vmatpush.bf16.msra.mxu0 %v470
    %482 = vmatmul.bf16.gmra.mxu0 %v381
    %v483 = vpop.f32.mrf.mxu0
    %v484 = vadd.f32 %v459, %v483
    %v485 = vpop.f32.mrf.mxu0
    %486 = vdwg.mxu0
    %s487 = scalar_lea.vmem [#allocation2], 16
    %v488 = vld [vmem:[%s487] sm:$0xff]
    %489 = vmatpush.bf16.msra.mxu0 0
    %490 = vmatpush.bf16.msra.mxu0 0
    %491 = vmatpush.bf16.msra.mxu0 0
    %492 = vmatpush.bf16.msra.mxu0 0
    %493 = vmatpush.bf16.msra.mxu0 0
    %494 = vmatpush.bf16.msra.mxu0 0
    %495 = vmatpush.bf16.msra.mxu0 %v318
    %496 = vmatpush.bf16.msra.mxu0 %v317
    %497 = vmatmul.bf16.gmra.mxu0 %v447
    %v498 = vpop.f32.mrf.mxu0
    %v499 = vadd.f32 0.0, %v498
    %v500 = vpop.f32.mrf.mxu0
    %501 = vdwg.mxu0
    %v502 = vadd.f32 %v488, %v499
    %v503 = vxor.u32 %v502, 2147483648
    %v504 = vmul.f32 %v503, 1.442695
    %v505 = vpow.pop %v504
    %v506 = vadd.f32 %v505, 1.0
    %v507 = vrcp.pop %v506
    %v508 = vmul.f32 %v506, %v507
    %v509 = vsub.f32 1.0, %v508
    %v510 = vmul.f32 %v507, %v509
    %v511 = vadd.f32 %v507, %v510
    %vm512 = vweird.f32 %v506
    %vm513 = vweird.f32 %v507
    %vm514 = vmor %vm512, %vm513
    %v515 = vsel %vm514, %v507, %v511
    %v516 = vand.u32 2147483647, %v506
    %vm517 = vcmp.eq.f32.partialorder %v516, 8.507059e+37
    %v518 = vand.u32 %v506, 2147483648
    %v519 = vor.u32 1.1754944e-38, %v518
    %v520 = vsel %vm517, %v519, %v515
    %v521 = vmul.f32 1.0, %v520
    %522 = vrot.lane.b32.xlu0 %v521, 64
    %v523 = vpop.permute.xlu0 %522
    %524 = vrot.lane.b32.xlu0 %v521, 32
    %v525 = vpop.permute.xlu0 %524
    %v526 = vadd.f32 %v499, %v363
    %v527 = vmul.f32 %v523, %v526
    %v528 = vadd.f32 %v488, %v527
    %v529 = vtanh.pop %v528
    %v530 = vsub.f32 1.0, %v525
    %v531 = vmul.f32 %v530, %v529
    %v532 = vmul.f32 %v525, %v427
    %v533 = vadd.f32 %v531, %v532
    %v534 = vpack.c.bf16 %v533, %v533
    %s535 = scalar_lea.vmem [#allocation3], 32
    %v536 = vld [vmem:[%s535] sm:$0xf]
    %v537 = vld [vmem:[%s535 + $0x4] sm:$0xf]
    %v538 = vld [vmem:[%s535 + $0x8] sm:$0xf]
    %v539 = vld [vmem:[%s535 + $0xc] sm:$0xf]
    %v544 = vunpack.c.l.b16 %v536
    %v545 = vunpack.c.l.b16 %v537
    %v546 = vunpack.c.l.b16 %v538
    %v547 = vunpack.c.l.b16 %v539
    %v548 = vpack.c.b16 %v545, %v544
    %v549 = vpack.c.b16 %v547, %v546
    %v553 = vsel %vm321, %v534, 0
    %555 = vmatpush.bf16.msra.mxu0 0
    %556 = vmatpush.bf16.msra.mxu0 0
    %557 = vmatpush.bf16.msra.mxu0 0
    %558 = vmatpush.bf16.msra.mxu0 0
    %559 = vmatpush.bf16.msra.mxu0 0
    %560 = vmatpush.bf16.msra.mxu0 0
    %561 = vmatpush.bf16.msra.mxu0 %v549
    %562 = vmatpush.bf16.msra.mxu0 %v548
    %563 = vmatmul.bf16.gmra.mxu0 %v553
    %v564 = vpop.f32.mrf.mxu0
    %v565 = vadd.f32 0.0, %v564
    %v566 = vpop.f32.mrf.mxu0
    %567 = vdwg.mxu0
    %v568 = vadd.f32 %v484, %v565
    %s569 = scalar_lea.vmem [#allocation2], 24
    %v570 = vld [vmem:[%s569] sm:$0xff]
    %571 = vmatpush.bf16.msra.mxu0 0
    %572 = vmatpush.bf16.msra.mxu0 0
    %573 = vmatpush.bf16.msra.mxu0 0
    %574 = vmatpush.bf16.msra.mxu0 0
    %575 = vmatpush.bf16.msra.mxu0 0
    %576 = vmatpush.bf16.msra.mxu0 0
    %577 = vmatpush.bf16.msra.mxu0 %v318
    %578 = vmatpush.bf16.msra.mxu0 %v317
    %579 = vmatmul.bf16.gmra.mxu0 %v553
    %v580 = vpop.f32.mrf.mxu0
    %v581 = vadd.f32 0.0, %v580
    %v582 = vpop.f32.mrf.mxu0
    %583 = vdwg.mxu0
    %v584 = vadd.f32 %v570, %v581
    %v585 = vxor.u32 %v584, 2147483648
    %v586 = vmul.f32 %v585, 1.442695
    %v587 = vpow.pop %v586
    %v588 = vadd.f32 %v587, 1.0
    %v589 = vrcp.pop %v588
    %v590 = vmul.f32 %v588, %v589
    %v591 = vsub.f32 1.0, %v590
    %v592 = vmul.f32 %v589, %v591
    %v593 = vadd.f32 %v589, %v592
    %vm594 = vweird.f32 %v588
    %vm595 = vweird.f32 %v589
    %vm596 = vmor %vm594, %vm595
    %v597 = vsel %vm596, %v589, %v593
    %v598 = vand.u32 2147483647, %v588
    %vm599 = vcmp.eq.f32.partialorder %v598, 8.507059e+37
    %v600 = vand.u32 %v588, 2147483648
    %v601 = vor.u32 1.1754944e-38, %v600
    %v602 = vsel %vm599, %v601, %v597
    %v603 = vmul.f32 1.0, %v602
    %604 = vrot.lane.b32.xlu0 %v603, 64
    %v605 = vpop.permute.xlu0 %604
    %606 = vrot.lane.b32.xlu0 %v603, 32
    %v607 = vpop.permute.xlu0 %606
    %v608 = vadd.f32 %v581, %v363
    %v609 = vmul.f32 %v605, %v608
    %v610 = vadd.f32 %v570, %v609
    %v611 = vtanh.pop %v610
    %v612 = vsub.f32 1.0, %v607
    %v613 = vmul.f32 %v612, %v611
    %v614 = vmul.f32 %v607, %v533
    %v615 = vadd.f32 %v613, %v614
    %v616 = vpack.c.bf16 %v615, %v615
    %s617 = scalar_lea.vmem [#allocation3], 48
    %v618 = vld [vmem:[%s617] sm:$0xf]
    %v619 = vld [vmem:[%s617 + $0x4] sm:$0xf]
    %v620 = vld [vmem:[%s617 + $0x8] sm:$0xf]
    %v621 = vld [vmem:[%s617 + $0xc] sm:$0xf]
    %v626 = vunpack.c.l.b16 %v618
    %v627 = vunpack.c.l.b16 %v619
    %v628 = vunpack.c.l.b16 %v620
    %v629 = vunpack.c.l.b16 %v621
    %v630 = vpack.c.b16 %v627, %v626
    %v631 = vpack.c.b16 %v629, %v628
    %v635 = vsel %vm321, %v616, 0
    %637 = vmatpush.bf16.msra.mxu0 0
    %638 = vmatpush.bf16.msra.mxu0 0
    %639 = vmatpush.bf16.msra.mxu0 0
    %640 = vmatpush.bf16.msra.mxu0 0
    %641 = vmatpush.bf16.msra.mxu0 0
    %642 = vmatpush.bf16.msra.mxu0 0
    %643 = vmatpush.bf16.msra.mxu0 %v631
    %644 = vmatpush.bf16.msra.mxu0 %v630
    %645 = vmatmul.bf16.gmra.mxu0 %v635
    %v646 = vpop.f32.mrf.mxu0
    %v647 = vadd.f32 0.0, %v646
    %v648 = vpop.f32.mrf.mxu0
    %649 = vdwg.mxu0
    %v650 = vadd.f32 %v568, %v647
    %s651 = scalar_lea.vmem [#allocation2], 32
    %v652 = vld [vmem:[%s651] sm:$0xff]
    %653 = vmatpush.bf16.msra.mxu0 0
    %654 = vmatpush.bf16.msra.mxu0 0
    %655 = vmatpush.bf16.msra.mxu0 0
    %656 = vmatpush.bf16.msra.mxu0 0
    %657 = vmatpush.bf16.msra.mxu0 0
    %658 = vmatpush.bf16.msra.mxu0 0
    %659 = vmatpush.bf16.msra.mxu0 %v318
    %660 = vmatpush.bf16.msra.mxu0 %v317
    %661 = vmatmul.bf16.gmra.mxu0 %v635
    %v662 = vpop.f32.mrf.mxu0
    %v663 = vadd.f32 0.0, %v662
    %v664 = vpop.f32.mrf.mxu0
    %665 = vdwg.mxu0
    %v666 = vadd.f32 %v652, %v663
    %v667 = vxor.u32 %v666, 2147483648
    %v668 = vmul.f32 %v667, 1.442695
    %v669 = vpow.pop %v668
    %v670 = vadd.f32 %v669, 1.0
    %v671 = vrcp.pop %v670
    %v672 = vmul.f32 %v670, %v671
    %v673 = vsub.f32 1.0, %v672
    %v674 = vmul.f32 %v671, %v673
    %v675 = vadd.f32 %v671, %v674
    %vm676 = vweird.f32 %v670
    %vm677 = vweird.f32 %v671
    %vm678 = vmor %vm676, %vm677
    %v679 = vsel %vm678, %v671, %v675
    %v680 = vand.u32 2147483647, %v670
    %vm681 = vcmp.eq.f32.partialorder %v680, 8.507059e+37
    %v682 = vand.u32 %v670, 2147483648
    %v683 = vor.u32 1.1754944e-38, %v682
    %v684 = vsel %vm681, %v683, %v679
    %v685 = vmul.f32 1.0, %v684
    %686 = vrot.lane.b32.xlu0 %v685, 64
    %v687 = vpop.permute.xlu0 %686
    %688 = vrot.lane.b32.xlu0 %v685, 32
    %v689 = vpop.permute.xlu0 %688
    %v690 = vadd.f32 %v663, %v363
    %v691 = vmul.f32 %v687, %v690
    %v692 = vadd.f32 %v652, %v691
    %v693 = vtanh.pop %v692
    %v694 = vsub.f32 1.0, %v689
    %v695 = vmul.f32 %v694, %v693
    %v696 = vmul.f32 %v689, %v615
    %v697 = vadd.f32 %v695, %v696
    %v698 = vpack.c.bf16 %v697, %v697
    %s699 = scalar_lea.vmem [#allocation3], 64
    %v700 = vld [vmem:[%s699] sm:$0xf]
    %v701 = vld [vmem:[%s699 + $0x4] sm:$0xf]
    %v702 = vld [vmem:[%s699 + $0x8] sm:$0xf]
    %v703 = vld [vmem:[%s699 + $0xc] sm:$0xf]
    %v708 = vunpack.c.l.b16 %v700
    %v709 = vunpack.c.l.b16 %v701
    %v710 = vunpack.c.l.b16 %v702
    %v711 = vunpack.c.l.b16 %v703
    %v712 = vpack.c.b16 %v709, %v708
    %v713 = vpack.c.b16 %v711, %v710
    %v717 = vsel %vm321, %v698, 0
    %719 = vmatpush.bf16.msra.mxu0 0
    %720 = vmatpush.bf16.msra.mxu0 0
    %721 = vmatpush.bf16.msra.mxu0 0
    %722 = vmatpush.bf16.msra.mxu0 0
    %723 = vmatpush.bf16.msra.mxu0 0
    %724 = vmatpush.bf16.msra.mxu0 0
    %725 = vmatpush.bf16.msra.mxu0 %v713
    %726 = vmatpush.bf16.msra.mxu0 %v712
    %727 = vmatmul.bf16.gmra.mxu0 %v717
    %v728 = vpop.f32.mrf.mxu0
    %v729 = vadd.f32 0.0, %v728
    %v730 = vpop.f32.mrf.mxu0
    %731 = vdwg.mxu0
    %v732 = vadd.f32 %v650, %v729
    %s733 = scalar_lea.vmem [#allocation2], 40
    %v734 = vld [vmem:[%s733] sm:$0xff]
    %735 = vmatpush.bf16.msra.mxu0 0
    %736 = vmatpush.bf16.msra.mxu0 0
    %737 = vmatpush.bf16.msra.mxu0 0
    %738 = vmatpush.bf16.msra.mxu0 0
    %739 = vmatpush.bf16.msra.mxu0 0
    %740 = vmatpush.bf16.msra.mxu0 0
    %741 = vmatpush.bf16.msra.mxu0 %v318
    %742 = vmatpush.bf16.msra.mxu0 %v317
    %743 = vmatmul.bf16.gmra.mxu0 %v717
    %v744 = vpop.f32.mrf.mxu0
    %v745 = vadd.f32 0.0, %v744
    %v746 = vpop.f32.mrf.mxu0
    %747 = vdwg.mxu0
    %v748 = vadd.f32 %v734, %v745
    %v749 = vxor.u32 %v748, 2147483648
    %v750 = vmul.f32 %v749, 1.442695
    %v751 = vpow.pop %v750
    %v752 = vadd.f32 %v751, 1.0
    %v753 = vrcp.pop %v752
    %v754 = vmul.f32 %v752, %v753
    %v755 = vsub.f32 1.0, %v754
    %v756 = vmul.f32 %v753, %v755
    %v757 = vadd.f32 %v753, %v756
    %vm758 = vweird.f32 %v752
    %vm759 = vweird.f32 %v753
    %vm760 = vmor %vm758, %vm759
    %v761 = vsel %vm760, %v753, %v757
    %v762 = vand.u32 2147483647, %v752
    %vm763 = vcmp.eq.f32.partialorder %v762, 8.507059e+37
    %v764 = vand.u32 %v752, 2147483648
    %v765 = vor.u32 1.1754944e-38, %v764
    %v766 = vsel %vm763, %v765, %v761
    %v767 = vmul.f32 1.0, %v766
    %768 = vrot.lane.b32.xlu0 %v767, 64
    %v769 = vpop.permute.xlu0 %768
    %770 = vrot.lane.b32.xlu0 %v767, 32
    %v771 = vpop.permute.xlu0 %770
    %v772 = vadd.f32 %v745, %v363
    %v773 = vmul.f32 %v769, %v772
    %v774 = vadd.f32 %v734, %v773
    %v775 = vtanh.pop %v774
    %v776 = vsub.f32 1.0, %v771
    %v777 = vmul.f32 %v776, %v775
    %v778 = vmul.f32 %v771, %v697
    %v779 = vadd.f32 %v777, %v778
    %v780 = vpack.c.bf16 %v779, %v779
    %s781 = scalar_lea.vmem [#allocation3], 80
    %v782 = vld [vmem:[%s781] sm:$0xf]
    %v783 = vld [vmem:[%s781 + $0x4] sm:$0xf]
    %v784 = vld [vmem:[%s781 + $0x8] sm:$0xf]
    %v785 = vld [vmem:[%s781 + $0xc] sm:$0xf]
    %v790 = vunpack.c.l.b16 %v782
    %v791 = vunpack.c.l.b16 %v783
    %v792 = vunpack.c.l.b16 %v784
    %v793 = vunpack.c.l.b16 %v785
    %v794 = vpack.c.b16 %v791, %v790
    %v795 = vpack.c.b16 %v793, %v792
    %v799 = vsel %vm321, %v780, 0
    %801 = vmatpush.bf16.msra.mxu0 0
    %802 = vmatpush.bf16.msra.mxu0 0
    %803 = vmatpush.bf16.msra.mxu0 0
    %804 = vmatpush.bf16.msra.mxu0 0
    %805 = vmatpush.bf16.msra.mxu0 0
    %806 = vmatpush.bf16.msra.mxu0 0
    %807 = vmatpush.bf16.msra.mxu0 %v795
    %808 = vmatpush.bf16.msra.mxu0 %v794
    %809 = vmatmul.bf16.gmra.mxu0 %v799
    %v810 = vpop.f32.mrf.mxu0
    %v811 = vadd.f32 0.0, %v810
    %v812 = vpop.f32.mrf.mxu0
    %813 = vdwg.mxu0
    %v814 = vadd.f32 %v732, %v811
    %s815 = scalar_lea.vmem [#allocation2], 48
    %v816 = vld [vmem:[%s815] sm:$0xff]
    %817 = vmatpush.bf16.msra.mxu0 0
    %818 = vmatpush.bf16.msra.mxu0 0
    %819 = vmatpush.bf16.msra.mxu0 0
    %820 = vmatpush.bf16.msra.mxu0 0
    %821 = vmatpush.bf16.msra.mxu0 0
    %822 = vmatpush.bf16.msra.mxu0 0
    %823 = vmatpush.bf16.msra.mxu0 %v318
    %824 = vmatpush.bf16.msra.mxu0 %v317
    %825 = vmatmul.bf16.gmra.mxu0 %v799
    %v826 = vpop.f32.mrf.mxu0
    %v827 = vadd.f32 0.0, %v826
    %v828 = vpop.f32.mrf.mxu0
    %829 = vdwg.mxu0
    %v830 = vadd.f32 %v816, %v827
    %v831 = vxor.u32 %v830, 2147483648
    %v832 = vmul.f32 %v831, 1.442695
    %v833 = vpow.pop %v832
    %v834 = vadd.f32 %v833, 1.0
    %v835 = vrcp.pop %v834
    %v836 = vmul.f32 %v834, %v835
    %v837 = vsub.f32 1.0, %v836
    %v838 = vmul.f32 %v835, %v837
    %v839 = vadd.f32 %v835, %v838
    %vm840 = vweird.f32 %v834
    %vm841 = vweird.f32 %v835
    %vm842 = vmor %vm840, %vm841
    %v843 = vsel %vm842, %v835, %v839
    %v844 = vand.u32 2147483647, %v834
    %vm845 = vcmp.eq.f32.partialorder %v844, 8.507059e+37
    %v846 = vand.u32 %v834, 2147483648
    %v847 = vor.u32 1.1754944e-38, %v846
    %v848 = vsel %vm845, %v847, %v843
    %v849 = vmul.f32 1.0, %v848
    %850 = vrot.lane.b32.xlu0 %v849, 64
    %v851 = vpop.permute.xlu0 %850
    %852 = vrot.lane.b32.xlu0 %v849, 32
    %v853 = vpop.permute.xlu0 %852
    %v854 = vadd.f32 %v827, %v363
    %v855 = vmul.f32 %v851, %v854
    %v856 = vadd.f32 %v816, %v855
    %v857 = vtanh.pop %v856
    %v858 = vsub.f32 1.0, %v853
    %v859 = vmul.f32 %v858, %v857
    %v860 = vmul.f32 %v853, %v779
    %v861 = vadd.f32 %v859, %v860
    %v862 = vpack.c.bf16 %v861, %v861
    %s863 = scalar_lea.vmem [#allocation3], 96
    %v864 = vld [vmem:[%s863] sm:$0xf]
    %v865 = vld [vmem:[%s863 + $0x4] sm:$0xf]
    %v866 = vld [vmem:[%s863 + $0x8] sm:$0xf]
    %v867 = vld [vmem:[%s863 + $0xc] sm:$0xf]
    %v872 = vunpack.c.l.b16 %v864
    %v873 = vunpack.c.l.b16 %v865
    %v874 = vunpack.c.l.b16 %v866
    %v875 = vunpack.c.l.b16 %v867
    %v876 = vpack.c.b16 %v873, %v872
    %v877 = vpack.c.b16 %v875, %v874
    %v881 = vsel %vm321, %v862, 0
    %883 = vmatpush.bf16.msra.mxu0 0
    %884 = vmatpush.bf16.msra.mxu0 0
    %885 = vmatpush.bf16.msra.mxu0 0
    %886 = vmatpush.bf16.msra.mxu0 0
    %887 = vmatpush.bf16.msra.mxu0 0
    %888 = vmatpush.bf16.msra.mxu0 0
    %889 = vmatpush.bf16.msra.mxu0 %v877
    %890 = vmatpush.bf16.msra.mxu0 %v876
    %891 = vmatmul.bf16.gmra.mxu0 %v881
    %v892 = vpop.f32.mrf.mxu0
    %v893 = vadd.f32 0.0, %v892
    %v894 = vpop.f32.mrf.mxu0
    %895 = vdwg.mxu0
    %v896 = vadd.f32 %v814, %v893
    %s897 = scalar_lea.vmem [#allocation2], 56
    %v898 = vld [vmem:[%s897] sm:$0xff]
    %899 = vmatpush.bf16.msra.mxu0 0
    %900 = vmatpush.bf16.msra.mxu0 0
    %901 = vmatpush.bf16.msra.mxu0 0
    %902 = vmatpush.bf16.msra.mxu0 0
    %903 = vmatpush.bf16.msra.mxu0 0
    %904 = vmatpush.bf16.msra.mxu0 0
    %905 = vmatpush.bf16.msra.mxu0 %v318
    %906 = vmatpush.bf16.msra.mxu0 %v317
    %907 = vmatmul.bf16.gmra.mxu0 %v881
    %v908 = vpop.f32.mrf.mxu0
    %v909 = vadd.f32 0.0, %v908
    %v910 = vpop.f32.mrf.mxu0
    %911 = vdwg.mxu0
    %v912 = vadd.f32 %v898, %v909
    %v913 = vxor.u32 %v912, 2147483648
    %v914 = vmul.f32 %v913, 1.442695
    %v915 = vpow.pop %v914
    %v916 = vadd.f32 %v915, 1.0
    %v917 = vrcp.pop %v916
    %v918 = vmul.f32 %v916, %v917
    %v919 = vsub.f32 1.0, %v918
    %v920 = vmul.f32 %v917, %v919
    %v921 = vadd.f32 %v917, %v920
    %vm922 = vweird.f32 %v916
    %vm923 = vweird.f32 %v917
    %vm924 = vmor %vm922, %vm923
    %v925 = vsel %vm924, %v917, %v921
    %v926 = vand.u32 2147483647, %v916
    %vm927 = vcmp.eq.f32.partialorder %v926, 8.507059e+37
    %v928 = vand.u32 %v916, 2147483648
    %v929 = vor.u32 1.1754944e-38, %v928
    %v930 = vsel %vm927, %v929, %v925
    %v931 = vmul.f32 1.0, %v930
    %932 = vrot.lane.b32.xlu0 %v931, 64
    %v933 = vpop.permute.xlu0 %932
    %934 = vrot.lane.b32.xlu0 %v931, 32
    %v935 = vpop.permute.xlu0 %934
    %v936 = vadd.f32 %v909, %v363
    %v937 = vmul.f32 %v933, %v936
    %v938 = vadd.f32 %v898, %v937
    %v939 = vtanh.pop %v938
    %v940 = vsub.f32 1.0, %v935
    %v941 = vmul.f32 %v940, %v939
    %v942 = vmul.f32 %v935, %v861
    %v943 = vadd.f32 %v941, %v942
    %v944 = vpack.c.bf16 %v943, %v943
    %s945 = scalar_lea.vmem [#allocation3], 112
    %v946 = vld [vmem:[%s945] sm:$0xf]
    %v947 = vld [vmem:[%s945 + $0x4] sm:$0xf]
    %v948 = vld [vmem:[%s945 + $0x8] sm:$0xf]
    %v949 = vld [vmem:[%s945 + $0xc] sm:$0xf]
    %v954 = vunpack.c.l.b16 %v946
    %v955 = vunpack.c.l.b16 %v947
    %v956 = vunpack.c.l.b16 %v948
    %v957 = vunpack.c.l.b16 %v949
    %v958 = vpack.c.b16 %v955, %v954
    %v959 = vpack.c.b16 %v957, %v956
    %v963 = vsel %vm321, %v944, 0
    %965 = vmatpush.bf16.msra.mxu0 0
    %966 = vmatpush.bf16.msra.mxu0 0
    %967 = vmatpush.bf16.msra.mxu0 0
    %968 = vmatpush.bf16.msra.mxu0 0
    %969 = vmatpush.bf16.msra.mxu0 0
    %970 = vmatpush.bf16.msra.mxu0 0
    %971 = vmatpush.bf16.msra.mxu0 %v959
    %972 = vmatpush.bf16.msra.mxu0 %v958
    %973 = vmatmul.bf16.gmra.mxu0 %v963
    %v974 = vpop.f32.mrf.mxu0
    %v975 = vadd.f32 0.0, %v974
    %v976 = vpop.f32.mrf.mxu0
    %977 = vdwg.mxu0
    %v978 = vadd.f32 %v896, %v975
    %s979 = scalar_lea.vmem [#allocation2], 64
    %v980 = vld [vmem:[%s979] sm:$0xff]
    %981 = vmatpush.bf16.msra.mxu0 0
    %982 = vmatpush.bf16.msra.mxu0 0
    %983 = vmatpush.bf16.msra.mxu0 0
    %984 = vmatpush.bf16.msra.mxu0 0
    %985 = vmatpush.bf16.msra.mxu0 0
    %986 = vmatpush.bf16.msra.mxu0 0
    %987 = vmatpush.bf16.msra.mxu0 %v318
    %988 = vmatpush.bf16.msra.mxu0 %v317
    %989 = vmatmul.bf16.gmra.mxu0 %v963
    %v990 = vpop.f32.mrf.mxu0
    %v991 = vadd.f32 0.0, %v990
    %v992 = vpop.f32.mrf.mxu0
    %993 = vdwg.mxu0
    %v994 = vadd.f32 %v980, %v991
    %v995 = vxor.u32 %v994, 2147483648
    %v996 = vmul.f32 %v995, 1.442695
    %v997 = vpow.pop %v996
    %v998 = vadd.f32 %v997, 1.0
    %v999 = vrcp.pop %v998
    %v1000 = vmul.f32 %v998, %v999
    %v1001 = vsub.f32 1.0, %v1000
    %v1002 = vmul.f32 %v999, %v1001
    %v1003 = vadd.f32 %v999, %v1002
    %vm1004 = vweird.f32 %v998
    %vm1005 = vweird.f32 %v999
    %vm1006 = vmor %vm1004, %vm1005
    %v1007 = vsel %vm1006, %v999, %v1003
    %v1008 = vand.u32 2147483647, %v998
    %vm1009 = vcmp.eq.f32.partialorder %v1008, 8.507059e+37
    %v1010 = vand.u32 %v998, 2147483648
    %v1011 = vor.u32 1.1754944e-38, %v1010
    %v1012 = vsel %vm1009, %v1011, %v1007
    %v1013 = vmul.f32 1.0, %v1012
    %1014 = vrot.lane.b32.xlu0 %v1013, 64
    %v1015 = vpop.permute.xlu0 %1014
    %1016 = vrot.lane.b32.xlu0 %v1013, 32
    %v1017 = vpop.permute.xlu0 %1016
    %v1018 = vadd.f32 %v991, %v363
    %v1019 = vmul.f32 %v1015, %v1018
    %v1020 = vadd.f32 %v980, %v1019
    %v1021 = vtanh.pop %v1020
    %v1022 = vsub.f32 1.0, %v1017
    %v1023 = vmul.f32 %v1022, %v1021
    %v1024 = vmul.f32 %v1017, %v943
    %v1025 = vadd.f32 %v1023, %v1024
    %v1026 = vpack.c.bf16 %v1025, %v1025
    %s1027 = scalar_lea.vmem [#allocation3], 128
    %v1028 = vld [vmem:[%s1027] sm:$0xf]
    %v1029 = vld [vmem:[%s1027 + $0x4] sm:$0xf]
    %v1030 = vld [vmem:[%s1027 + $0x8] sm:$0xf]
    %v1031 = vld [vmem:[%s1027 + $0xc] sm:$0xf]
    %v1036 = vunpack.c.l.b16 %v1028
    %v1037 = vunpack.c.l.b16 %v1029
    %v1038 = vunpack.c.l.b16 %v1030
    %v1039 = vunpack.c.l.b16 %v1031
    %v1040 = vpack.c.b16 %v1037, %v1036
    %v1041 = vpack.c.b16 %v1039, %v1038
    %v1045 = vsel %vm321, %v1026, 0
    %1047 = vmatpush.bf16.msra.mxu0 0
    %1048 = vmatpush.bf16.msra.mxu0 0
    %1049 = vmatpush.bf16.msra.mxu0 0
    %1050 = vmatpush.bf16.msra.mxu0 0
    %1051 = vmatpush.bf16.msra.mxu0 0
    %1052 = vmatpush.bf16.msra.mxu0 0
    %1053 = vmatpush.bf16.msra.mxu0 %v1041
    %1054 = vmatpush.bf16.msra.mxu0 %v1040
    %1055 = vmatmul.bf16.gmra.mxu0 %v1045
    %v1056 = vpop.f32.mrf.mxu0
    %v1057 = vadd.f32 0.0, %v1056
    %v1058 = vpop.f32.mrf.mxu0
    %1059 = vdwg.mxu0
    %v1060 = vadd.f32 %v978, %v1057
    %s1061 = scalar_lea.vmem [#allocation2], 72
    %v1062 = vld [vmem:[%s1061] sm:$0xff]
    %1063 = vmatpush.bf16.msra.mxu0 0
    %1064 = vmatpush.bf16.msra.mxu0 0
    %1065 = vmatpush.bf16.msra.mxu0 0
    %1066 = vmatpush.bf16.msra.mxu0 0
    %1067 = vmatpush.bf16.msra.mxu0 0
    %1068 = vmatpush.bf16.msra.mxu0 0
    %1069 = vmatpush.bf16.msra.mxu0 %v318
    %1070 = vmatpush.bf16.msra.mxu0 %v317
    %1071 = vmatmul.bf16.gmra.mxu0 %v1045
    %v1072 = vpop.f32.mrf.mxu0
    %v1073 = vadd.f32 0.0, %v1072
    %v1074 = vpop.f32.mrf.mxu0
    %1075 = vdwg.mxu0
    %v1076 = vadd.f32 %v1062, %v1073
    %v1077 = vxor.u32 %v1076, 2147483648
    %v1078 = vmul.f32 %v1077, 1.442695
    %v1079 = vpow.pop %v1078
    %v1080 = vadd.f32 %v1079, 1.0
    %v1081 = vrcp.pop %v1080
    %v1082 = vmul.f32 %v1080, %v1081
    %v1083 = vsub.f32 1.0, %v1082
    %v1084 = vmul.f32 %v1081, %v1083
    %v1085 = vadd.f32 %v1081, %v1084
    %vm1086 = vweird.f32 %v1080
    %vm1087 = vweird.f32 %v1081
    %vm1088 = vmor %vm1086, %vm1087
    %v1089 = vsel %vm1088, %v1081, %v1085
    %v1090 = vand.u32 2147483647, %v1080
    %vm1091 = vcmp.eq.f32.partialorder %v1090, 8.507059e+37
    %v1092 = vand.u32 %v1080, 2147483648
    %v1093 = vor.u32 1.1754944e-38, %v1092
    %v1094 = vsel %vm1091, %v1093, %v1089
    %v1095 = vmul.f32 1.0, %v1094
    %1096 = vrot.lane.b32.xlu0 %v1095, 64
    %v1097 = vpop.permute.xlu0 %1096
    %1098 = vrot.lane.b32.xlu0 %v1095, 32
    %v1099 = vpop.permute.xlu0 %1098
    %v1100 = vadd.f32 %v1073, %v363
    %v1101 = vmul.f32 %v1097, %v1100
    %v1102 = vadd.f32 %v1062, %v1101
    %v1103 = vtanh.pop %v1102
    %v1104 = vsub.f32 1.0, %v1099
    %v1105 = vmul.f32 %v1104, %v1103
    %v1106 = vmul.f32 %v1099, %v1025
    %v1107 = vadd.f32 %v1105, %v1106
    %v1108 = vpack.c.bf16 %v1107, %v1107
    %s1109 = scalar_lea.vmem [#allocation3], 144
    %v1110 = vld [vmem:[%s1109] sm:$0xf]
    %v1111 = vld [vmem:[%s1109 + $0x4] sm:$0xf]
    %v1112 = vld [vmem:[%s1109 + $0x8] sm:$0xf]
    %v1113 = vld [vmem:[%s1109 + $0xc] sm:$0xf]
    %v1118 = vunpack.c.l.b16 %v1110
    %v1119 = vunpack.c.l.b16 %v1111
    %v1120 = vunpack.c.l.b16 %v1112
    %v1121 = vunpack.c.l.b16 %v1113
    %v1122 = vpack.c.b16 %v1119, %v1118
    %v1123 = vpack.c.b16 %v1121, %v1120
    %v1127 = vsel %vm321, %v1108, 0
    %1129 = vmatpush.bf16.msra.mxu0 0
    %1130 = vmatpush.bf16.msra.mxu0 0
    %1131 = vmatpush.bf16.msra.mxu0 0
    %1132 = vmatpush.bf16.msra.mxu0 0
    %1133 = vmatpush.bf16.msra.mxu0 0
    %1134 = vmatpush.bf16.msra.mxu0 0
    %1135 = vmatpush.bf16.msra.mxu0 %v1123
    %1136 = vmatpush.bf16.msra.mxu0 %v1122
    %1137 = vmatmul.bf16.gmra.mxu0 %v1127
    %v1138 = vpop.f32.mrf.mxu0
    %v1139 = vadd.f32 0.0, %v1138
    %v1140 = vpop.f32.mrf.mxu0
    %1141 = vdwg.mxu0
    %v1142 = vadd.f32 %v1060, %v1139
    %s1143 = scalar_lea.vmem [#allocation2], 80
    %v1144 = vld [vmem:[%s1143] sm:$0xff]
    %1145 = vmatpush.bf16.msra.mxu0 0
    %1146 = vmatpush.bf16.msra.mxu0 0
    %1147 = vmatpush.bf16.msra.mxu0 0
    %1148 = vmatpush.bf16.msra.mxu0 0
    %1149 = vmatpush.bf16.msra.mxu0 0
    %1150 = vmatpush.bf16.msra.mxu0 0
    %1151 = vmatpush.bf16.msra.mxu0 %v318
    %1152 = vmatpush.bf16.msra.mxu0 %v317
    %1153 = vmatmul.bf16.gmra.mxu0 %v1127
    %v1154 = vpop.f32.mrf.mxu0
    %v1155 = vadd.f32 0.0, %v1154
    %v1156 = vpop.f32.mrf.mxu0
    %1157 = vdwg.mxu0
    %v1158 = vadd.f32 %v1144, %v1155
    %v1159 = vxor.u32 %v1158, 2147483648
    %v1160 = vmul.f32 %v1159, 1.442695
    %v1161 = vpow.pop %v1160
    %v1162 = vadd.f32 %v1161, 1.0
    %v1163 = vrcp.pop %v1162
    %v1164 = vmul.f32 %v1162, %v1163
    %v1165 = vsub.f32 1.0, %v1164
    %v1166 = vmul.f32 %v1163, %v1165
    %v1167 = vadd.f32 %v1163, %v1166
    %vm1168 = vweird.f32 %v1162
    %vm1169 = vweird.f32 %v1163
    %vm1170 = vmor %vm1168, %vm1169
    %v1171 = vsel %vm1170, %v1163, %v1167
    %v1172 = vand.u32 2147483647, %v1162
    %vm1173 = vcmp.eq.f32.partialorder %v1172, 8.507059e+37
    %v1174 = vand.u32 %v1162, 2147483648
    %v1175 = vor.u32 1.1754944e-38, %v1174
    %v1176 = vsel %vm1173, %v1175, %v1171
    %v1177 = vmul.f32 1.0, %v1176
    %1178 = vrot.lane.b32.xlu0 %v1177, 64
    %v1179 = vpop.permute.xlu0 %1178
    %1180 = vrot.lane.b32.xlu0 %v1177, 32
    %v1181 = vpop.permute.xlu0 %1180
    %v1182 = vadd.f32 %v1155, %v363
    %v1183 = vmul.f32 %v1179, %v1182
    %v1184 = vadd.f32 %v1144, %v1183
    %v1185 = vtanh.pop %v1184
    %v1186 = vsub.f32 1.0, %v1181
    %v1187 = vmul.f32 %v1186, %v1185
    %v1188 = vmul.f32 %v1181, %v1107
    %v1189 = vadd.f32 %v1187, %v1188
    %v1190 = vpack.c.bf16 %v1189, %v1189
    %s1191 = scalar_lea.vmem [#allocation3], 160
    %v1192 = vld [vmem:[%s1191] sm:$0xf]
    %v1193 = vld [vmem:[%s1191 + $0x4] sm:$0xf]
    %v1194 = vld [vmem:[%s1191 + $0x8] sm:$0xf]
    %v1195 = vld [vmem:[%s1191 + $0xc] sm:$0xf]
    %v1200 = vunpack.c.l.b16 %v1192
    %v1201 = vunpack.c.l.b16 %v1193
    %v1202 = vunpack.c.l.b16 %v1194
    %v1203 = vunpack.c.l.b16 %v1195
    %v1204 = vpack.c.b16 %v1201, %v1200
    %v1205 = vpack.c.b16 %v1203, %v1202
    %v1209 = vsel %vm321, %v1190, 0
    %1211 = vmatpush.bf16.msra.mxu0 0
    %1212 = vmatpush.bf16.msra.mxu0 0
    %1213 = vmatpush.bf16.msra.mxu0 0
    %1214 = vmatpush.bf16.msra.mxu0 0
    %1215 = vmatpush.bf16.msra.mxu0 0
    %1216 = vmatpush.bf16.msra.mxu0 0
    %1217 = vmatpush.bf16.msra.mxu0 %v1205
    %1218 = vmatpush.bf16.msra.mxu0 %v1204
    %1219 = vmatmul.bf16.gmra.mxu0 %v1209
    %v1220 = vpop.f32.mrf.mxu0
    %v1221 = vadd.f32 0.0, %v1220
    %v1222 = vpop.f32.mrf.mxu0
    %1223 = vdwg.mxu0
    %v1224 = vadd.f32 %v1142, %v1221
    %s1225 = scalar_lea.vmem [#allocation2], 88
    %v1226 = vld [vmem:[%s1225] sm:$0xff]
    %1227 = vmatpush.bf16.msra.mxu0 0
    %1228 = vmatpush.bf16.msra.mxu0 0
    %1229 = vmatpush.bf16.msra.mxu0 0
    %1230 = vmatpush.bf16.msra.mxu0 0
    %1231 = vmatpush.bf16.msra.mxu0 0
    %1232 = vmatpush.bf16.msra.mxu0 0
    %1233 = vmatpush.bf16.msra.mxu0 %v318
    %1234 = vmatpush.bf16.msra.mxu0 %v317
    %1235 = vmatmul.bf16.gmra.mxu0 %v1209
    %v1236 = vpop.f32.mrf.mxu0
    %v1237 = vadd.f32 0.0, %v1236
    %v1238 = vpop.f32.mrf.mxu0
    %1239 = vdwg.mxu0
    %v1240 = vadd.f32 %v1226, %v1237
    %v1241 = vxor.u32 %v1240, 2147483648
    %v1242 = vmul.f32 %v1241, 1.442695
    %v1243 = vpow.pop %v1242
    %v1244 = vadd.f32 %v1243, 1.0
    %v1245 = vrcp.pop %v1244
    %v1246 = vmul.f32 %v1244, %v1245
    %v1247 = vsub.f32 1.0, %v1246
    %v1248 = vmul.f32 %v1245, %v1247
    %v1249 = vadd.f32 %v1245, %v1248
    %vm1250 = vweird.f32 %v1244
    %vm1251 = vweird.f32 %v1245
    %vm1252 = vmor %vm1250, %vm1251
    %v1253 = vsel %vm1252, %v1245, %v1249
    %v1254 = vand.u32 2147483647, %v1244
    %vm1255 = vcmp.eq.f32.partialorder %v1254, 8.507059e+37
    %v1256 = vand.u32 %v1244, 2147483648
    %v1257 = vor.u32 1.1754944e-38, %v1256
    %v1258 = vsel %vm1255, %v1257, %v1253
    %v1259 = vmul.f32 1.0, %v1258
    %1260 = vrot.lane.b32.xlu0 %v1259, 64
    %v1261 = vpop.permute.xlu0 %1260
    %1262 = vrot.lane.b32.xlu0 %v1259, 32
    %v1263 = vpop.permute.xlu0 %1262
    %v1264 = vadd.f32 %v1237, %v363
    %v1265 = vmul.f32 %v1261, %v1264
    %v1266 = vadd.f32 %v1226, %v1265
    %v1267 = vtanh.pop %v1266
    %v1268 = vsub.f32 1.0, %v1263
    %v1269 = vmul.f32 %v1268, %v1267
    %v1270 = vmul.f32 %v1263, %v1189
    %v1271 = vadd.f32 %v1269, %v1270
    %v1272 = vpack.c.bf16 %v1271, %v1271
    %s1273 = scalar_lea.vmem [#allocation3], 176
    %v1274 = vld [vmem:[%s1273] sm:$0xf]
    %v1275 = vld [vmem:[%s1273 + $0x4] sm:$0xf]
    %v1276 = vld [vmem:[%s1273 + $0x8] sm:$0xf]
    %v1277 = vld [vmem:[%s1273 + $0xc] sm:$0xf]
    %v1282 = vunpack.c.l.b16 %v1274
    %v1283 = vunpack.c.l.b16 %v1275
    %v1284 = vunpack.c.l.b16 %v1276
    %v1285 = vunpack.c.l.b16 %v1277
    %v1286 = vpack.c.b16 %v1283, %v1282
    %v1287 = vpack.c.b16 %v1285, %v1284
    %v1291 = vsel %vm321, %v1272, 0
    %1293 = vmatpush.bf16.msra.mxu0 0
    %1294 = vmatpush.bf16.msra.mxu0 0
    %1295 = vmatpush.bf16.msra.mxu0 0
    %1296 = vmatpush.bf16.msra.mxu0 0
    %1297 = vmatpush.bf16.msra.mxu0 0
    %1298 = vmatpush.bf16.msra.mxu0 0
    %1299 = vmatpush.bf16.msra.mxu0 %v1287
    %1300 = vmatpush.bf16.msra.mxu0 %v1286
    %1301 = vmatmul.bf16.gmra.mxu0 %v1291
    %v1302 = vpop.f32.mrf.mxu0
    %v1303 = vadd.f32 0.0, %v1302
    %v1304 = vpop.f32.mrf.mxu0
    %1305 = vdwg.mxu0
    %v1306 = vadd.f32 %v1224, %v1303
    %s1307 = scalar_lea.vmem [#allocation2], 96
    %v1308 = vld [vmem:[%s1307] sm:$0xff]
    %1309 = vmatpush.bf16.msra.mxu0 0
    %1310 = vmatpush.bf16.msra.mxu0 0
    %1311 = vmatpush.bf16.msra.mxu0 0
    %1312 = vmatpush.bf16.msra.mxu0 0
    %1313 = vmatpush.bf16.msra.mxu0 0
    %1314 = vmatpush.bf16.msra.mxu0 0
    %1315 = vmatpush.bf16.msra.mxu0 %v318
    %1316 = vmatpush.bf16.msra.mxu0 %v317
    %1317 = vmatmul.bf16.gmra.mxu0 %v1291
    %v1318 = vpop.f32.mrf.mxu0
    %v1319 = vadd.f32 0.0, %v1318
    %v1320 = vpop.f32.mrf.mxu0
    %1321 = vdwg.mxu0
    %v1322 = vadd.f32 %v1308, %v1319
    %v1323 = vxor.u32 %v1322, 2147483648
    %v1324 = vmul.f32 %v1323, 1.442695
    %v1325 = vpow.pop %v1324
    %v1326 = vadd.f32 %v1325, 1.0
    %v1327 = vrcp.pop %v1326
    %v1328 = vmul.f32 %v1326, %v1327
    %v1329 = vsub.f32 1.0, %v1328
    %v1330 = vmul.f32 %v1327, %v1329
    %v1331 = vadd.f32 %v1327, %v1330
    %vm1332 = vweird.f32 %v1326
    %vm1333 = vweird.f32 %v1327
    %vm1334 = vmor %vm1332, %vm1333
    %v1335 = vsel %vm1334, %v1327, %v1331
    %v1336 = vand.u32 2147483647, %v1326
    %vm1337 = vcmp.eq.f32.partialorder %v1336, 8.507059e+37
    %v1338 = vand.u32 %v1326, 2147483648
    %v1339 = vor.u32 1.1754944e-38, %v1338
    %v1340 = vsel %vm1337, %v1339, %v1335
    %v1341 = vmul.f32 1.0, %v1340
    %1342 = vrot.lane.b32.xlu0 %v1341, 64
    %v1343 = vpop.permute.xlu0 %1342
    %1344 = vrot.lane.b32.xlu0 %v1341, 32
    %v1345 = vpop.permute.xlu0 %1344
    %v1346 = vadd.f32 %v1319, %v363
    %v1347 = vmul.f32 %v1343, %v1346
    %v1348 = vadd.f32 %v1308, %v1347
    %v1349 = vtanh.pop %v1348
    %v1350 = vsub.f32 1.0, %v1345
    %v1351 = vmul.f32 %v1350, %v1349
    %v1352 = vmul.f32 %v1345, %v1271
    %v1353 = vadd.f32 %v1351, %v1352
    %v1354 = vpack.c.bf16 %v1353, %v1353
    %s1355 = scalar_lea.vmem [#allocation3], 192
    %v1356 = vld [vmem:[%s1355] sm:$0xf]
    %v1357 = vld [vmem:[%s1355 + $0x4] sm:$0xf]
    %v1358 = vld [vmem:[%s1355 + $0x8] sm:$0xf]
    %v1359 = vld [vmem:[%s1355 + $0xc] sm:$0xf]
    %v1364 = vunpack.c.l.b16 %v1356
    %v1365 = vunpack.c.l.b16 %v1357
    %v1366 = vunpack.c.l.b16 %v1358
    %v1367 = vunpack.c.l.b16 %v1359
    %v1368 = vpack.c.b16 %v1365, %v1364
    %v1369 = vpack.c.b16 %v1367, %v1366
    %v1373 = vsel %vm321, %v1354, 0
    %1375 = vmatpush.bf16.msra.mxu0 0
    %1376 = vmatpush.bf16.msra.mxu0 0
    %1377 = vmatpush.bf16.msra.mxu0 0
    %1378 = vmatpush.bf16.msra.mxu0 0
    %1379 = vmatpush.bf16.msra.mxu0 0
    %1380 = vmatpush.bf16.msra.mxu0 0
    %1381 = vmatpush.bf16.msra.mxu0 %v1369
    %1382 = vmatpush.bf16.msra.mxu0 %v1368
    %1383 = vmatmul.bf16.gmra.mxu0 %v1373
    %v1384 = vpop.f32.mrf.mxu0
    %v1385 = vadd.f32 0.0, %v1384
    %v1386 = vpop.f32.mrf.mxu0
    %1387 = vdwg.mxu0
    %v1388 = vadd.f32 %v1306, %v1385
    %s1389 = scalar_lea.vmem [#allocation2], 104
    %v1390 = vld [vmem:[%s1389] sm:$0xff]
    %1391 = vmatpush.bf16.msra.mxu0 0
    %1392 = vmatpush.bf16.msra.mxu0 0
    %1393 = vmatpush.bf16.msra.mxu0 0
    %1394 = vmatpush.bf16.msra.mxu0 0
    %1395 = vmatpush.bf16.msra.mxu0 0
    %1396 = vmatpush.bf16.msra.mxu0 0
    %1397 = vmatpush.bf16.msra.mxu0 %v318
    %1398 = vmatpush.bf16.msra.mxu0 %v317
    %1399 = vmatmul.bf16.gmra.mxu0 %v1373
    %v1400 = vpop.f32.mrf.mxu0
    %v1401 = vadd.f32 0.0, %v1400
    %v1402 = vpop.f32.mrf.mxu0
    %1403 = vdwg.mxu0
    %v1404 = vadd.f32 %v1390, %v1401
    %v1405 = vxor.u32 %v1404, 2147483648
    %v1406 = vmul.f32 %v1405, 1.442695
    %v1407 = vpow.pop %v1406
    %v1408 = vadd.f32 %v1407, 1.0
    %v1409 = vrcp.pop %v1408
    %v1410 = vmul.f32 %v1408, %v1409
    %v1411 = vsub.f32 1.0, %v1410
    %v1412 = vmul.f32 %v1409, %v1411
    %v1413 = vadd.f32 %v1409, %v1412
    %vm1414 = vweird.f32 %v1408
    %vm1415 = vweird.f32 %v1409
    %vm1416 = vmor %vm1414, %vm1415
    %v1417 = vsel %vm1416, %v1409, %v1413
    %v1418 = vand.u32 2147483647, %v1408
    %vm1419 = vcmp.eq.f32.partialorder %v1418, 8.507059e+37
    %v1420 = vand.u32 %v1408, 2147483648
    %v1421 = vor.u32 1.1754944e-38, %v1420
    %v1422 = vsel %vm1419, %v1421, %v1417
    %v1423 = vmul.f32 1.0, %v1422
    %1424 = vrot.lane.b32.xlu0 %v1423, 64
    %v1425 = vpop.permute.xlu0 %1424
    %1426 = vrot.lane.b32.xlu0 %v1423, 32
    %v1427 = vpop.permute.xlu0 %1426
    %v1428 = vadd.f32 %v1401, %v363
    %v1429 = vmul.f32 %v1425, %v1428
    %v1430 = vadd.f32 %v1390, %v1429
    %v1431 = vtanh.pop %v1430
    %v1432 = vsub.f32 1.0, %v1427
    %v1433 = vmul.f32 %v1432, %v1431
    %v1434 = vmul.f32 %v1427, %v1353
    %v1435 = vadd.f32 %v1433, %v1434
    %v1436 = vpack.c.bf16 %v1435, %v1435
    %s1437 = scalar_lea.vmem [#allocation3], 208
    %v1438 = vld [vmem:[%s1437] sm:$0xf]
    %v1439 = vld [vmem:[%s1437 + $0x4] sm:$0xf]
    %v1440 = vld [vmem:[%s1437 + $0x8] sm:$0xf]
    %v1441 = vld [vmem:[%s1437 + $0xc] sm:$0xf]
    %v1446 = vunpack.c.l.b16 %v1438
    %v1447 = vunpack.c.l.b16 %v1439
    %v1448 = vunpack.c.l.b16 %v1440
    %v1449 = vunpack.c.l.b16 %v1441
    %v1450 = vpack.c.b16 %v1447, %v1446
    %v1451 = vpack.c.b16 %v1449, %v1448
    %v1455 = vsel %vm321, %v1436, 0
    %1457 = vmatpush.bf16.msra.mxu0 0
    %1458 = vmatpush.bf16.msra.mxu0 0
    %1459 = vmatpush.bf16.msra.mxu0 0
    %1460 = vmatpush.bf16.msra.mxu0 0
    %1461 = vmatpush.bf16.msra.mxu0 0
    %1462 = vmatpush.bf16.msra.mxu0 0
    %1463 = vmatpush.bf16.msra.mxu0 %v1451
    %1464 = vmatpush.bf16.msra.mxu0 %v1450
    %1465 = vmatmul.bf16.gmra.mxu0 %v1455
    %v1466 = vpop.f32.mrf.mxu0
    %v1467 = vadd.f32 0.0, %v1466
    %v1468 = vpop.f32.mrf.mxu0
    %1469 = vdwg.mxu0
    %v1470 = vadd.f32 %v1388, %v1467
    %s1471 = scalar_lea.vmem [#allocation2], 112
    %v1472 = vld [vmem:[%s1471] sm:$0xff]
    %1473 = vmatpush.bf16.msra.mxu0 0
    %1474 = vmatpush.bf16.msra.mxu0 0
    %1475 = vmatpush.bf16.msra.mxu0 0
    %1476 = vmatpush.bf16.msra.mxu0 0
    %1477 = vmatpush.bf16.msra.mxu0 0
    %1478 = vmatpush.bf16.msra.mxu0 0
    %1479 = vmatpush.bf16.msra.mxu0 %v318
    %1480 = vmatpush.bf16.msra.mxu0 %v317
    %1481 = vmatmul.bf16.gmra.mxu0 %v1455
    %v1482 = vpop.f32.mrf.mxu0
    %v1483 = vadd.f32 0.0, %v1482
    %v1484 = vpop.f32.mrf.mxu0
    %1485 = vdwg.mxu0
    %v1486 = vadd.f32 %v1472, %v1483
    %v1487 = vxor.u32 %v1486, 2147483648
    %v1488 = vmul.f32 %v1487, 1.442695
    %v1489 = vpow.pop %v1488
    %v1490 = vadd.f32 %v1489, 1.0
    %v1491 = vrcp.pop %v1490
    %v1492 = vmul.f32 %v1490, %v1491
    %v1493 = vsub.f32 1.0, %v1492
    %v1494 = vmul.f32 %v1491, %v1493
    %v1495 = vadd.f32 %v1491, %v1494
    %vm1496 = vweird.f32 %v1490
    %vm1497 = vweird.f32 %v1491
    %vm1498 = vmor %vm1496, %vm1497
    %v1499 = vsel %vm1498, %v1491, %v1495
    %v1500 = vand.u32 2147483647, %v1490
    %vm1501 = vcmp.eq.f32.partialorder %v1500, 8.507059e+37
    %v1502 = vand.u32 %v1490, 2147483648
    %v1503 = vor.u32 1.1754944e-38, %v1502
    %v1504 = vsel %vm1501, %v1503, %v1499
    %v1505 = vmul.f32 1.0, %v1504
    %1506 = vrot.lane.b32.xlu0 %v1505, 64
    %v1507 = vpop.permute.xlu0 %1506
    %1508 = vrot.lane.b32.xlu0 %v1505, 32
    %v1509 = vpop.permute.xlu0 %1508
    %v1510 = vadd.f32 %v1483, %v363
    %v1511 = vmul.f32 %v1507, %v1510
    %v1512 = vadd.f32 %v1472, %v1511
    %v1513 = vtanh.pop %v1512
    %v1514 = vsub.f32 1.0, %v1509
    %v1515 = vmul.f32 %v1514, %v1513
    %v1516 = vmul.f32 %v1509, %v1435
    %v1517 = vadd.f32 %v1515, %v1516
    %v1518 = vpack.c.bf16 %v1517, %v1517
    %s1519 = scalar_lea.vmem [#allocation3], 224
    %v1520 = vld [vmem:[%s1519] sm:$0xf]
    %v1521 = vld [vmem:[%s1519 + $0x4] sm:$0xf]
    %v1522 = vld [vmem:[%s1519 + $0x8] sm:$0xf]
    %v1523 = vld [vmem:[%s1519 + $0xc] sm:$0xf]
    %v1528 = vunpack.c.l.b16 %v1520
    %v1529 = vunpack.c.l.b16 %v1521
    %v1530 = vunpack.c.l.b16 %v1522
    %v1531 = vunpack.c.l.b16 %v1523
    %v1532 = vpack.c.b16 %v1529, %v1528
    %v1533 = vpack.c.b16 %v1531, %v1530
    %v1537 = vsel %vm321, %v1518, 0
    %1539 = vmatpush.bf16.msra.mxu0 0
    %1540 = vmatpush.bf16.msra.mxu0 0
    %1541 = vmatpush.bf16.msra.mxu0 0
    %1542 = vmatpush.bf16.msra.mxu0 0
    %1543 = vmatpush.bf16.msra.mxu0 0
    %1544 = vmatpush.bf16.msra.mxu0 0
    %1545 = vmatpush.bf16.msra.mxu0 %v1533
    %1546 = vmatpush.bf16.msra.mxu0 %v1532
    %1547 = vmatmul.bf16.gmra.mxu0 %v1537
    %v1548 = vpop.f32.mrf.mxu0
    %v1549 = vadd.f32 0.0, %v1548
    %v1550 = vpop.f32.mrf.mxu0
    %1551 = vdwg.mxu0
    %v1552 = vadd.f32 %v1470, %v1549
    %s1553 = scalar_lea.vmem [#allocation2], 120
    %v1554 = vld [vmem:[%s1553] sm:$0xff]
    %1555 = vmatpush.bf16.msra.mxu0 0
    %1556 = vmatpush.bf16.msra.mxu0 0
    %1557 = vmatpush.bf16.msra.mxu0 0
    %1558 = vmatpush.bf16.msra.mxu0 0
    %1559 = vmatpush.bf16.msra.mxu0 0
    %1560 = vmatpush.bf16.msra.mxu0 0
    %1561 = vmatpush.bf16.msra.mxu0 %v318
    %1562 = vmatpush.bf16.msra.mxu0 %v317
    %1563 = vmatmul.bf16.gmra.mxu0 %v1537
    %v1564 = vpop.f32.mrf.mxu0
    %v1565 = vadd.f32 0.0, %v1564
    %v1566 = vpop.f32.mrf.mxu0
    %1567 = vdwg.mxu0
    %v1568 = vadd.f32 %v1554, %v1565
    %v1569 = vxor.u32 %v1568, 2147483648
    %v1570 = vmul.f32 %v1569, 1.442695
    %v1571 = vpow.pop %v1570
    %v1572 = vadd.f32 %v1571, 1.0
    %v1573 = vrcp.pop %v1572
    %v1574 = vmul.f32 %v1572, %v1573
    %v1575 = vsub.f32 1.0, %v1574
    %v1576 = vmul.f32 %v1573, %v1575
    %v1577 = vadd.f32 %v1573, %v1576
    %vm1578 = vweird.f32 %v1572
    %vm1579 = vweird.f32 %v1573
    %vm1580 = vmor %vm1578, %vm1579
    %v1581 = vsel %vm1580, %v1573, %v1577
    %v1582 = vand.u32 2147483647, %v1572
    %vm1583 = vcmp.eq.f32.partialorder %v1582, 8.507059e+37
    %v1584 = vand.u32 %v1572, 2147483648
    %v1585 = vor.u32 1.1754944e-38, %v1584
    %v1586 = vsel %vm1583, %v1585, %v1581
    %v1587 = vmul.f32 1.0, %v1586
    %1588 = vrot.lane.b32.xlu0 %v1587, 64
    %v1589 = vpop.permute.xlu0 %1588
    %1590 = vrot.lane.b32.xlu0 %v1587, 32
    %v1591 = vpop.permute.xlu0 %1590
    %v1592 = vadd.f32 %v1565, %v363
    %v1593 = vmul.f32 %v1589, %v1592
    %v1594 = vadd.f32 %v1554, %v1593
    %v1595 = vtanh.pop %v1594
    %v1596 = vsub.f32 1.0, %v1591
    %v1597 = vmul.f32 %v1596, %v1595
    %v1598 = vmul.f32 %v1591, %v1517
    %v1599 = vadd.f32 %v1597, %v1598
    %v1600 = vpack.c.bf16 %v1599, %v1599
    %s1601 = scalar_lea.vmem [#allocation3], 240
    %v1602 = vld [vmem:[%s1601] sm:$0xf]
    %v1603 = vld [vmem:[%s1601 + $0x4] sm:$0xf]
    %v1604 = vld [vmem:[%s1601 + $0x8] sm:$0xf]
    %v1605 = vld [vmem:[%s1601 + $0xc] sm:$0xf]
    %v1610 = vunpack.c.l.b16 %v1602
    %v1611 = vunpack.c.l.b16 %v1603
    %v1612 = vunpack.c.l.b16 %v1604
    %v1613 = vunpack.c.l.b16 %v1605
    %v1614 = vpack.c.b16 %v1611, %v1610
    %v1615 = vpack.c.b16 %v1613, %v1612
    %v1619 = vsel %vm321, %v1600, 0
    %1621 = vmatpush.bf16.msra.mxu0 0
    %1622 = vmatpush.bf16.msra.mxu0 0
    %1623 = vmatpush.bf16.msra.mxu0 0
    %1624 = vmatpush.bf16.msra.mxu0 0
    %1625 = vmatpush.bf16.msra.mxu0 0
    %1626 = vmatpush.bf16.msra.mxu0 0
    %1627 = vmatpush.bf16.msra.mxu0 %v1615
    %1628 = vmatpush.bf16.msra.mxu0 %v1614
    %1629 = vmatmul.bf16.gmra.mxu0 %v1619
    %v1630 = vpop.f32.mrf.mxu0
    %v1631 = vadd.f32 0.0, %v1630
    %v1632 = vpop.f32.mrf.mxu0
    %1633 = vdwg.mxu0
    %v1634 = vadd.f32 %v1552, %v1631
    %s1635 = scalar_lea.vmem [#allocation2], 128
    %v1636 = vld [vmem:[%s1635] sm:$0xff]
    %1637 = vmatpush.bf16.msra.mxu0 0
    %1638 = vmatpush.bf16.msra.mxu0 0
    %1639 = vmatpush.bf16.msra.mxu0 0
    %1640 = vmatpush.bf16.msra.mxu0 0
    %1641 = vmatpush.bf16.msra.mxu0 0
    %1642 = vmatpush.bf16.msra.mxu0 0
    %1643 = vmatpush.bf16.msra.mxu0 %v318
    %1644 = vmatpush.bf16.msra.mxu0 %v317
    %1645 = vmatmul.bf16.gmra.mxu0 %v1619
    %v1646 = vpop.f32.mrf.mxu0
    %v1647 = vadd.f32 0.0, %v1646
    %v1648 = vpop.f32.mrf.mxu0
    %1649 = vdwg.mxu0
    %v1650 = vadd.f32 %v1636, %v1647
    %v1651 = vxor.u32 %v1650, 2147483648
    %v1652 = vmul.f32 %v1651, 1.442695
    %v1653 = vpow.pop %v1652
    %v1654 = vadd.f32 %v1653, 1.0
    %v1655 = vrcp.pop %v1654
    %v1656 = vmul.f32 %v1654, %v1655
    %v1657 = vsub.f32 1.0, %v1656
    %v1658 = vmul.f32 %v1655, %v1657
    %v1659 = vadd.f32 %v1655, %v1658
    %vm1660 = vweird.f32 %v1654
    %vm1661 = vweird.f32 %v1655
    %vm1662 = vmor %vm1660, %vm1661
    %v1663 = vsel %vm1662, %v1655, %v1659
    %v1664 = vand.u32 2147483647, %v1654
    %vm1665 = vcmp.eq.f32.partialorder %v1664, 8.507059e+37
    %v1666 = vand.u32 %v1654, 2147483648
    %v1667 = vor.u32 1.1754944e-38, %v1666
    %v1668 = vsel %vm1665, %v1667, %v1663
    %v1669 = vmul.f32 1.0, %v1668
    %1670 = vrot.lane.b32.xlu0 %v1669, 64
    %v1671 = vpop.permute.xlu0 %1670
    %1672 = vrot.lane.b32.xlu0 %v1669, 32
    %v1673 = vpop.permute.xlu0 %1672
    %v1674 = vadd.f32 %v1647, %v363
    %v1675 = vmul.f32 %v1671, %v1674
    %v1676 = vadd.f32 %v1636, %v1675
    %v1677 = vtanh.pop %v1676
    %v1678 = vsub.f32 1.0, %v1673
    %v1679 = vmul.f32 %v1678, %v1677
    %v1680 = vmul.f32 %v1673, %v1599
    %v1681 = vadd.f32 %v1679, %v1680
    %v1682 = vpack.c.bf16 %v1681, %v1681
    %s1683 = scalar_lea.vmem [#allocation3], 256
    %v1684 = vld [vmem:[%s1683] sm:$0xf]
    %v1685 = vld [vmem:[%s1683 + $0x4] sm:$0xf]
    %v1686 = vld [vmem:[%s1683 + $0x8] sm:$0xf]
    %v1687 = vld [vmem:[%s1683 + $0xc] sm:$0xf]
    %v1692 = vunpack.c.l.b16 %v1684
    %v1693 = vunpack.c.l.b16 %v1685
    %v1694 = vunpack.c.l.b16 %v1686
    %v1695 = vunpack.c.l.b16 %v1687
    %v1696 = vpack.c.b16 %v1693, %v1692
    %v1697 = vpack.c.b16 %v1695, %v1694
    %v1701 = vsel %vm321, %v1682, 0
    %1703 = vmatpush.bf16.msra.mxu0 0
    %1704 = vmatpush.bf16.msra.mxu0 0
    %1705 = vmatpush.bf16.msra.mxu0 0
    %1706 = vmatpush.bf16.msra.mxu0 0
    %1707 = vmatpush.bf16.msra.mxu0 0
    %1708 = vmatpush.bf16.msra.mxu0 0
    %1709 = vmatpush.bf16.msra.mxu0 %v1697
    %1710 = vmatpush.bf16.msra.mxu0 %v1696
    %1711 = vmatmul.bf16.gmra.mxu0 %v1701
    %v1712 = vpop.f32.mrf.mxu0
    %v1713 = vadd.f32 0.0, %v1712
    %v1714 = vpop.f32.mrf.mxu0
    %1715 = vdwg.mxu0
    %v1716 = vadd.f32 %v1634, %v1713
    %s1717 = scalar_lea.vmem [#allocation2], 136
    %v1718 = vld [vmem:[%s1717] sm:$0xff]
    %1719 = vmatpush.bf16.msra.mxu0 0
    %1720 = vmatpush.bf16.msra.mxu0 0
    %1721 = vmatpush.bf16.msra.mxu0 0
    %1722 = vmatpush.bf16.msra.mxu0 0
    %1723 = vmatpush.bf16.msra.mxu0 0
    %1724 = vmatpush.bf16.msra.mxu0 0
    %1725 = vmatpush.bf16.msra.mxu0 %v318
    %1726 = vmatpush.bf16.msra.mxu0 %v317
    %1727 = vmatmul.bf16.gmra.mxu0 %v1701
    %v1728 = vpop.f32.mrf.mxu0
    %v1729 = vadd.f32 0.0, %v1728
    %v1730 = vpop.f32.mrf.mxu0
    %1731 = vdwg.mxu0
    %v1732 = vadd.f32 %v1718, %v1729
    %v1733 = vxor.u32 %v1732, 2147483648
    %v1734 = vmul.f32 %v1733, 1.442695
    %v1735 = vpow.pop %v1734
    %v1736 = vadd.f32 %v1735, 1.0
    %v1737 = vrcp.pop %v1736
    %v1738 = vmul.f32 %v1736, %v1737
    %v1739 = vsub.f32 1.0, %v1738
    %v1740 = vmul.f32 %v1737, %v1739
    %v1741 = vadd.f32 %v1737, %v1740
    %vm1742 = vweird.f32 %v1736
    %vm1743 = vweird.f32 %v1737
    %vm1744 = vmor %vm1742, %vm1743
    %v1745 = vsel %vm1744, %v1737, %v1741
    %v1746 = vand.u32 2147483647, %v1736
    %vm1747 = vcmp.eq.f32.partialorder %v1746, 8.507059e+37
    %v1748 = vand.u32 %v1736, 2147483648
    %v1749 = vor.u32 1.1754944e-38, %v1748
    %v1750 = vsel %vm1747, %v1749, %v1745
    %v1751 = vmul.f32 1.0, %v1750
    %1752 = vrot.lane.b32.xlu0 %v1751, 64
    %v1753 = vpop.permute.xlu0 %1752
    %1754 = vrot.lane.b32.xlu0 %v1751, 32
    %v1755 = vpop.permute.xlu0 %1754
    %v1756 = vadd.f32 %v1729, %v363
    %v1757 = vmul.f32 %v1753, %v1756
    %v1758 = vadd.f32 %v1718, %v1757
    %v1759 = vtanh.pop %v1758
    %v1760 = vsub.f32 1.0, %v1755
    %v1761 = vmul.f32 %v1760, %v1759
    %v1762 = vmul.f32 %v1755, %v1681
    %v1763 = vadd.f32 %v1761, %v1762
    %v1764 = vpack.c.bf16 %v1763, %v1763
    %s1765 = scalar_lea.vmem [#allocation3], 272
    %v1766 = vld [vmem:[%s1765] sm:$0xf]
    %v1767 = vld [vmem:[%s1765 + $0x4] sm:$0xf]
    %v1768 = vld [vmem:[%s1765 + $0x8] sm:$0xf]
    %v1769 = vld [vmem:[%s1765 + $0xc] sm:$0xf]
    %v1774 = vunpack.c.l.b16 %v1766
    %v1775 = vunpack.c.l.b16 %v1767
    %v1776 = vunpack.c.l.b16 %v1768
    %v1777 = vunpack.c.l.b16 %v1769
    %v1778 = vpack.c.b16 %v1775, %v1774
    %v1779 = vpack.c.b16 %v1777, %v1776
    %v1783 = vsel %vm321, %v1764, 0
    %1785 = vmatpush.bf16.msra.mxu0 0
    %1786 = vmatpush.bf16.msra.mxu0 0
    %1787 = vmatpush.bf16.msra.mxu0 0
    %1788 = vmatpush.bf16.msra.mxu0 0
    %1789 = vmatpush.bf16.msra.mxu0 0
    %1790 = vmatpush.bf16.msra.mxu0 0
    %1791 = vmatpush.bf16.msra.mxu0 %v1779
    %1792 = vmatpush.bf16.msra.mxu0 %v1778
    %1793 = vmatmul.bf16.gmra.mxu0 %v1783
    %v1794 = vpop.f32.mrf.mxu0
    %v1795 = vadd.f32 0.0, %v1794
    %v1796 = vpop.f32.mrf.mxu0
    %1797 = vdwg.mxu0
    %v1798 = vadd.f32 %v1716, %v1795
    %s1799 = scalar_lea.vmem [#allocation2], 144
    %v1800 = vld [vmem:[%s1799] sm:$0xff]
    %1801 = vmatpush.bf16.msra.mxu0 0
    %1802 = vmatpush.bf16.msra.mxu0 0
    %1803 = vmatpush.bf16.msra.mxu0 0
    %1804 = vmatpush.bf16.msra.mxu0 0
    %1805 = vmatpush.bf16.msra.mxu0 0
    %1806 = vmatpush.bf16.msra.mxu0 0
    %1807 = vmatpush.bf16.msra.mxu0 %v318
    %1808 = vmatpush.bf16.msra.mxu0 %v317
    %1809 = vmatmul.bf16.gmra.mxu0 %v1783
    %v1810 = vpop.f32.mrf.mxu0
    %v1811 = vadd.f32 0.0, %v1810
    %v1812 = vpop.f32.mrf.mxu0
    %1813 = vdwg.mxu0
    %v1814 = vadd.f32 %v1800, %v1811
    %v1815 = vxor.u32 %v1814, 2147483648
    %v1816 = vmul.f32 %v1815, 1.442695
    %v1817 = vpow.pop %v1816
    %v1818 = vadd.f32 %v1817, 1.0
    %v1819 = vrcp.pop %v1818
    %v1820 = vmul.f32 %v1818, %v1819
    %v1821 = vsub.f32 1.0, %v1820
    %v1822 = vmul.f32 %v1819, %v1821
    %v1823 = vadd.f32 %v1819, %v1822
    %vm1824 = vweird.f32 %v1818
    %vm1825 = vweird.f32 %v1819
    %vm1826 = vmor %vm1824, %vm1825
    %v1827 = vsel %vm1826, %v1819, %v1823
    %v1828 = vand.u32 2147483647, %v1818
    %vm1829 = vcmp.eq.f32.partialorder %v1828, 8.507059e+37
    %v1830 = vand.u32 %v1818, 2147483648
    %v1831 = vor.u32 1.1754944e-38, %v1830
    %v1832 = vsel %vm1829, %v1831, %v1827
    %v1833 = vmul.f32 1.0, %v1832
    %1834 = vrot.lane.b32.xlu0 %v1833, 64
    %v1835 = vpop.permute.xlu0 %1834
    %1836 = vrot.lane.b32.xlu0 %v1833, 32
    %v1837 = vpop.permute.xlu0 %1836
    %v1838 = vadd.f32 %v1811, %v363
    %v1839 = vmul.f32 %v1835, %v1838
    %v1840 = vadd.f32 %v1800, %v1839
    %v1841 = vtanh.pop %v1840
    %v1842 = vsub.f32 1.0, %v1837
    %v1843 = vmul.f32 %v1842, %v1841
    %v1844 = vmul.f32 %v1837, %v1763
    %v1845 = vadd.f32 %v1843, %v1844
    %v1846 = vpack.c.bf16 %v1845, %v1845
    %s1847 = scalar_lea.vmem [#allocation3], 288
    %v1848 = vld [vmem:[%s1847] sm:$0xf]
    %v1849 = vld [vmem:[%s1847 + $0x4] sm:$0xf]
    %v1850 = vld [vmem:[%s1847 + $0x8] sm:$0xf]
    %v1851 = vld [vmem:[%s1847 + $0xc] sm:$0xf]
    %v1856 = vunpack.c.l.b16 %v1848
    %v1857 = vunpack.c.l.b16 %v1849
    %v1858 = vunpack.c.l.b16 %v1850
    %v1859 = vunpack.c.l.b16 %v1851
    %v1860 = vpack.c.b16 %v1857, %v1856
    %v1861 = vpack.c.b16 %v1859, %v1858
    %v1865 = vsel %vm321, %v1846, 0
    %1867 = vmatpush.bf16.msra.mxu0 0
    %1868 = vmatpush.bf16.msra.mxu0 0
    %1869 = vmatpush.bf16.msra.mxu0 0
    %1870 = vmatpush.bf16.msra.mxu0 0
    %1871 = vmatpush.bf16.msra.mxu0 0
    %1872 = vmatpush.bf16.msra.mxu0 0
    %1873 = vmatpush.bf16.msra.mxu0 %v1861
    %1874 = vmatpush.bf16.msra.mxu0 %v1860
    %1875 = vmatmul.bf16.gmra.mxu0 %v1865
    %v1876 = vpop.f32.mrf.mxu0
    %v1877 = vadd.f32 0.0, %v1876
    %v1878 = vpop.f32.mrf.mxu0
    %1879 = vdwg.mxu0
    %v1880 = vadd.f32 %v1798, %v1877
    %s1881 = scalar_lea.vmem [#allocation2], 152
    %v1882 = vld [vmem:[%s1881] sm:$0xff]
    %1883 = vmatpush.bf16.msra.mxu0 0
    %1884 = vmatpush.bf16.msra.mxu0 0
    %1885 = vmatpush.bf16.msra.mxu0 0
    %1886 = vmatpush.bf16.msra.mxu0 0
    %1887 = vmatpush.bf16.msra.mxu0 0
    %1888 = vmatpush.bf16.msra.mxu0 0
    %1889 = vmatpush.bf16.msra.mxu0 %v318
    %1890 = vmatpush.bf16.msra.mxu0 %v317
    %1891 = vmatmul.bf16.gmra.mxu0 %v1865
    %v1892 = vpop.f32.mrf.mxu0
    %v1893 = vadd.f32 0.0, %v1892
    %v1894 = vpop.f32.mrf.mxu0
    %1895 = vdwg.mxu0
    %v1896 = vadd.f32 %v1882, %v1893
    %v1897 = vxor.u32 %v1896, 2147483648
    %v1898 = vmul.f32 %v1897, 1.442695
    %v1899 = vpow.pop %v1898
    %v1900 = vadd.f32 %v1899, 1.0
    %v1901 = vrcp.pop %v1900
    %v1902 = vmul.f32 %v1900, %v1901
    %v1903 = vsub.f32 1.0, %v1902
    %v1904 = vmul.f32 %v1901, %v1903
    %v1905 = vadd.f32 %v1901, %v1904
    %vm1906 = vweird.f32 %v1900
    %vm1907 = vweird.f32 %v1901
    %vm1908 = vmor %vm1906, %vm1907
    %v1909 = vsel %vm1908, %v1901, %v1905
    %v1910 = vand.u32 2147483647, %v1900
    %vm1911 = vcmp.eq.f32.partialorder %v1910, 8.507059e+37
    %v1912 = vand.u32 %v1900, 2147483648
    %v1913 = vor.u32 1.1754944e-38, %v1912
    %v1914 = vsel %vm1911, %v1913, %v1909
    %v1915 = vmul.f32 1.0, %v1914
    %1916 = vrot.lane.b32.xlu0 %v1915, 64
    %v1917 = vpop.permute.xlu0 %1916
    %1918 = vrot.lane.b32.xlu0 %v1915, 32
    %v1919 = vpop.permute.xlu0 %1918
    %v1920 = vadd.f32 %v1893, %v363
    %v1921 = vmul.f32 %v1917, %v1920
    %v1922 = vadd.f32 %v1882, %v1921
    %v1923 = vtanh.pop %v1922
    %v1924 = vsub.f32 1.0, %v1919
    %v1925 = vmul.f32 %v1924, %v1923
    %v1926 = vmul.f32 %v1919, %v1845
    %v1927 = vadd.f32 %v1925, %v1926
    %v1928 = vpack.c.bf16 %v1927, %v1927
    %s1929 = scalar_lea.vmem [#allocation3], 304
    %v1930 = vld [vmem:[%s1929] sm:$0xf]
    %v1931 = vld [vmem:[%s1929 + $0x4] sm:$0xf]
    %v1932 = vld [vmem:[%s1929 + $0x8] sm:$0xf]
    %v1933 = vld [vmem:[%s1929 + $0xc] sm:$0xf]
    %v1938 = vunpack.c.l.b16 %v1930
    %v1939 = vunpack.c.l.b16 %v1931
    %v1940 = vunpack.c.l.b16 %v1932
    %v1941 = vunpack.c.l.b16 %v1933
    %v1942 = vpack.c.b16 %v1939, %v1938
    %v1943 = vpack.c.b16 %v1941, %v1940
    %v1947 = vsel %vm321, %v1928, 0
    %1949 = vmatpush.bf16.msra.mxu0 0
    %1950 = vmatpush.bf16.msra.mxu0 0
    %1951 = vmatpush.bf16.msra.mxu0 0
    %1952 = vmatpush.bf16.msra.mxu0 0
    %1953 = vmatpush.bf16.msra.mxu0 0
    %1954 = vmatpush.bf16.msra.mxu0 0
    %1955 = vmatpush.bf16.msra.mxu0 %v1943
    %1956 = vmatpush.bf16.msra.mxu0 %v1942
    %1957 = vmatmul.bf16.gmra.mxu0 %v1947
    %v1958 = vpop.f32.mrf.mxu0
    %v1959 = vadd.f32 0.0, %v1958
    %v1960 = vpop.f32.mrf.mxu0
    %1961 = vdwg.mxu0
    %v1962 = vadd.f32 %v1880, %v1959
    %s1963 = scalar_lea.vmem [#allocation2], 160
    %v1964 = vld [vmem:[%s1963] sm:$0xff]
    %1965 = vmatpush.bf16.msra.mxu0 0
    %1966 = vmatpush.bf16.msra.mxu0 0
    %1967 = vmatpush.bf16.msra.mxu0 0
    %1968 = vmatpush.bf16.msra.mxu0 0
    %1969 = vmatpush.bf16.msra.mxu0 0
    %1970 = vmatpush.bf16.msra.mxu0 0
    %1971 = vmatpush.bf16.msra.mxu0 %v318
    %1972 = vmatpush.bf16.msra.mxu0 %v317
    %1973 = vmatmul.bf16.gmra.mxu0 %v1947
    %v1974 = vpop.f32.mrf.mxu0
    %v1975 = vadd.f32 0.0, %v1974
    %v1976 = vpop.f32.mrf.mxu0
    %1977 = vdwg.mxu0
    %v1978 = vadd.f32 %v1964, %v1975
    %v1979 = vxor.u32 %v1978, 2147483648
    %v1980 = vmul.f32 %v1979, 1.442695
    %v1981 = vpow.pop %v1980
    %v1982 = vadd.f32 %v1981, 1.0
    %v1983 = vrcp.pop %v1982
    %v1984 = vmul.f32 %v1982, %v1983
    %v1985 = vsub.f32 1.0, %v1984
    %v1986 = vmul.f32 %v1983, %v1985
    %v1987 = vadd.f32 %v1983, %v1986
    %vm1988 = vweird.f32 %v1982
    %vm1989 = vweird.f32 %v1983
    %vm1990 = vmor %vm1988, %vm1989
    %v1991 = vsel %vm1990, %v1983, %v1987
    %v1992 = vand.u32 2147483647, %v1982
    %vm1993 = vcmp.eq.f32.partialorder %v1992, 8.507059e+37
    %v1994 = vand.u32 %v1982, 2147483648
    %v1995 = vor.u32 1.1754944e-38, %v1994
    %v1996 = vsel %vm1993, %v1995, %v1991
    %v1997 = vmul.f32 1.0, %v1996
    %1998 = vrot.lane.b32.xlu0 %v1997, 64
    %v1999 = vpop.permute.xlu0 %1998
    %2000 = vrot.lane.b32.xlu0 %v1997, 32
    %v2001 = vpop.permute.xlu0 %2000
    %v2002 = vadd.f32 %v1975, %v363
    %v2003 = vmul.f32 %v1999, %v2002
    %v2004 = vadd.f32 %v1964, %v2003
    %v2005 = vtanh.pop %v2004
    %v2006 = vsub.f32 1.0, %v2001
    %v2007 = vmul.f32 %v2006, %v2005
    %v2008 = vmul.f32 %v2001, %v1927
    %v2009 = vadd.f32 %v2007, %v2008
    %v2010 = vpack.c.bf16 %v2009, %v2009
    %s2011 = scalar_lea.vmem [#allocation3], 320
    %v2012 = vld [vmem:[%s2011] sm:$0xf]
    %v2013 = vld [vmem:[%s2011 + $0x4] sm:$0xf]
    %v2014 = vld [vmem:[%s2011 + $0x8] sm:$0xf]
    %v2015 = vld [vmem:[%s2011 + $0xc] sm:$0xf]
    %v2020 = vunpack.c.l.b16 %v2012
    %v2021 = vunpack.c.l.b16 %v2013
    %v2022 = vunpack.c.l.b16 %v2014
    %v2023 = vunpack.c.l.b16 %v2015
    %v2024 = vpack.c.b16 %v2021, %v2020
    %v2025 = vpack.c.b16 %v2023, %v2022
    %v2029 = vsel %vm321, %v2010, 0
    %2031 = vmatpush.bf16.msra.mxu0 0
    %2032 = vmatpush.bf16.msra.mxu0 0
    %2033 = vmatpush.bf16.msra.mxu0 0
    %2034 = vmatpush.bf16.msra.mxu0 0
    %2035 = vmatpush.bf16.msra.mxu0 0
    %2036 = vmatpush.bf16.msra.mxu0 0
    %2037 = vmatpush.bf16.msra.mxu0 %v2025
    %2038 = vmatpush.bf16.msra.mxu0 %v2024
    %2039 = vmatmul.bf16.gmra.mxu0 %v2029
    %v2040 = vpop.f32.mrf.mxu0
    %v2041 = vadd.f32 0.0, %v2040
    %v2042 = vpop.f32.mrf.mxu0
    %2043 = vdwg.mxu0
    %v2044 = vadd.f32 %v1962, %v2041
    %s2045 = scalar_lea.vmem [#allocation2], 168
    %v2046 = vld [vmem:[%s2045] sm:$0xff]
    %2047 = vmatpush.bf16.msra.mxu0 0
    %2048 = vmatpush.bf16.msra.mxu0 0
    %2049 = vmatpush.bf16.msra.mxu0 0
    %2050 = vmatpush.bf16.msra.mxu0 0
    %2051 = vmatpush.bf16.msra.mxu0 0
    %2052 = vmatpush.bf16.msra.mxu0 0
    %2053 = vmatpush.bf16.msra.mxu0 %v318
    %2054 = vmatpush.bf16.msra.mxu0 %v317
    %2055 = vmatmul.bf16.gmra.mxu0 %v2029
    %v2056 = vpop.f32.mrf.mxu0
    %v2057 = vadd.f32 0.0, %v2056
    %v2058 = vpop.f32.mrf.mxu0
    %2059 = vdwg.mxu0
    %v2060 = vadd.f32 %v2046, %v2057
    %v2061 = vxor.u32 %v2060, 2147483648
    %v2062 = vmul.f32 %v2061, 1.442695
    %v2063 = vpow.pop %v2062
    %v2064 = vadd.f32 %v2063, 1.0
    %v2065 = vrcp.pop %v2064
    %v2066 = vmul.f32 %v2064, %v2065
    %v2067 = vsub.f32 1.0, %v2066
    %v2068 = vmul.f32 %v2065, %v2067
    %v2069 = vadd.f32 %v2065, %v2068
    %vm2070 = vweird.f32 %v2064
    %vm2071 = vweird.f32 %v2065
    %vm2072 = vmor %vm2070, %vm2071
    %v2073 = vsel %vm2072, %v2065, %v2069
    %v2074 = vand.u32 2147483647, %v2064
    %vm2075 = vcmp.eq.f32.partialorder %v2074, 8.507059e+37
    %v2076 = vand.u32 %v2064, 2147483648
    %v2077 = vor.u32 1.1754944e-38, %v2076
    %v2078 = vsel %vm2075, %v2077, %v2073
    %v2079 = vmul.f32 1.0, %v2078
    %2080 = vrot.lane.b32.xlu0 %v2079, 64
    %v2081 = vpop.permute.xlu0 %2080
    %2082 = vrot.lane.b32.xlu0 %v2079, 32
    %v2083 = vpop.permute.xlu0 %2082
    %v2084 = vadd.f32 %v2057, %v363
    %v2085 = vmul.f32 %v2081, %v2084
    %v2086 = vadd.f32 %v2046, %v2085
    %v2087 = vtanh.pop %v2086
    %v2088 = vsub.f32 1.0, %v2083
    %v2089 = vmul.f32 %v2088, %v2087
    %v2090 = vmul.f32 %v2083, %v2009
    %v2091 = vadd.f32 %v2089, %v2090
    %v2092 = vpack.c.bf16 %v2091, %v2091
    %s2093 = scalar_lea.vmem [#allocation3], 336
    %v2094 = vld [vmem:[%s2093] sm:$0xf]
    %v2095 = vld [vmem:[%s2093 + $0x4] sm:$0xf]
    %v2096 = vld [vmem:[%s2093 + $0x8] sm:$0xf]
    %v2097 = vld [vmem:[%s2093 + $0xc] sm:$0xf]
    %v2102 = vunpack.c.l.b16 %v2094
    %v2103 = vunpack.c.l.b16 %v2095
    %v2104 = vunpack.c.l.b16 %v2096
    %v2105 = vunpack.c.l.b16 %v2097
    %v2106 = vpack.c.b16 %v2103, %v2102
    %v2107 = vpack.c.b16 %v2105, %v2104
    %v2111 = vsel %vm321, %v2092, 0
    %2113 = vmatpush.bf16.msra.mxu0 0
    %2114 = vmatpush.bf16.msra.mxu0 0
    %2115 = vmatpush.bf16.msra.mxu0 0
    %2116 = vmatpush.bf16.msra.mxu0 0
    %2117 = vmatpush.bf16.msra.mxu0 0
    %2118 = vmatpush.bf16.msra.mxu0 0
    %2119 = vmatpush.bf16.msra.mxu0 %v2107
    %2120 = vmatpush.bf16.msra.mxu0 %v2106
    %2121 = vmatmul.bf16.gmra.mxu0 %v2111
    %v2122 = vpop.f32.mrf.mxu0
    %v2123 = vadd.f32 0.0, %v2122
    %v2124 = vpop.f32.mrf.mxu0
    %2125 = vdwg.mxu0
    %v2126 = vadd.f32 %v2044, %v2123
    %s2127 = scalar_lea.vmem [#allocation2], 176
    %v2128 = vld [vmem:[%s2127] sm:$0xff]
    %2129 = vmatpush.bf16.msra.mxu0 0
    %2130 = vmatpush.bf16.msra.mxu0 0
    %2131 = vmatpush.bf16.msra.mxu0 0
    %2132 = vmatpush.bf16.msra.mxu0 0
    %2133 = vmatpush.bf16.msra.mxu0 0
    %2134 = vmatpush.bf16.msra.mxu0 0
    %2135 = vmatpush.bf16.msra.mxu0 %v318
    %2136 = vmatpush.bf16.msra.mxu0 %v317
    %2137 = vmatmul.bf16.gmra.mxu0 %v2111
    %v2138 = vpop.f32.mrf.mxu0
    %v2139 = vadd.f32 0.0, %v2138
    %v2140 = vpop.f32.mrf.mxu0
    %2141 = vdwg.mxu0
    %v2142 = vadd.f32 %v2128, %v2139
    %v2143 = vxor.u32 %v2142, 2147483648
    %v2144 = vmul.f32 %v2143, 1.442695
    %v2145 = vpow.pop %v2144
    %v2146 = vadd.f32 %v2145, 1.0
    %v2147 = vrcp.pop %v2146
    %v2148 = vmul.f32 %v2146, %v2147
    %v2149 = vsub.f32 1.0, %v2148
    %v2150 = vmul.f32 %v2147, %v2149
    %v2151 = vadd.f32 %v2147, %v2150
    %vm2152 = vweird.f32 %v2146
    %vm2153 = vweird.f32 %v2147
    %vm2154 = vmor %vm2152, %vm2153
    %v2155 = vsel %vm2154, %v2147, %v2151
    %v2156 = vand.u32 2147483647, %v2146
    %vm2157 = vcmp.eq.f32.partialorder %v2156, 8.507059e+37
    %v2158 = vand.u32 %v2146, 2147483648
    %v2159 = vor.u32 1.1754944e-38, %v2158
    %v2160 = vsel %vm2157, %v2159, %v2155
    %v2161 = vmul.f32 1.0, %v2160
    %2162 = vrot.lane.b32.xlu0 %v2161, 64
    %v2163 = vpop.permute.xlu0 %2162
    %2164 = vrot.lane.b32.xlu0 %v2161, 32
    %v2165 = vpop.permute.xlu0 %2164
    %v2166 = vadd.f32 %v2139, %v363
    %v2167 = vmul.f32 %v2163, %v2166
    %v2168 = vadd.f32 %v2128, %v2167
    %v2169 = vtanh.pop %v2168
    %v2170 = vsub.f32 1.0, %v2165
    %v2171 = vmul.f32 %v2170, %v2169
    %v2172 = vmul.f32 %v2165, %v2091
    %v2173 = vadd.f32 %v2171, %v2172
    %v2174 = vpack.c.bf16 %v2173, %v2173
    %s2175 = scalar_lea.vmem [#allocation3], 352
    %v2176 = vld [vmem:[%s2175] sm:$0xf]
    %v2177 = vld [vmem:[%s2175 + $0x4] sm:$0xf]
    %v2178 = vld [vmem:[%s2175 + $0x8] sm:$0xf]
    %v2179 = vld [vmem:[%s2175 + $0xc] sm:$0xf]
    %v2184 = vunpack.c.l.b16 %v2176
    %v2185 = vunpack.c.l.b16 %v2177
    %v2186 = vunpack.c.l.b16 %v2178
    %v2187 = vunpack.c.l.b16 %v2179
    %v2188 = vpack.c.b16 %v2185, %v2184
    %v2189 = vpack.c.b16 %v2187, %v2186
    %v2193 = vsel %vm321, %v2174, 0
    %2195 = vmatpush.bf16.msra.mxu0 0
    %2196 = vmatpush.bf16.msra.mxu0 0
    %2197 = vmatpush.bf16.msra.mxu0 0
    %2198 = vmatpush.bf16.msra.mxu0 0
    %2199 = vmatpush.bf16.msra.mxu0 0
    %2200 = vmatpush.bf16.msra.mxu0 0
    %2201 = vmatpush.bf16.msra.mxu0 %v2189
    %2202 = vmatpush.bf16.msra.mxu0 %v2188
    %2203 = vmatmul.bf16.gmra.mxu0 %v2193
    %v2204 = vpop.f32.mrf.mxu0
    %v2205 = vadd.f32 0.0, %v2204
    %v2206 = vpop.f32.mrf.mxu0
    %2207 = vdwg.mxu0
    %v2208 = vadd.f32 %v2126, %v2205
    %s2209 = scalar_lea.vmem [#allocation2], 184
    %v2210 = vld [vmem:[%s2209] sm:$0xff]
    %2211 = vmatpush.bf16.msra.mxu0 0
    %2212 = vmatpush.bf16.msra.mxu0 0
    %2213 = vmatpush.bf16.msra.mxu0 0
    %2214 = vmatpush.bf16.msra.mxu0 0
    %2215 = vmatpush.bf16.msra.mxu0 0
    %2216 = vmatpush.bf16.msra.mxu0 0
    %2217 = vmatpush.bf16.msra.mxu0 %v318
    %2218 = vmatpush.bf16.msra.mxu0 %v317
    %2219 = vmatmul.bf16.gmra.mxu0 %v2193
    %v2220 = vpop.f32.mrf.mxu0
    %v2221 = vadd.f32 0.0, %v2220
    %v2222 = vpop.f32.mrf.mxu0
    %2223 = vdwg.mxu0
    %v2224 = vadd.f32 %v2210, %v2221
    %v2225 = vxor.u32 %v2224, 2147483648
    %v2226 = vmul.f32 %v2225, 1.442695
    %v2227 = vpow.pop %v2226
    %v2228 = vadd.f32 %v2227, 1.0
    %v2229 = vrcp.pop %v2228
    %v2230 = vmul.f32 %v2228, %v2229
    %v2231 = vsub.f32 1.0, %v2230
    %v2232 = vmul.f32 %v2229, %v2231
    %v2233 = vadd.f32 %v2229, %v2232
    %vm2234 = vweird.f32 %v2228
    %vm2235 = vweird.f32 %v2229
    %vm2236 = vmor %vm2234, %vm2235
    %v2237 = vsel %vm2236, %v2229, %v2233
    %v2238 = vand.u32 2147483647, %v2228
    %vm2239 = vcmp.eq.f32.partialorder %v2238, 8.507059e+37
    %v2240 = vand.u32 %v2228, 2147483648
    %v2241 = vor.u32 1.1754944e-38, %v2240
    %v2242 = vsel %vm2239, %v2241, %v2237
    %v2243 = vmul.f32 1.0, %v2242
    %2244 = vrot.lane.b32.xlu0 %v2243, 64
    %v2245 = vpop.permute.xlu0 %2244
    %2246 = vrot.lane.b32.xlu0 %v2243, 32
    %v2247 = vpop.permute.xlu0 %2246
    %v2248 = vadd.f32 %v2221, %v363
    %v2249 = vmul.f32 %v2245, %v2248
    %v2250 = vadd.f32 %v2210, %v2249
    %v2251 = vtanh.pop %v2250
    %v2252 = vsub.f32 1.0, %v2247
    %v2253 = vmul.f32 %v2252, %v2251
    %v2254 = vmul.f32 %v2247, %v2173
    %v2255 = vadd.f32 %v2253, %v2254
    %v2256 = vpack.c.bf16 %v2255, %v2255
    %s2257 = scalar_lea.vmem [#allocation3], 368
    %v2258 = vld [vmem:[%s2257] sm:$0xf]
    %v2259 = vld [vmem:[%s2257 + $0x4] sm:$0xf]
    %v2260 = vld [vmem:[%s2257 + $0x8] sm:$0xf]
    %v2261 = vld [vmem:[%s2257 + $0xc] sm:$0xf]
    %v2266 = vunpack.c.l.b16 %v2258
    %v2267 = vunpack.c.l.b16 %v2259
    %v2268 = vunpack.c.l.b16 %v2260
    %v2269 = vunpack.c.l.b16 %v2261
    %v2270 = vpack.c.b16 %v2267, %v2266
    %v2271 = vpack.c.b16 %v2269, %v2268
    %v2275 = vsel %vm321, %v2256, 0
    %2277 = vmatpush.bf16.msra.mxu0 0
    %2278 = vmatpush.bf16.msra.mxu0 0
    %2279 = vmatpush.bf16.msra.mxu0 0
    %2280 = vmatpush.bf16.msra.mxu0 0
    %2281 = vmatpush.bf16.msra.mxu0 0
    %2282 = vmatpush.bf16.msra.mxu0 0
    %2283 = vmatpush.bf16.msra.mxu0 %v2271
    %2284 = vmatpush.bf16.msra.mxu0 %v2270
    %2285 = vmatmul.bf16.gmra.mxu0 %v2275
    %v2286 = vpop.f32.mrf.mxu0
    %v2287 = vadd.f32 0.0, %v2286
    %v2288 = vpop.f32.mrf.mxu0
    %2289 = vdwg.mxu0
    %v2290 = vadd.f32 %v2208, %v2287
    %s2291 = scalar_lea.vmem [#allocation2], 192
    %v2292 = vld [vmem:[%s2291] sm:$0xff]
    %2293 = vmatpush.bf16.msra.mxu0 0
    %2294 = vmatpush.bf16.msra.mxu0 0
    %2295 = vmatpush.bf16.msra.mxu0 0
    %2296 = vmatpush.bf16.msra.mxu0 0
    %2297 = vmatpush.bf16.msra.mxu0 0
    %2298 = vmatpush.bf16.msra.mxu0 0
    %2299 = vmatpush.bf16.msra.mxu0 %v318
    %2300 = vmatpush.bf16.msra.mxu0 %v317
    %2301 = vmatmul.bf16.gmra.mxu0 %v2275
    %v2302 = vpop.f32.mrf.mxu0
    %v2303 = vadd.f32 0.0, %v2302
    %v2304 = vpop.f32.mrf.mxu0
    %2305 = vdwg.mxu0
    %v2306 = vadd.f32 %v2292, %v2303
    %v2307 = vxor.u32 %v2306, 2147483648
    %v2308 = vmul.f32 %v2307, 1.442695
    %v2309 = vpow.pop %v2308
    %v2310 = vadd.f32 %v2309, 1.0
    %v2311 = vrcp.pop %v2310
    %v2312 = vmul.f32 %v2310, %v2311
    %v2313 = vsub.f32 1.0, %v2312
    %v2314 = vmul.f32 %v2311, %v2313
    %v2315 = vadd.f32 %v2311, %v2314
    %vm2316 = vweird.f32 %v2310
    %vm2317 = vweird.f32 %v2311
    %vm2318 = vmor %vm2316, %vm2317
    %v2319 = vsel %vm2318, %v2311, %v2315
    %v2320 = vand.u32 2147483647, %v2310
    %vm2321 = vcmp.eq.f32.partialorder %v2320, 8.507059e+37
    %v2322 = vand.u32 %v2310, 2147483648
    %v2323 = vor.u32 1.1754944e-38, %v2322
    %v2324 = vsel %vm2321, %v2323, %v2319
    %v2325 = vmul.f32 1.0, %v2324
    %2326 = vrot.lane.b32.xlu0 %v2325, 64
    %v2327 = vpop.permute.xlu0 %2326
    %2328 = vrot.lane.b32.xlu0 %v2325, 32
    %v2329 = vpop.permute.xlu0 %2328
    %v2330 = vadd.f32 %v2303, %v363
    %v2331 = vmul.f32 %v2327, %v2330
    %v2332 = vadd.f32 %v2292, %v2331
    %v2333 = vtanh.pop %v2332
    %v2334 = vsub.f32 1.0, %v2329
    %v2335 = vmul.f32 %v2334, %v2333
    %v2336 = vmul.f32 %v2329, %v2255
    %v2337 = vadd.f32 %v2335, %v2336
    %v2338 = vpack.c.bf16 %v2337, %v2337
    %s2339 = scalar_lea.vmem [#allocation3], 384
    %v2340 = vld [vmem:[%s2339] sm:$0xf]
    %v2341 = vld [vmem:[%s2339 + $0x4] sm:$0xf]
    %v2342 = vld [vmem:[%s2339 + $0x8] sm:$0xf]
    %v2343 = vld [vmem:[%s2339 + $0xc] sm:$0xf]
    %v2348 = vunpack.c.l.b16 %v2340
    %v2349 = vunpack.c.l.b16 %v2341
    %v2350 = vunpack.c.l.b16 %v2342
    %v2351 = vunpack.c.l.b16 %v2343
    %v2352 = vpack.c.b16 %v2349, %v2348
    %v2353 = vpack.c.b16 %v2351, %v2350
    %v2357 = vsel %vm321, %v2338, 0
    %2359 = vmatpush.bf16.msra.mxu0 0
    %2360 = vmatpush.bf16.msra.mxu0 0
    %2361 = vmatpush.bf16.msra.mxu0 0
    %2362 = vmatpush.bf16.msra.mxu0 0
    %2363 = vmatpush.bf16.msra.mxu0 0
    %2364 = vmatpush.bf16.msra.mxu0 0
    %2365 = vmatpush.bf16.msra.mxu0 %v2353
    %2366 = vmatpush.bf16.msra.mxu0 %v2352
    %2367 = vmatmul.bf16.gmra.mxu0 %v2357
    %v2368 = vpop.f32.mrf.mxu0
    %v2369 = vadd.f32 0.0, %v2368
    %v2370 = vpop.f32.mrf.mxu0
    %2371 = vdwg.mxu0
    %v2372 = vadd.f32 %v2290, %v2369
    %s2373 = scalar_lea.vmem [#allocation2], 200
    %v2374 = vld [vmem:[%s2373] sm:$0xff]
    %2375 = vmatpush.bf16.msra.mxu0 0
    %2376 = vmatpush.bf16.msra.mxu0 0
    %2377 = vmatpush.bf16.msra.mxu0 0
    %2378 = vmatpush.bf16.msra.mxu0 0
    %2379 = vmatpush.bf16.msra.mxu0 0
    %2380 = vmatpush.bf16.msra.mxu0 0
    %2381 = vmatpush.bf16.msra.mxu0 %v318
    %2382 = vmatpush.bf16.msra.mxu0 %v317
    %2383 = vmatmul.bf16.gmra.mxu0 %v2357
    %v2384 = vpop.f32.mrf.mxu0
    %v2385 = vadd.f32 0.0, %v2384
    %v2386 = vpop.f32.mrf.mxu0
    %2387 = vdwg.mxu0
    %v2388 = vadd.f32 %v2374, %v2385
    %v2389 = vxor.u32 %v2388, 2147483648
    %v2390 = vmul.f32 %v2389, 1.442695
    %v2391 = vpow.pop %v2390
    %v2392 = vadd.f32 %v2391, 1.0
    %v2393 = vrcp.pop %v2392
    %v2394 = vmul.f32 %v2392, %v2393
    %v2395 = vsub.f32 1.0, %v2394
    %v2396 = vmul.f32 %v2393, %v2395
    %v2397 = vadd.f32 %v2393, %v2396
    %vm2398 = vweird.f32 %v2392
    %vm2399 = vweird.f32 %v2393
    %vm2400 = vmor %vm2398, %vm2399
    %v2401 = vsel %vm2400, %v2393, %v2397
    %v2402 = vand.u32 2147483647, %v2392
    %vm2403 = vcmp.eq.f32.partialorder %v2402, 8.507059e+37
    %v2404 = vand.u32 %v2392, 2147483648
    %v2405 = vor.u32 1.1754944e-38, %v2404
    %v2406 = vsel %vm2403, %v2405, %v2401
    %v2407 = vmul.f32 1.0, %v2406
    %2408 = vrot.lane.b32.xlu0 %v2407, 64
    %v2409 = vpop.permute.xlu0 %2408
    %2410 = vrot.lane.b32.xlu0 %v2407, 32
    %v2411 = vpop.permute.xlu0 %2410
    %v2412 = vadd.f32 %v2385, %v363
    %v2413 = vmul.f32 %v2409, %v2412
    %v2414 = vadd.f32 %v2374, %v2413
    %v2415 = vtanh.pop %v2414
    %v2416 = vsub.f32 1.0, %v2411
    %v2417 = vmul.f32 %v2416, %v2415
    %v2418 = vmul.f32 %v2411, %v2337
    %v2419 = vadd.f32 %v2417, %v2418
    %v2420 = vpack.c.bf16 %v2419, %v2419
    %s2421 = scalar_lea.vmem [#allocation3], 400
    %v2422 = vld [vmem:[%s2421] sm:$0xf]
    %v2423 = vld [vmem:[%s2421 + $0x4] sm:$0xf]
    %v2424 = vld [vmem:[%s2421 + $0x8] sm:$0xf]
    %v2425 = vld [vmem:[%s2421 + $0xc] sm:$0xf]
    %v2430 = vunpack.c.l.b16 %v2422
    %v2431 = vunpack.c.l.b16 %v2423
    %v2432 = vunpack.c.l.b16 %v2424
    %v2433 = vunpack.c.l.b16 %v2425
    %v2434 = vpack.c.b16 %v2431, %v2430
    %v2435 = vpack.c.b16 %v2433, %v2432
    %v2439 = vsel %vm321, %v2420, 0
    %2441 = vmatpush.bf16.msra.mxu0 0
    %2442 = vmatpush.bf16.msra.mxu0 0
    %2443 = vmatpush.bf16.msra.mxu0 0
    %2444 = vmatpush.bf16.msra.mxu0 0
    %2445 = vmatpush.bf16.msra.mxu0 0
    %2446 = vmatpush.bf16.msra.mxu0 0
    %2447 = vmatpush.bf16.msra.mxu0 %v2435
    %2448 = vmatpush.bf16.msra.mxu0 %v2434
    %2449 = vmatmul.bf16.gmra.mxu0 %v2439
    %v2450 = vpop.f32.mrf.mxu0
    %v2451 = vadd.f32 0.0, %v2450
    %v2452 = vpop.f32.mrf.mxu0
    %2453 = vdwg.mxu0
    %v2454 = vadd.f32 %v2372, %v2451
    %s2455 = scalar_lea.vmem [#allocation2], 208
    %v2456 = vld [vmem:[%s2455] sm:$0xff]
    %2457 = vmatpush.bf16.msra.mxu0 0
    %2458 = vmatpush.bf16.msra.mxu0 0
    %2459 = vmatpush.bf16.msra.mxu0 0
    %2460 = vmatpush.bf16.msra.mxu0 0
    %2461 = vmatpush.bf16.msra.mxu0 0
    %2462 = vmatpush.bf16.msra.mxu0 0
    %2463 = vmatpush.bf16.msra.mxu0 %v318
    %2464 = vmatpush.bf16.msra.mxu0 %v317
    %2465 = vmatmul.bf16.gmra.mxu0 %v2439
    %v2466 = vpop.f32.mrf.mxu0
    %v2467 = vadd.f32 0.0, %v2466
    %v2468 = vpop.f32.mrf.mxu0
    %2469 = vdwg.mxu0
    %v2470 = vadd.f32 %v2456, %v2467
    %v2471 = vxor.u32 %v2470, 2147483648
    %v2472 = vmul.f32 %v2471, 1.442695
    %v2473 = vpow.pop %v2472
    %v2474 = vadd.f32 %v2473, 1.0
    %v2475 = vrcp.pop %v2474
    %v2476 = vmul.f32 %v2474, %v2475
    %v2477 = vsub.f32 1.0, %v2476
    %v2478 = vmul.f32 %v2475, %v2477
    %v2479 = vadd.f32 %v2475, %v2478
    %vm2480 = vweird.f32 %v2474
    %vm2481 = vweird.f32 %v2475
    %vm2482 = vmor %vm2480, %vm2481
    %v2483 = vsel %vm2482, %v2475, %v2479
    %v2484 = vand.u32 2147483647, %v2474
    %vm2485 = vcmp.eq.f32.partialorder %v2484, 8.507059e+37
    %v2486 = vand.u32 %v2474, 2147483648
    %v2487 = vor.u32 1.1754944e-38, %v2486
    %v2488 = vsel %vm2485, %v2487, %v2483
    %v2489 = vmul.f32 1.0, %v2488
    %2490 = vrot.lane.b32.xlu0 %v2489, 64
    %v2491 = vpop.permute.xlu0 %2490
    %2492 = vrot.lane.b32.xlu0 %v2489, 32
    %v2493 = vpop.permute.xlu0 %2492
    %v2494 = vadd.f32 %v2467, %v363
    %v2495 = vmul.f32 %v2491, %v2494
    %v2496 = vadd.f32 %v2456, %v2495
    %v2497 = vtanh.pop %v2496
    %v2498 = vsub.f32 1.0, %v2493
    %v2499 = vmul.f32 %v2498, %v2497
    %v2500 = vmul.f32 %v2493, %v2419
    %v2501 = vadd.f32 %v2499, %v2500
    %v2502 = vpack.c.bf16 %v2501, %v2501
    %s2503 = scalar_lea.vmem [#allocation3], 416
    %v2504 = vld [vmem:[%s2503] sm:$0xf]
    %v2505 = vld [vmem:[%s2503 + $0x4] sm:$0xf]
    %v2506 = vld [vmem:[%s2503 + $0x8] sm:$0xf]
    %v2507 = vld [vmem:[%s2503 + $0xc] sm:$0xf]
    %v2512 = vunpack.c.l.b16 %v2504
    %v2513 = vunpack.c.l.b16 %v2505
    %v2514 = vunpack.c.l.b16 %v2506
    %v2515 = vunpack.c.l.b16 %v2507
    %v2516 = vpack.c.b16 %v2513, %v2512
    %v2517 = vpack.c.b16 %v2515, %v2514
    %v2521 = vsel %vm321, %v2502, 0
    %2523 = vmatpush.bf16.msra.mxu0 0
    %2524 = vmatpush.bf16.msra.mxu0 0
    %2525 = vmatpush.bf16.msra.mxu0 0
    %2526 = vmatpush.bf16.msra.mxu0 0
    %2527 = vmatpush.bf16.msra.mxu0 0
    %2528 = vmatpush.bf16.msra.mxu0 0
    %2529 = vmatpush.bf16.msra.mxu0 %v2517
    %2530 = vmatpush.bf16.msra.mxu0 %v2516
    %2531 = vmatmul.bf16.gmra.mxu0 %v2521
    %v2532 = vpop.f32.mrf.mxu0
    %v2533 = vadd.f32 0.0, %v2532
    %v2534 = vpop.f32.mrf.mxu0
    %2535 = vdwg.mxu0
    %v2536 = vadd.f32 %v2454, %v2533
    %s2537 = scalar_lea.vmem [#allocation2], 216
    %v2538 = vld [vmem:[%s2537] sm:$0xff]
    %2539 = vmatpush.bf16.msra.mxu0 0
    %2540 = vmatpush.bf16.msra.mxu0 0
    %2541 = vmatpush.bf16.msra.mxu0 0
    %2542 = vmatpush.bf16.msra.mxu0 0
    %2543 = vmatpush.bf16.msra.mxu0 0
    %2544 = vmatpush.bf16.msra.mxu0 0
    %2545 = vmatpush.bf16.msra.mxu0 %v318
    %2546 = vmatpush.bf16.msra.mxu0 %v317
    %2547 = vmatmul.bf16.gmra.mxu0 %v2521
    %v2548 = vpop.f32.mrf.mxu0
    %v2549 = vadd.f32 0.0, %v2548
    %v2550 = vpop.f32.mrf.mxu0
    %2551 = vdwg.mxu0
    %v2552 = vadd.f32 %v2538, %v2549
    %v2553 = vxor.u32 %v2552, 2147483648
    %v2554 = vmul.f32 %v2553, 1.442695
    %v2555 = vpow.pop %v2554
    %v2556 = vadd.f32 %v2555, 1.0
    %v2557 = vrcp.pop %v2556
    %v2558 = vmul.f32 %v2556, %v2557
    %v2559 = vsub.f32 1.0, %v2558
    %v2560 = vmul.f32 %v2557, %v2559
    %v2561 = vadd.f32 %v2557, %v2560
    %vm2562 = vweird.f32 %v2556
    %vm2563 = vweird.f32 %v2557
    %vm2564 = vmor %vm2562, %vm2563
    %v2565 = vsel %vm2564, %v2557, %v2561
    %v2566 = vand.u32 2147483647, %v2556
    %vm2567 = vcmp.eq.f32.partialorder %v2566, 8.507059e+37
    %v2568 = vand.u32 %v2556, 2147483648
    %v2569 = vor.u32 1.1754944e-38, %v2568
    %v2570 = vsel %vm2567, %v2569, %v2565
    %v2571 = vmul.f32 1.0, %v2570
    %2572 = vrot.lane.b32.xlu0 %v2571, 64
    %v2573 = vpop.permute.xlu0 %2572
    %2574 = vrot.lane.b32.xlu0 %v2571, 32
    %v2575 = vpop.permute.xlu0 %2574
    %v2576 = vadd.f32 %v2549, %v363
    %v2577 = vmul.f32 %v2573, %v2576
    %v2578 = vadd.f32 %v2538, %v2577
    %v2579 = vtanh.pop %v2578
    %v2580 = vsub.f32 1.0, %v2575
    %v2581 = vmul.f32 %v2580, %v2579
    %v2582 = vmul.f32 %v2575, %v2501
    %v2583 = vadd.f32 %v2581, %v2582
    %v2584 = vpack.c.bf16 %v2583, %v2583
    %s2585 = scalar_lea.vmem [#allocation3], 432
    %v2586 = vld [vmem:[%s2585] sm:$0xf]
    %v2587 = vld [vmem:[%s2585 + $0x4] sm:$0xf]
    %v2588 = vld [vmem:[%s2585 + $0x8] sm:$0xf]
    %v2589 = vld [vmem:[%s2585 + $0xc] sm:$0xf]
    %v2594 = vunpack.c.l.b16 %v2586
    %v2595 = vunpack.c.l.b16 %v2587
    %v2596 = vunpack.c.l.b16 %v2588
    %v2597 = vunpack.c.l.b16 %v2589
    %v2598 = vpack.c.b16 %v2595, %v2594
    %v2599 = vpack.c.b16 %v2597, %v2596
    %v2603 = vsel %vm321, %v2584, 0
    %2605 = vmatpush.bf16.msra.mxu0 0
    %2606 = vmatpush.bf16.msra.mxu0 0
    %2607 = vmatpush.bf16.msra.mxu0 0
    %2608 = vmatpush.bf16.msra.mxu0 0
    %2609 = vmatpush.bf16.msra.mxu0 0
    %2610 = vmatpush.bf16.msra.mxu0 0
    %2611 = vmatpush.bf16.msra.mxu0 %v2599
    %2612 = vmatpush.bf16.msra.mxu0 %v2598
    %2613 = vmatmul.bf16.gmra.mxu0 %v2603
    %v2614 = vpop.f32.mrf.mxu0
    %v2615 = vadd.f32 0.0, %v2614
    %v2616 = vpop.f32.mrf.mxu0
    %2617 = vdwg.mxu0
    %v2618 = vadd.f32 %v2536, %v2615
    %v2619 = vld [vmem:[%s6] sm:$0x1]
    %v2621 = vperm.slane %v2619, 0
    %v2623 = vadd.f32 %v2618, %v2621
    %2624 = vst [vmem:[%s7] sm:$0xff] %v2623
    // Predicated region
    $region34: #{gru_forward.1} parent=1 // pred_check
      _
    $region35: #{gru_forward.1} parent=1 // pred_check_branch
      %2626 = sbr.rel (0) target = $region37
    $region36: #{gru_forward.1} parent=1 // pred_region
      _
    $region37: #{gru_forward.1} parent=1 // pred_fallthru
      _
    // Predicated region
    $region38: #{gru_forward.1} parent=1 // pred_check
      _
    $region39: #{gru_forward.1} parent=1 // pred_check_branch
      %2628 = sbr.rel (0) target = $region41
    $region40: #{gru_forward.1} parent=1 // pred_region
      _
    $region41: #{gru_forward.1} parent=1 // pred_fallthru
      _
    %2629 = vsyncpa [#allocation4], 1

</llo_original>
